<compile_context>
chip_gen: v6e
topology: v6e:2x2x1
jax: 0.10.0
libtpu: 0.0.40
codegen_flags: <defaults>
</compile_context>

<pallas_src>
import numpy as np

import jax
import jax.numpy as jnp
from jax import lax
from jax.experimental import pallas as pl
from jax.experimental.pallas import tpu as pltpu

# ---- model configuration -----------------------------------------------------
BATCH = 2
NUM_COLORS = 4
IMAGE_SIZE = 16
CONV_DEPTH = 8
FEAT_SIZE = 8                                   # conv output spatial size
LATENT = 8
KSIZE = 4
STRIDE = 2
PAD = 1

BN_EPS_CONV = 1e-3   # bn_val passed to BatchNorm2d in the module
BN_EPS_FC = 1e-5     # nn.BatchNorm1d default eps (decoder fc path)

ENC_WIN = NUM_COLORS * KSIZE * IMAGE_SIZE       # 256 : encoder window (ci, kh, w)
ENC_COLS = CONV_DEPTH * FEAT_SIZE               # 64  : encoder band cols (co, ow)
DEC_BLK = 256                                   # decoder window 192 padded to 2 lane tiles
DEC_COLS = NUM_COLORS * 2 * IMAGE_SIZE          # 128 : convT band cols (co, rh, W)


# --------------------------- Pallas kernel ------------------------------------

def _fused_vcae_kernel(xw_ref, eps_ref,
                       wband_ref, sh_ref,       # encoder conv band (BN folded), shift
                       wm_ref, bm_ref,          # mean head (f32)
                       ws_ref, bs_ref,          # std head (f32)
                       wdx_ref, sdx_ref,        # decoder fc, column-replicated windows
                       wt_ref, bt_ref,          # convT row-pair band, bias
                       mean_ref, std_ref, out_ref):
    """Whole VCAE forward in one kernel; ~0.2 MiB of weights, all in VMEM."""
    f32 = jnp.float32
    bf16 = jnp.bfloat16
    B = eps_ref.shape[0]

    # encoder: Conv2d(4->8,k4,s2,p1) + BN2d + ReLU as one banded GEMM (f32).
    # xw rows are (oh, b); columns of the result are (co, ow).
    h = jnp.dot(xw_ref[...], wband_ref[...], preferred_element_type=f32)
    h = jnp.maximum(h + sh_ref[...], 0.0)                         # (8*B, 64)

    # latent heads in f32 (review): accumulate the (co,oh,ow) contraction over
    # the 8 output rows.  Separate mean/std accumulators -> no cross-lane split.
    mean = bm_ref[...]                                            # (1, 8) -> bcast
    std = bs_ref[...]
    for oh in range(FEAT_SIZE):
        hb = h[oh * B:(oh + 1) * B, :]                            # (B, 64)
        mean = mean + jnp.dot(hb, wm_ref[oh], preferred_element_type=f32)
        std = std + jnp.dot(hb, ws_ref[oh], preferred_element_type=f32)
    mean_ref[...] = mean
    std_ref[...] = std

    # reparameterization: z = eps * std + mean   (raw std, as in torch forward)
    z = eps_ref[...] * std + mean                                 # (B, 8)

    # decoder fc: Linear(8->512) + BN1d + ReLU, with the 3-input-row windows the
    # ConvT needs replicated into the weight columns (block a = rows a-1,a,a+1,
    # zero-padded to 256 lanes; boundary rows are zero columns -> relu(0)=0).
    dwin = jnp.dot(z.astype(bf16), wdx_ref[...], preferred_element_type=f32)
    dwin = jnp.maximum(dwin + sdx_ref[...], 0.0)                  # (B, 8*256)

    # decoder ConvTranspose2d(8->4,k4,s2,p1) + Sigmoid: one small band GEMM per
    # output row pair; kernel output rows are (a, b), cols (co, rh, W).
    for a in range(FEAT_SIZE):
        blk = dwin[:, a * DEC_BLK:(a + 1) * DEC_BLK].astype(bf16)  # (B, 256)
        o = jnp.dot(blk, wt_ref[...], preferred_element_type=f32) + bt_ref[...]
        out_ref[a * B:(a + 1) * B, :] = jax.nn.sigmoid(o)          # (B, 128)


def fused_forward(xw, eps, prep):
    b = eps.shape[0]
    rows = FEAT_SIZE * b

    def spec(shape):
        return pl.BlockSpec(shape, lambda i, _n=len(shape): (0,) * _n)

    # NOTE: weight specs return constant block indices; for much larger batches,
    # grid over row-blocks of xw/out (weights stay VMEM-resident between steps).
    return pl.pallas_call(
        _fused_vcae_kernel,
        out_shape=(jax.ShapeDtypeStruct((b, LATENT), jnp.float32),
                   jax.ShapeDtypeStruct((b, LATENT), jnp.float32),
                   jax.ShapeDtypeStruct((rows, DEC_COLS), jnp.float32)),
        grid=(1,),
        in_specs=[
            spec(xw.shape),                 # (8*B, 256) encoder windows
            spec((b, LATENT)),              # eps
            spec((ENC_WIN, ENC_COLS)),      # encoder band (f32)
            spec((1, ENC_COLS)),            # encoder BN shift
            spec((FEAT_SIZE, ENC_COLS, LATENT)),   # mean head (f32)
            spec((1, LATENT)),
            spec((FEAT_SIZE, ENC_COLS, LATENT)),   # std head (f32)
            spec((1, LATENT)),
            spec((LATENT, FEAT_SIZE * DEC_BLK)),   # decoder fc expanded (bf16)
            spec((1, FEAT_SIZE * DEC_BLK)),        # decoder fc/BN shift
            spec((DEC_BLK, DEC_COLS)),             # convT band (bf16)
            spec((1, DEC_COLS)),                   # convT bias
        ],
        out_specs=(spec((b, LATENT)), spec((b, LATENT)), spec((rows, DEC_COLS))),
        compiler_params=pltpu.CompilerParams(
            dimension_semantics=("arbitrary",)),
    )(xw, eps, prep["wband"], prep["sh64"], prep["wm3"], prep["bm"],
      prep["ws3"], prep["bs"], prep["wdx"], prep["sdx"], prep["wt"], prep["bt"])


# ----------------------- init + hoisted preprocessing -------------------------

def init_params(key):
    """Raw parameters in the exact PyTorch layouts."""
    ks = jax.random.split(key, 13)
    p = {}
    # encoder: Conv2d(4 -> 8, k=4, s=2, p=1, bias=False), OIHW
    p["conv1_w"] = 0.1 * jax.random.normal(ks[0], (8, 4, 4, 4), jnp.float32)
    # BatchNorm2d(8, eps=1e-3)
    p["bn1_gamma"] = 1.0 + 0.1 * jax.random.normal(ks[1], (8,), jnp.float32)
    p["bn1_beta"] = 0.1 * jax.random.normal(ks[2], (8,), jnp.float32)
    p["bn1_mean"] = jnp.zeros((8,), jnp.float32)
    p["bn1_var"] = jnp.ones((8,), jnp.float32)
    # linear2mean / linear2std: Linear(512 -> 8), stored as (in, out)
    p["wm"] = 0.05 * jax.random.normal(ks[3], (512, 8), jnp.float32)
    p["bm"] = 0.05 * jax.random.normal(ks[4], (8,), jnp.float32)
    p["ws"] = 0.05 * jax.random.normal(ks[5], (512, 8), jnp.float32)
    p["bs"] = 0.05 * jax.random.normal(ks[6], (8,), jnp.float32)
    # decoder fc: Linear(8 -> 512) + BatchNorm1d(512)
    p["dfc_w"] = 0.1 * jax.random.normal(ks[7], (8, 512), jnp.float32)
    p["dfc_b"] = 0.05 * jax.random.normal(ks[8], (512,), jnp.float32)
    p["dbn_gamma"] = 1.0 + 0.1 * jax.random.normal(ks[9], (512,), jnp.float32)
    p["dbn_beta"] = 0.1 * jax.random.normal(ks[10], (512,), jnp.float32)
    p["dbn_mean"] = jnp.zeros((512,), jnp.float32)
    p["dbn_var"] = jnp.ones((512,), jnp.float32)
    # decoder: ConvTranspose2d(8 -> 4, k=4, s=2, p=1), PyTorch (in, out, kh, kw)
    p["convT_w"] = 0.1 * jax.random.normal(ks[11], (8, 4, 4, 4), jnp.float32)
    p["convT_b"] = 0.05 * jax.random.normal(ks[12], (4,), jnp.float32)
    return p


def prepare_params(p):
    """One-time weight preprocessing: band matrices, BN/bias folding, permutes."""
    npf = lambda a: np.asarray(a, np.float32)

    # ---- encoder conv -> H-banded (256, 64) matrix, BN scale folded into cols.
    # rows: (ci, kh, w); cols: (co, ow).  h[(oh,b),(co,ow)] = sum over window.
    wc = npf(p["conv1_w"])                                    # (co, ci, kh, kw)
    scale1 = npf(p["bn1_gamma"]) / np.sqrt(npf(p["bn1_var"]) + BN_EPS_CONV)
    shift1 = npf(p["bn1_beta"]) - npf(p["bn1_mean"]) * scale1
    wband = np.zeros((ENC_WIN, ENC_COLS), np.float32)
    for ci in range(NUM_COLORS):
        for kh in range(KSIZE):
            for w in range(IMAGE_SIZE):
                r = ci * (KSIZE * IMAGE_SIZE) + kh * IMAGE_SIZE + w
                for co in range(CONV_DEPTH):
                    for ow in range(FEAT_SIZE):
                        kw = w + PAD - STRIDE * ow
                        if 0 <= kw < KSIZE:
                            wband[r, co * FEAT_SIZE + ow] = wc[co, ci, kh, kw] * scale1[co]
    sh64 = np.repeat(shift1, FEAT_SIZE)[None, :]               # (1, 64) in (co, ow)

    # ---- latent heads: rows permuted from torch (co, oh, ow) to (oh, (co, ow)).
    wm3 = npf(p["wm"]).reshape(CONV_DEPTH, FEAT_SIZE, FEAT_SIZE, LATENT) \
                      .transpose(1, 0, 2, 3).reshape(FEAT_SIZE, ENC_COLS, LATENT)
    ws3 = npf(p["ws"]).reshape(CONV_DEPTH, FEAT_SIZE, FEAT_SIZE, LATENT) \
                      .transpose(1, 0, 2, 3).reshape(FEAT_SIZE, ENC_COLS, LATENT)
    bm = npf(p["bm"])[None, :]
    bs = npf(p["bs"])[None, :]

    # ---- decoder fc: fold BN, permute cols to (jh, ci, jw) windows, replicate
    # into 8 row-pair blocks [d[a-1] | d[a] | d[a+1] | 0-pad] of 256 cols each.
    dscale = npf(p["dbn_gamma"]) / np.sqrt(npf(p["dbn_var"]) + BN_EPS_FC)
    dshift = npf(p["dbn_beta"]) + (npf(p["dfc_b"]) - npf(p["dbn_mean"])) * dscale
    wfc4 = (npf(p["dfc_w"]) * dscale[None, :]).reshape(
        LATENT, CONV_DEPTH, FEAT_SIZE, FEAT_SIZE)              # (l, ci, jh, jw)
    dshift4 = dshift.reshape(CONV_DEPTH, FEAT_SIZE, FEAT_SIZE)
    wdx = np.zeros((LATENT, FEAT_SIZE * DEC_BLK), np.float32)
    sdx = np.zeros((1, FEAT_SIZE * DEC_BLK), np.float32)
    for a in range(FEAT_SIZE):
        for s in range(3):
            jh = a - 1 + s
            if not (0 <= jh < FEAT_SIZE):
                continue                                       # boundary -> zeros
            for ci in range(CONV_DEPTH):
                for jw in range(FEAT_SIZE):
                    c = a * DEC_BLK + s * (CONV_DEPTH * FEAT_SIZE) + ci * FEAT_SIZE + jw
                    wdx[:, c] = wfc4[:, ci, jh, jw]
                    sdx[0, c] = dshift4[ci, jh, jw]

    # ---- decoder convT -> row-pair band (256, 128).  rows: (slot, ci, jw) + pad;
    # cols: (co, rh, W).  out[co, 2a+rh, W] = dwin_block_a @ wtb.
    kt = npf(p["convT_w"])                                     # (ci, co, kh, kw)
    wtb = np.zeros((DEC_BLK, DEC_COLS), np.float32)
    for s in range(3):
        for ci in range(CONV_DEPTH):
            for jw in range(FEAT_SIZE):
                r = s * (CONV_DEPTH * FEAT_SIZE) + ci * FEAT_SIZE + jw
                for rh in range(2):
                    kh = rh + (KSIZE - 1) - STRIDE * s
                    if not (0 <= kh < KSIZE):
                        continue
                    for co in range(NUM_COLORS):
                        for W in range(IMAGE_SIZE):
                            kw = W + PAD - STRIDE * jw
                            if 0 <= kw < KSIZE:
                                wtb[r, co * (2 * IMAGE_SIZE) + rh * IMAGE_SIZE + W] = \
                                    kt[ci, co, kh, kw]
    bt = np.repeat(npf(p["convT_b"]), 2 * IMAGE_SIZE)[None, :]  # (1, 128)

    bf = lambda a: jnp.asarray(a, jnp.bfloat16)
    f32 = lambda a: jnp.asarray(a, jnp.float32)
    return {"wband": f32(wband), "sh64": f32(sh64),
            "wm3": f32(wm3), "bm": f32(bm), "ws3": f32(ws3), "bs": f32(bs),
            "wdx": bf(wdx), "sdx": f32(sdx),
            "wt": bf(wtb), "bt": f32(bt)}


# ------------------------------- forward --------------------------------------

def net_forward(x_nchw, eps_latent, prep):
    b = x_nchw.shape[0]
    # H-direction im2col of the input (~16 KiB): 8 overlapping 4-row windows,
    # stride 2, zero-padded by 1 row.  Row order is (oh, b); per-row layout
    # (ci, kh, w) matches the band matrix rows.
    xp = jnp.pad(x_nchw, ((0, 0), (0, 0), (1, 1), (0, 0)))       # (B, 4, 18, 16)
    xw = jnp.concatenate(
        [xp[:, :, 2 * oh:2 * oh + 4, :].reshape(b, ENC_WIN)
         for oh in range(FEAT_SIZE)], axis=0)                     # (8*B, 256)

    mean, std, out_k = fused_forward(xw, eps_latent, prep)

    # kernel output rows are (a, b), cols (co, rh, W); reorder to NCHW (~8 KiB).
    recon = (out_k.reshape(FEAT_SIZE, b, NUM_COLORS, 2, IMAGE_SIZE)
             .transpose(1, 2, 0, 3, 4)
             .reshape(b, NUM_COLORS, IMAGE_SIZE, IMAGE_SIZE))
    return recon, mean, std


# --------------------------- pure-JAX reference -------------------------------

def reference_forward(x, eps, p):
    hi = lax.Precision.HIGHEST
    h = lax.conv_general_dilated(
        x, p["conv1_w"], window_strides=(2, 2), padding=((1, 1), (1, 1)),
        dimension_numbers=("NCHW", "OIHW", "NCHW"), precision=hi)
    sc = p["bn1_gamma"] / jnp.sqrt(p["bn1_var"] + BN_EPS_CONV)
    h = (h - p["bn1_mean"][None, :, None, None]) * sc[None, :, None, None] \
        + p["bn1_beta"][None, :, None, None]
    h = jnp.maximum(h, 0.0).reshape(x.shape[0], -1)
    mean = jnp.dot(h, p["wm"], precision=hi) + p["bm"]
    std = jnp.dot(h, p["ws"], precision=hi) + p["bs"]
    z = eps * std + mean
    d = jnp.dot(z, p["dfc_w"], precision=hi) + p["dfc_b"]
    dsc = p["dbn_gamma"] / jnp.sqrt(p["dbn_var"] + BN_EPS_FC)
    d = (d - p["dbn_mean"]) * dsc + p["dbn_beta"]
    d = jnp.maximum(d, 0.0).reshape(x.shape[0], CONV_DEPTH, FEAT_SIZE, FEAT_SIZE)
    # ConvTranspose2d(k=4,s=2,p=1) == dilated conv with flipped, in/out-swapped kernel
    wt = jnp.transpose(p["convT_w"], (1, 0, 2, 3))[:, :, ::-1, ::-1]
    o = lax.conv_general_dilated(
        d, wt, window_strides=(1, 1), padding=((2, 2), (2, 2)),
        lhs_dilation=(2, 2), dimension_numbers=("NCHW", "OIHW", "NCHW"),
        precision=hi)
    o = o + p["convT_b"][None, :, None, None]
    return jax.nn.sigmoid(o), mean, std


if __name__ == "__main__":
    key = jax.random.PRNGKey(0)
    k_param, k_x, k_eps = jax.random.split(key, 3)

    raw_params = init_params(k_param)
    prep_params = prepare_params(raw_params)        # runs once, off the hot path

    x = jax.random.normal(k_x, (BATCH, NUM_COLORS, IMAGE_SIZE, IMAGE_SIZE),
                          jnp.float32)              # NCHW, like PyTorch
    eps_latent = jax.random.normal(k_eps, (BATCH, LATENT), jnp.float32)

    fwd = jax.jit(net_forward)
    recon, mean, std = fwd(x, eps_latent, prep_params)
    jax.block_until_ready((recon, mean, std))

    assert recon.shape == (BATCH, NUM_COLORS, IMAGE_SIZE, IMAGE_SIZE)
    assert mean.shape == (BATCH, LATENT) and std.shape == (BATCH, LATENT)
    assert bool(jnp.all(jnp.isfinite(recon)))
    assert bool(jnp.all(jnp.isfinite(mean))) and bool(jnp.all(jnp.isfinite(std)))

    # tolerance check vs. pure-JAX reference (decoder path is bf16 -> loose tol)
    ref_recon, ref_mean, ref_std = reference_forward(x, eps_latent, raw_params)
    np.testing.assert_allclose(np.asarray(mean), np.asarray(ref_mean),
                               rtol=2e-2, atol=2e-2)
    np.testing.assert_allclose(np.asarray(std), np.asarray(ref_std),
                               rtol=2e-2, atol=2e-2)
    np.testing.assert_allclose(np.asarray(recon), np.asarray(ref_recon),
                               rtol=3e-2, atol=3e-2)

    print("KERNEL_OK")
</pallas_src>

<mosaic_0001>
module attributes {stable_mosaic.version = 11 : i64} {
  func.func @_fused_vcae_kernel(%arg0: i32, %arg1: memref<16x256xf32, #tpu.memory_space<vmem>>, %arg2: memref<2x8xf32, #tpu.memory_space<vmem>>, %arg3: memref<256x64xf32, #tpu.memory_space<vmem>>, %arg4: memref<1x64xf32, #tpu.memory_space<vmem>>, %arg5: memref<8x64x8xf32, #tpu.memory_space<vmem>>, %arg6: memref<1x8xf32, #tpu.memory_space<vmem>>, %arg7: memref<8x64x8xf32, #tpu.memory_space<vmem>>, %arg8: memref<1x8xf32, #tpu.memory_space<vmem>>, %arg9: memref<8x2048xbf16, #tpu.memory_space<vmem>>, %arg10: memref<1x2048xf32, #tpu.memory_space<vmem>>, %arg11: memref<256x128xbf16, #tpu.memory_space<vmem>>, %arg12: memref<1x128xf32, #tpu.memory_space<vmem>>, %arg13: memref<2x8xf32, #tpu.memory_space<vmem>>, %arg14: memref<2x8xf32, #tpu.memory_space<vmem>>, %arg15: memref<16x128xf32, #tpu.memory_space<vmem>>) attributes {dimension_semantics = [#tpu.dimension_semantics<arbitrary>], iteration_bounds = array<i64: 1>, scalar_prefetch = 0 : i64, scratch_operands = 0 : i64, tpu.core_type = #tpu.core_type<tc>, window_params = [{pipeline_mode = #tpu.pipeline_mode<synchronous>, transform_indices = @transform_0, window_bounds = array<i64: 16, 256>}, {pipeline_mode = #tpu.pipeline_mode<synchronous>, transform_indices = @transform_1, window_bounds = array<i64: 2, 8>}, {pipeline_mode = #tpu.pipeline_mode<synchronous>, transform_indices = @transform_2, window_bounds = array<i64: 256, 64>}, {pipeline_mode = #tpu.pipeline_mode<synchronous>, transform_indices = @transform_3, window_bounds = array<i64: 1, 64>}, {pipeline_mode = #tpu.pipeline_mode<synchronous>, transform_indices = @transform_4, window_bounds = array<i64: 8, 64, 8>}, {pipeline_mode = #tpu.pipeline_mode<synchronous>, transform_indices = @transform_5, window_bounds = array<i64: 1, 8>}, {pipeline_mode = #tpu.pipeline_mode<synchronous>, transform_indices = @transform_6, window_bounds = array<i64: 8, 64, 8>}, {pipeline_mode = #tpu.pipeline_mode<synchronous>, transform_indices = @transform_7, window_bounds = array<i64: 1, 8>}, {pipeline_mode = #tpu.pipeline_mode<synchronous>, transform_indices = @transform_8, window_bounds = array<i64: 8, 2048>}, {pipeline_mode = #tpu.pipeline_mode<synchronous>, transform_indices = @transform_9, window_bounds = array<i64: 1, 2048>}, {pipeline_mode = #tpu.pipeline_mode<synchronous>, transform_indices = @transform_10, window_bounds = array<i64: 256, 128>}, {pipeline_mode = #tpu.pipeline_mode<synchronous>, transform_indices = @transform_11, window_bounds = array<i64: 1, 128>}, {pipeline_mode = #tpu.pipeline_mode<synchronous>, transform_indices = @transform_12, window_bounds = array<i64: 2, 8>}, {pipeline_mode = #tpu.pipeline_mode<synchronous>, transform_indices = @transform_13, window_bounds = array<i64: 2, 8>}, {pipeline_mode = #tpu.pipeline_mode<synchronous>, transform_indices = @transform_14, window_bounds = array<i64: 16, 128>}]} {
    %c0 = arith.constant 0 : index
    %c0_0 = arith.constant 0 : index
    %0 = vector.load %arg1[%c0, %c0_0] : memref<16x256xf32, #tpu.memory_space<vmem>>, vector<16x256xf32>
    %c0_1 = arith.constant 0 : index
    %c0_2 = arith.constant 0 : index
    %1 = vector.load %arg3[%c0_1, %c0_2] : memref<256x64xf32, #tpu.memory_space<vmem>>, vector<256x64xf32>
    %cst = arith.constant dense<0.000000e+00> : vector<16x64xf32>
    %2 = tpu.matmul %0, %1, %cst {dimension_numbers = #tpu.dot_dimension_numbers<[1], [0], [0], [1], [0, 0, 1, 1], [], []>} : vector<16x256xf32>, vector<256x64xf32>, vector<16x64xf32> -> vector<16x64xf32>
    %c0_3 = arith.constant 0 : index
    %c0_4 = arith.constant 0 : index
    %3 = vector.load %arg4[%c0_3, %c0_4] : memref<1x64xf32, #tpu.memory_space<vmem>>, vector<1x64xf32>
    %4 = vector.broadcast %3 : vector<1x64xf32> to vector<16x64xf32>
    %5 = arith.addf %2, %4 : vector<16x64xf32>
    %cst_5 = arith.constant 0.000000e+00 : f32
    %6 = vector.broadcast %cst_5 : f32 to vector<16x64xf32>
    %7 = arith.maximumf %5, %6 : vector<16x64xf32>
    %c0_6 = arith.constant 0 : index
    %c0_7 = arith.constant 0 : index
    %8 = vector.load %arg6[%c0_6, %c0_7] : memref<1x8xf32, #tpu.memory_space<vmem>>, vector<1x8xf32>
    %c0_8 = arith.constant 0 : index
    %c0_9 = arith.constant 0 : index
    %9 = vector.load %arg8[%c0_8, %c0_9] : memref<1x8xf32, #tpu.memory_space<vmem>>, vector<1x8xf32>
    %10 = vector.extract_strided_slice %7 {offsets = [0, 0], sizes = [2, 64], strides = [1, 1]} : vector<16x64xf32> to vector<2x64xf32>
    %c0_10 = arith.constant 0 : index
    %c0_11 = arith.constant 0 : index
    %c0_12 = arith.constant 0 : index
    %11 = vector.load %arg5[%c0_10, %c0_11, %c0_12] : memref<8x64x8xf32, #tpu.memory_space<vmem>>, vector<1x64x8xf32>
    %12 = vector.shape_cast %11 : vector<1x64x8xf32> to vector<64x8xf32>
    %cst_13 = arith.constant dense<0.000000e+00> : vector<2x8xf32>
    %13 = tpu.matmul %10, %12, %cst_13 {dimension_numbers = #tpu.dot_dimension_numbers<[1], [0], [0], [1], [0, 0, 1, 1], [], []>} : vector<2x64xf32>, vector<64x8xf32>, vector<2x8xf32> -> vector<2x8xf32>
    %14 = vector.broadcast %8 : vector<1x8xf32> to vector<2x8xf32>
    %15 = arith.addf %14, %13 : vector<2x8xf32>
    %c0_14 = arith.constant 0 : index
    %c0_15 = arith.constant 0 : index
    %c0_16 = arith.constant 0 : index
    %16 = vector.load %arg7[%c0_14, %c0_15, %c0_16] : memref<8x64x8xf32, #tpu.memory_space<vmem>>, vector<1x64x8xf32>
    %17 = vector.shape_cast %16 : vector<1x64x8xf32> to vector<64x8xf32>
    %cst_17 = arith.constant dense<0.000000e+00> : vector<2x8xf32>
    %18 = tpu.matmul %10, %17, %cst_17 {dimension_numbers = #tpu.dot_dimension_numbers<[1], [0], [0], [1], [0, 0, 1, 1], [], []>} : vector<2x64xf32>, vector<64x8xf32>, vector<2x8xf32> -> vector<2x8xf32>
    %19 = vector.broadcast %9 : vector<1x8xf32> to vector<2x8xf32>
    %20 = arith.addf %19, %18 : vector<2x8xf32>
    %21 = vector.extract_strided_slice %7 {offsets = [2, 0], sizes = [2, 64], strides = [1, 1]} : vector<16x64xf32> to vector<2x64xf32>
    %c1 = arith.constant 1 : index
    %c0_18 = arith.constant 0 : index
    %c0_19 = arith.constant 0 : index
    %22 = vector.load %arg5[%c1, %c0_18, %c0_19] : memref<8x64x8xf32, #tpu.memory_space<vmem>>, vector<1x64x8xf32>
    %23 = vector.shape_cast %22 : vector<1x64x8xf32> to vector<64x8xf32>
    %cst_20 = arith.constant dense<0.000000e+00> : vector<2x8xf32>
    %24 = tpu.matmul %21, %23, %cst_20 {dimension_numbers = #tpu.dot_dimension_numbers<[1], [0], [0], [1], [0, 0, 1, 1], [], []>} : vector<2x64xf32>, vector<64x8xf32>, vector<2x8xf32> -> vector<2x8xf32>
    %25 = arith.addf %15, %24 : vector<2x8xf32>
    %c1_21 = arith.constant 1 : index
    %c0_22 = arith.constant 0 : index
    %c0_23 = arith.constant 0 : index
    %26 = vector.load %arg7[%c1_21, %c0_22, %c0_23] : memref<8x64x8xf32, #tpu.memory_space<vmem>>, vector<1x64x8xf32>
    %27 = vector.shape_cast %26 : vector<1x64x8xf32> to vector<64x8xf32>
    %cst_24 = arith.constant dense<0.000000e+00> : vector<2x8xf32>
    %28 = tpu.matmul %21, %27, %cst_24 {dimension_numbers = #tpu.dot_dimension_numbers<[1], [0], [0], [1], [0, 0, 1, 1], [], []>} : vector<2x64xf32>, vector<64x8xf32>, vector<2x8xf32> -> vector<2x8xf32>
    %29 = arith.addf %20, %28 : vector<2x8xf32>
    %30 = vector.extract_strided_slice %7 {offsets = [4, 0], sizes = [2, 64], strides = [1, 1]} : vector<16x64xf32> to vector<2x64xf32>
    %c2 = arith.constant 2 : index
    %c0_25 = arith.constant 0 : index
    %c0_26 = arith.constant 0 : index
    %31 = vector.load %arg5[%c2, %c0_25, %c0_26] : memref<8x64x8xf32, #tpu.memory_space<vmem>>, vector<1x64x8xf32>
    %32 = vector.shape_cast %31 : vector<1x64x8xf32> to vector<64x8xf32>
    %cst_27 = arith.constant dense<0.000000e+00> : vector<2x8xf32>
    %33 = tpu.matmul %30, %32, %cst_27 {dimension_numbers = #tpu.dot_dimension_numbers<[1], [0], [0], [1], [0, 0, 1, 1], [], []>} : vector<2x64xf32>, vector<64x8xf32>, vector<2x8xf32> -> vector<2x8xf32>
    %34 = arith.addf %25, %33 : vector<2x8xf32>
    %c2_28 = arith.constant 2 : index
    %c0_29 = arith.constant 0 : index
    %c0_30 = arith.constant 0 : index
    %35 = vector.load %arg7[%c2_28, %c0_29, %c0_30] : memref<8x64x8xf32, #tpu.memory_space<vmem>>, vector<1x64x8xf32>
    %36 = vector.shape_cast %35 : vector<1x64x8xf32> to vector<64x8xf32>
    %cst_31 = arith.constant dense<0.000000e+00> : vector<2x8xf32>
    %37 = tpu.matmul %30, %36, %cst_31 {dimension_numbers = #tpu.dot_dimension_numbers<[1], [0], [0], [1], [0, 0, 1, 1], [], []>} : vector<2x64xf32>, vector<64x8xf32>, vector<2x8xf32> -> vector<2x8xf32>
    %38 = arith.addf %29, %37 : vector<2x8xf32>
    %39 = vector.extract_strided_slice %7 {offsets = [6, 0], sizes = [2, 64], strides = [1, 1]} : vector<16x64xf32> to vector<2x64xf32>
    %c3 = arith.constant 3 : index
    %c0_32 = arith.constant 0 : index
    %c0_33 = arith.constant 0 : index
    %40 = vector.load %arg5[%c3, %c0_32, %c0_33] : memref<8x64x8xf32, #tpu.memory_space<vmem>>, vector<1x64x8xf32>
    %41 = vector.shape_cast %40 : vector<1x64x8xf32> to vector<64x8xf32>
    %cst_34 = arith.constant dense<0.000000e+00> : vector<2x8xf32>
    %42 = tpu.matmul %39, %41, %cst_34 {dimension_numbers = #tpu.dot_dimension_numbers<[1], [0], [0], [1], [0, 0, 1, 1], [], []>} : vector<2x64xf32>, vector<64x8xf32>, vector<2x8xf32> -> vector<2x8xf32>
    %43 = arith.addf %34, %42 : vector<2x8xf32>
    %c3_35 = arith.constant 3 : index
    %c0_36 = arith.constant 0 : index
    %c0_37 = arith.constant 0 : index
    %44 = vector.load %arg7[%c3_35, %c0_36, %c0_37] : memref<8x64x8xf32, #tpu.memory_space<vmem>>, vector<1x64x8xf32>
    %45 = vector.shape_cast %44 : vector<1x64x8xf32> to vector<64x8xf32>
    %cst_38 = arith.constant dense<0.000000e+00> : vector<2x8xf32>
    %46 = tpu.matmul %39, %45, %cst_38 {dimension_numbers = #tpu.dot_dimension_numbers<[1], [0], [0], [1], [0, 0, 1, 1], [], []>} : vector<2x64xf32>, vector<64x8xf32>, vector<2x8xf32> -> vector<2x8xf32>
    %47 = arith.addf %38, %46 : vector<2x8xf32>
    %48 = vector.extract_strided_slice %7 {offsets = [8, 0], sizes = [2, 64], strides = [1, 1]} : vector<16x64xf32> to vector<2x64xf32>
    %c4 = arith.constant 4 : index
    %c0_39 = arith.constant 0 : index
    %c0_40 = arith.constant 0 : index
    %49 = vector.load %arg5[%c4, %c0_39, %c0_40] : memref<8x64x8xf32, #tpu.memory_space<vmem>>, vector<1x64x8xf32>
    %50 = vector.shape_cast %49 : vector<1x64x8xf32> to vector<64x8xf32>
    %cst_41 = arith.constant dense<0.000000e+00> : vector<2x8xf32>
    %51 = tpu.matmul %48, %50, %cst_41 {dimension_numbers = #tpu.dot_dimension_numbers<[1], [0], [0], [1], [0, 0, 1, 1], [], []>} : vector<2x64xf32>, vector<64x8xf32>, vector<2x8xf32> -> vector<2x8xf32>
    %52 = arith.addf %43, %51 : vector<2x8xf32>
    %c4_42 = arith.constant 4 : index
    %c0_43 = arith.constant 0 : index
    %c0_44 = arith.constant 0 : index
    %53 = vector.load %arg7[%c4_42, %c0_43, %c0_44] : memref<8x64x8xf32, #tpu.memory_space<vmem>>, vector<1x64x8xf32>
    %54 = vector.shape_cast %53 : vector<1x64x8xf32> to vector<64x8xf32>
    %cst_45 = arith.constant dense<0.000000e+00> : vector<2x8xf32>
    %55 = tpu.matmul %48, %54, %cst_45 {dimension_numbers = #tpu.dot_dimension_numbers<[1], [0], [0], [1], [0, 0, 1, 1], [], []>} : vector<2x64xf32>, vector<64x8xf32>, vector<2x8xf32> -> vector<2x8xf32>
    %56 = arith.addf %47, %55 : vector<2x8xf32>
    %57 = vector.extract_strided_slice %7 {offsets = [10, 0], sizes = [2, 64], strides = [1, 1]} : vector<16x64xf32> to vector<2x64xf32>
    %c5 = arith.constant 5 : index
    %c0_46 = arith.constant 0 : index
    %c0_47 = arith.constant 0 : index
    %58 = vector.load %arg5[%c5, %c0_46, %c0_47] : memref<8x64x8xf32, #tpu.memory_space<vmem>>, vector<1x64x8xf32>
    %59 = vector.shape_cast %58 : vector<1x64x8xf32> to vector<64x8xf32>
    %cst_48 = arith.constant dense<0.000000e+00> : vector<2x8xf32>
    %60 = tpu.matmul %57, %59, %cst_48 {dimension_numbers = #tpu.dot_dimension_numbers<[1], [0], [0], [1], [0, 0, 1, 1], [], []>} : vector<2x64xf32>, vector<64x8xf32>, vector<2x8xf32> -> vector<2x8xf32>
    %61 = arith.addf %52, %60 : vector<2x8xf32>
    %c5_49 = arith.constant 5 : index
    %c0_50 = arith.constant 0 : index
    %c0_51 = arith.constant 0 : index
    %62 = vector.load %arg7[%c5_49, %c0_50, %c0_51] : memref<8x64x8xf32, #tpu.memory_space<vmem>>, vector<1x64x8xf32>
    %63 = vector.shape_cast %62 : vector<1x64x8xf32> to vector<64x8xf32>
    %cst_52 = arith.constant dense<0.000000e+00> : vector<2x8xf32>
    %64 = tpu.matmul %57, %63, %cst_52 {dimension_numbers = #tpu.dot_dimension_numbers<[1], [0], [0], [1], [0, 0, 1, 1], [], []>} : vector<2x64xf32>, vector<64x8xf32>, vector<2x8xf32> -> vector<2x8xf32>
    %65 = arith.addf %56, %64 : vector<2x8xf32>
    %66 = vector.extract_strided_slice %7 {offsets = [12, 0], sizes = [2, 64], strides = [1, 1]} : vector<16x64xf32> to vector<2x64xf32>
    %c6 = arith.constant 6 : index
    %c0_53 = arith.constant 0 : index
    %c0_54 = arith.constant 0 : index
    %67 = vector.load %arg5[%c6, %c0_53, %c0_54] : memref<8x64x8xf32, #tpu.memory_space<vmem>>, vector<1x64x8xf32>
    %68 = vector.shape_cast %67 : vector<1x64x8xf32> to vector<64x8xf32>
    %cst_55 = arith.constant dense<0.000000e+00> : vector<2x8xf32>
    %69 = tpu.matmul %66, %68, %cst_55 {dimension_numbers = #tpu.dot_dimension_numbers<[1], [0], [0], [1], [0, 0, 1, 1], [], []>} : vector<2x64xf32>, vector<64x8xf32>, vector<2x8xf32> -> vector<2x8xf32>
    %70 = arith.addf %61, %69 : vector<2x8xf32>
    %c6_56 = arith.constant 6 : index
    %c0_57 = arith.constant 0 : index
    %c0_58 = arith.constant 0 : index
    %71 = vector.load %arg7[%c6_56, %c0_57, %c0_58] : memref<8x64x8xf32, #tpu.memory_space<vmem>>, vector<1x64x8xf32>
    %72 = vector.shape_cast %71 : vector<1x64x8xf32> to vector<64x8xf32>
    %cst_59 = arith.constant dense<0.000000e+00> : vector<2x8xf32>
    %73 = tpu.matmul %66, %72, %cst_59 {dimension_numbers = #tpu.dot_dimension_numbers<[1], [0], [0], [1], [0, 0, 1, 1], [], []>} : vector<2x64xf32>, vector<64x8xf32>, vector<2x8xf32> -> vector<2x8xf32>
    %74 = arith.addf %65, %73 : vector<2x8xf32>
    %75 = vector.extract_strided_slice %7 {offsets = [14, 0], sizes = [2, 64], strides = [1, 1]} : vector<16x64xf32> to vector<2x64xf32>
    %c7 = arith.constant 7 : index
    %c0_60 = arith.constant 0 : index
    %c0_61 = arith.constant 0 : index
    %76 = vector.load %arg5[%c7, %c0_60, %c0_61] : memref<8x64x8xf32, #tpu.memory_space<vmem>>, vector<1x64x8xf32>
    %77 = vector.shape_cast %76 : vector<1x64x8xf32> to vector<64x8xf32>
    %cst_62 = arith.constant dense<0.000000e+00> : vector<2x8xf32>
    %78 = tpu.matmul %75, %77, %cst_62 {dimension_numbers = #tpu.dot_dimension_numbers<[1], [0], [0], [1], [0, 0, 1, 1], [], []>} : vector<2x64xf32>, vector<64x8xf32>, vector<2x8xf32> -> vector<2x8xf32>
    %79 = arith.addf %70, %78 : vector<2x8xf32>
    %c7_63 = arith.constant 7 : index
    %c0_64 = arith.constant 0 : index
    %c0_65 = arith.constant 0 : index
    %80 = vector.load %arg7[%c7_63, %c0_64, %c0_65] : memref<8x64x8xf32, #tpu.memory_space<vmem>>, vector<1x64x8xf32>
    %81 = vector.shape_cast %80 : vector<1x64x8xf32> to vector<64x8xf32>
    %cst_66 = arith.constant dense<0.000000e+00> : vector<2x8xf32>
    %82 = tpu.matmul %75, %81, %cst_66 {dimension_numbers = #tpu.dot_dimension_numbers<[1], [0], [0], [1], [0, 0, 1, 1], [], []>} : vector<2x64xf32>, vector<64x8xf32>, vector<2x8xf32> -> vector<2x8xf32>
    %83 = arith.addf %74, %82 : vector<2x8xf32>
    %c0_67 = arith.constant 0 : index
    %c0_68 = arith.constant 0 : index
    %84 = vector.load %arg13[%c0_67, %c0_68] : memref<2x8xf32, #tpu.memory_space<vmem>>, vector<2x8xf32>
    tpu.vector_store %arg13[%c0_67, %c0_68], %79 {strides = array<i32>} : memref<2x8xf32, #tpu.memory_space<vmem>>, vector<2x8xf32>,
    %c0_69 = arith.constant 0 : index
    %c0_70 = arith.constant 0 : index
    %85 = vector.load %arg14[%c0_69, %c0_70] : memref<2x8xf32, #tpu.memory_space<vmem>>, vector<2x8xf32>
    tpu.vector_store %arg14[%c0_69, %c0_70], %83 {strides = array<i32>} : memref<2x8xf32, #tpu.memory_space<vmem>>, vector<2x8xf32>,
    %c0_71 = arith.constant 0 : index
    %c0_72 = arith.constant 0 : index
    %86 = vector.load %arg2[%c0_71, %c0_72] : memref<2x8xf32, #tpu.memory_space<vmem>>, vector<2x8xf32>
    %87 = arith.mulf %86, %83 : vector<2x8xf32>
    %88 = arith.addf %87, %79 : vector<2x8xf32>
    %89 = arith.truncf %88 : vector<2x8xf32> to vector<2x8xbf16>
    %c0_73 = arith.constant 0 : index
    %c0_74 = arith.constant 0 : index
    %90 = vector.load %arg9[%c0_73, %c0_74] : memref<8x2048xbf16, #tpu.memory_space<vmem>>, vector<8x2048xbf16>
    %cst_75 = arith.constant dense<0.000000e+00> : vector<2x2048xf32>
    %91 = tpu.matmul %89, %90, %cst_75 {dimension_numbers = #tpu.dot_dimension_numbers<[1], [0], [0], [1], [0, 0, 1, 1], [], []>} : vector<2x8xbf16>, vector<8x2048xbf16>, vector<2x2048xf32> -> vector<2x2048xf32>
    %c0_76 = arith.constant 0 : index
    %c0_77 = arith.constant 0 : index
    %92 = vector.load %arg10[%c0_76, %c0_77] : memref<1x2048xf32, #tpu.memory_space<vmem>>, vector<1x2048xf32>
    %93 = vector.broadcast %92 : vector<1x2048xf32> to vector<2x2048xf32>
    %94 = arith.addf %91, %93 : vector<2x2048xf32>
    %cst_78 = arith.constant 0.000000e+00 : f32
    %95 = vector.broadcast %cst_78 : f32 to vector<2x2048xf32>
    %96 = arith.maximumf %94, %95 : vector<2x2048xf32>
    %97 = vector.extract_strided_slice %96 {offsets = [0, 0], sizes = [2, 256], strides = [1, 1]} : vector<2x2048xf32> to vector<2x256xf32>
    %98 = arith.truncf %97 : vector<2x256xf32> to vector<2x256xbf16>
    %c0_79 = arith.constant 0 : index
    %c0_80 = arith.constant 0 : index
    %99 = vector.load %arg11[%c0_79, %c0_80] : memref<256x128xbf16, #tpu.memory_space<vmem>>, vector<256x128xbf16>
    %cst_81 = arith.constant dense<0.000000e+00> : vector<2x128xf32>
    %100 = tpu.matmul %98, %99, %cst_81 {dimension_numbers = #tpu.dot_dimension_numbers<[1], [0], [0], [1], [0, 0, 1, 1], [], []>} : vector<2x256xbf16>, vector<256x128xbf16>, vector<2x128xf32> -> vector<2x128xf32>
    %c0_82 = arith.constant 0 : index
    %c0_83 = arith.constant 0 : index
    %101 = vector.load %arg12[%c0_82, %c0_83] : memref<1x128xf32, #tpu.memory_space<vmem>>, vector<1x128xf32>
    %102 = vector.broadcast %101 : vector<1x128xf32> to vector<2x128xf32>
    %103 = arith.addf %100, %102 : vector<2x128xf32>
    %104 = arith.negf %103 : vector<2x128xf32>
    %105 = math.exp %104 : vector<2x128xf32>
    %cst_84 = arith.constant 1.000000e+00 : f32
    %106 = vector.broadcast %cst_84 : f32 to vector<2x128xf32>
    %107 = arith.addf %106, %105 : vector<2x128xf32>
    %108 = arith.divf %106, %107 : vector<2x128xf32>
    %c0_85 = arith.constant 0 : index
    %c0_86 = arith.constant 0 : index
    %109 = vector.load %arg15[%c0_85, %c0_86] : memref<16x128xf32, #tpu.memory_space<vmem>>, vector<2x128xf32>
    tpu.vector_store %arg15[%c0_85, %c0_86], %108 {strides = array<i32>} : memref<16x128xf32, #tpu.memory_space<vmem>>, vector<2x128xf32>,
    %110 = vector.extract_strided_slice %96 {offsets = [0, 256], sizes = [2, 256], strides = [1, 1]} : vector<2x2048xf32> to vector<2x256xf32>
    %111 = arith.truncf %110 : vector<2x256xf32> to vector<2x256xbf16>
    %c0_87 = arith.constant 0 : index
    %c0_88 = arith.constant 0 : index
    %112 = vector.load %arg11[%c0_87, %c0_88] : memref<256x128xbf16, #tpu.memory_space<vmem>>, vector<256x128xbf16>
    %cst_89 = arith.constant dense<0.000000e+00> : vector<2x128xf32>
    %113 = tpu.matmul %111, %112, %cst_89 {dimension_numbers = #tpu.dot_dimension_numbers<[1], [0], [0], [1], [0, 0, 1, 1], [], []>} : vector<2x256xbf16>, vector<256x128xbf16>, vector<2x128xf32> -> vector<2x128xf32>
    %c0_90 = arith.constant 0 : index
    %c0_91 = arith.constant 0 : index
    %114 = vector.load %arg12[%c0_90, %c0_91] : memref<1x128xf32, #tpu.memory_space<vmem>>, vector<1x128xf32>
    %115 = vector.broadcast %114 : vector<1x128xf32> to vector<2x128xf32>
    %116 = arith.addf %113, %115 : vector<2x128xf32>
    %117 = arith.negf %116 : vector<2x128xf32>
    %118 = math.exp %117 : vector<2x128xf32>
    %cst_92 = arith.constant 1.000000e+00 : f32
    %119 = vector.broadcast %cst_92 : f32 to vector<2x128xf32>
    %120 = arith.addf %119, %118 : vector<2x128xf32>
    %121 = arith.divf %119, %120 : vector<2x128xf32>
    %c2_93 = arith.constant 2 : index
    %c0_94 = arith.constant 0 : index
    %122 = vector.load %arg15[%c2_93, %c0_94] : memref<16x128xf32, #tpu.memory_space<vmem>>, vector<2x128xf32>
    tpu.vector_store %arg15[%c2_93, %c0_94], %121 {strides = array<i32>} : memref<16x128xf32, #tpu.memory_space<vmem>>, vector<2x128xf32>,
    %123 = vector.extract_strided_slice %96 {offsets = [0, 512], sizes = [2, 256], strides = [1, 1]} : vector<2x2048xf32> to vector<2x256xf32>
    %124 = arith.truncf %123 : vector<2x256xf32> to vector<2x256xbf16>
    %c0_95 = arith.constant 0 : index
    %c0_96 = arith.constant 0 : index
    %125 = vector.load %arg11[%c0_95, %c0_96] : memref<256x128xbf16, #tpu.memory_space<vmem>>, vector<256x128xbf16>
    %cst_97 = arith.constant dense<0.000000e+00> : vector<2x128xf32>
    %126 = tpu.matmul %124, %125, %cst_97 {dimension_numbers = #tpu.dot_dimension_numbers<[1], [0], [0], [1], [0, 0, 1, 1], [], []>} : vector<2x256xbf16>, vector<256x128xbf16>, vector<2x128xf32> -> vector<2x128xf32>
    %c0_98 = arith.constant 0 : index
    %c0_99 = arith.constant 0 : index
    %127 = vector.load %arg12[%c0_98, %c0_99] : memref<1x128xf32, #tpu.memory_space<vmem>>, vector<1x128xf32>
    %128 = vector.broadcast %127 : vector<1x128xf32> to vector<2x128xf32>
    %129 = arith.addf %126, %128 : vector<2x128xf32>
    %130 = arith.negf %129 : vector<2x128xf32>
    %131 = math.exp %130 : vector<2x128xf32>
    %cst_100 = arith.constant 1.000000e+00 : f32
    %132 = vector.broadcast %cst_100 : f32 to vector<2x128xf32>
    %133 = arith.addf %132, %131 : vector<2x128xf32>
    %134 = arith.divf %132, %133 : vector<2x128xf32>
    %c4_101 = arith.constant 4 : index
    %c0_102 = arith.constant 0 : index
    %135 = vector.load %arg15[%c4_101, %c0_102] : memref<16x128xf32, #tpu.memory_space<vmem>>, vector<2x128xf32>
    tpu.vector_store %arg15[%c4_101, %c0_102], %134 {strides = array<i32>} : memref<16x128xf32, #tpu.memory_space<vmem>>, vector<2x128xf32>,
    %136 = vector.extract_strided_slice %96 {offsets = [0, 768], sizes = [2, 256], strides = [1, 1]} : vector<2x2048xf32> to vector<2x256xf32>
    %137 = arith.truncf %136 : vector<2x256xf32> to vector<2x256xbf16>
    %c0_103 = arith.constant 0 : index
    %c0_104 = arith.constant 0 : index
    %138 = vector.load %arg11[%c0_103, %c0_104] : memref<256x128xbf16, #tpu.memory_space<vmem>>, vector<256x128xbf16>
    %cst_105 = arith.constant dense<0.000000e+00> : vector<2x128xf32>
    %139 = tpu.matmul %137, %138, %cst_105 {dimension_numbers = #tpu.dot_dimension_numbers<[1], [0], [0], [1], [0, 0, 1, 1], [], []>} : vector<2x256xbf16>, vector<256x128xbf16>, vector<2x128xf32> -> vector<2x128xf32>
    %c0_106 = arith.constant 0 : index
    %c0_107 = arith.constant 0 : index
    %140 = vector.load %arg12[%c0_106, %c0_107] : memref<1x128xf32, #tpu.memory_space<vmem>>, vector<1x128xf32>
    %141 = vector.broadcast %140 : vector<1x128xf32> to vector<2x128xf32>
    %142 = arith.addf %139, %141 : vector<2x128xf32>
    %143 = arith.negf %142 : vector<2x128xf32>
    %144 = math.exp %143 : vector<2x128xf32>
    %cst_108 = arith.constant 1.000000e+00 : f32
    %145 = vector.broadcast %cst_108 : f32 to vector<2x128xf32>
    %146 = arith.addf %145, %144 : vector<2x128xf32>
    %147 = arith.divf %145, %146 : vector<2x128xf32>
    %c6_109 = arith.constant 6 : index
    %c0_110 = arith.constant 0 : index
    %148 = vector.load %arg15[%c6_109, %c0_110] : memref<16x128xf32, #tpu.memory_space<vmem>>, vector<2x128xf32>
    tpu.vector_store %arg15[%c6_109, %c0_110], %147 {strides = array<i32>} : memref<16x128xf32, #tpu.memory_space<vmem>>, vector<2x128xf32>,
    %149 = vector.extract_strided_slice %96 {offsets = [0, 1024], sizes = [2, 256], strides = [1, 1]} : vector<2x2048xf32> to vector<2x256xf32>
    %150 = arith.truncf %149 : vector<2x256xf32> to vector<2x256xbf16>
    %c0_111 = arith.constant 0 : index
    %c0_112 = arith.constant 0 : index
    %151 = vector.load %arg11[%c0_111, %c0_112] : memref<256x128xbf16, #tpu.memory_space<vmem>>, vector<256x128xbf16>
    %cst_113 = arith.constant dense<0.000000e+00> : vector<2x128xf32>
    %152 = tpu.matmul %150, %151, %cst_113 {dimension_numbers = #tpu.dot_dimension_numbers<[1], [0], [0], [1], [0, 0, 1, 1], [], []>} : vector<2x256xbf16>, vector<256x128xbf16>, vector<2x128xf32> -> vector<2x128xf32>
    %c0_114 = arith.constant 0 : index
    %c0_115 = arith.constant 0 : index
    %153 = vector.load %arg12[%c0_114, %c0_115] : memref<1x128xf32, #tpu.memory_space<vmem>>, vector<1x128xf32>
    %154 = vector.broadcast %153 : vector<1x128xf32> to vector<2x128xf32>
    %155 = arith.addf %152, %154 : vector<2x128xf32>
    %156 = arith.negf %155 : vector<2x128xf32>
    %157 = math.exp %156 : vector<2x128xf32>
    %cst_116 = arith.constant 1.000000e+00 : f32
    %158 = vector.broadcast %cst_116 : f32 to vector<2x128xf32>
    %159 = arith.addf %158, %157 : vector<2x128xf32>
    %160 = arith.divf %158, %159 : vector<2x128xf32>
    %c8 = arith.constant 8 : index
    %c0_117 = arith.constant 0 : index
    %161 = vector.load %arg15[%c8, %c0_117] : memref<16x128xf32, #tpu.memory_space<vmem>>, vector<2x128xf32>
    tpu.vector_store %arg15[%c8, %c0_117], %160 {strides = array<i32>} : memref<16x128xf32, #tpu.memory_space<vmem>>, vector<2x128xf32>,
    %162 = vector.extract_strided_slice %96 {offsets = [0, 1280], sizes = [2, 256], strides = [1, 1]} : vector<2x2048xf32> to vector<2x256xf32>
    %163 = arith.truncf %162 : vector<2x256xf32> to vector<2x256xbf16>
    %c0_118 = arith.constant 0 : index
    %c0_119 = arith.constant 0 : index
    %164 = vector.load %arg11[%c0_118, %c0_119] : memref<256x128xbf16, #tpu.memory_space<vmem>>, vector<256x128xbf16>
    %cst_120 = arith.constant dense<0.000000e+00> : vector<2x128xf32>
    %165 = tpu.matmul %163, %164, %cst_120 {dimension_numbers = #tpu.dot_dimension_numbers<[1], [0], [0], [1], [0, 0, 1, 1], [], []>} : vector<2x256xbf16>, vector<256x128xbf16>, vector<2x128xf32> -> vector<2x128xf32>
    %c0_121 = arith.constant 0 : index
    %c0_122 = arith.constant 0 : index
    %166 = vector.load %arg12[%c0_121, %c0_122] : memref<1x128xf32, #tpu.memory_space<vmem>>, vector<1x128xf32>
    %167 = vector.broadcast %166 : vector<1x128xf32> to vector<2x128xf32>
    %168 = arith.addf %165, %167 : vector<2x128xf32>
    %169 = arith.negf %168 : vector<2x128xf32>
    %170 = math.exp %169 : vector<2x128xf32>
    %cst_123 = arith.constant 1.000000e+00 : f32
    %171 = vector.broadcast %cst_123 : f32 to vector<2x128xf32>
    %172 = arith.addf %171, %170 : vector<2x128xf32>
    %173 = arith.divf %171, %172 : vector<2x128xf32>
    %c10 = arith.constant 10 : index
    %c0_124 = arith.constant 0 : index
    %174 = vector.load %arg15[%c10, %c0_124] : memref<16x128xf32, #tpu.memory_space<vmem>>, vector<2x128xf32>
    tpu.vector_store %arg15[%c10, %c0_124], %173 {strides = array<i32>} : memref<16x128xf32, #tpu.memory_space<vmem>>, vector<2x128xf32>,
    %175 = vector.extract_strided_slice %96 {offsets = [0, 1536], sizes = [2, 256], strides = [1, 1]} : vector<2x2048xf32> to vector<2x256xf32>
    %176 = arith.truncf %175 : vector<2x256xf32> to vector<2x256xbf16>
    %c0_125 = arith.constant 0 : index
    %c0_126 = arith.constant 0 : index
    %177 = vector.load %arg11[%c0_125, %c0_126] : memref<256x128xbf16, #tpu.memory_space<vmem>>, vector<256x128xbf16>
    %cst_127 = arith.constant dense<0.000000e+00> : vector<2x128xf32>
    %178 = tpu.matmul %176, %177, %cst_127 {dimension_numbers = #tpu.dot_dimension_numbers<[1], [0], [0], [1], [0, 0, 1, 1], [], []>} : vector<2x256xbf16>, vector<256x128xbf16>, vector<2x128xf32> -> vector<2x128xf32>
    %c0_128 = arith.constant 0 : index
    %c0_129 = arith.constant 0 : index
    %179 = vector.load %arg12[%c0_128, %c0_129] : memref<1x128xf32, #tpu.memory_space<vmem>>, vector<1x128xf32>
    %180 = vector.broadcast %179 : vector<1x128xf32> to vector<2x128xf32>
    %181 = arith.addf %178, %180 : vector<2x128xf32>
    %182 = arith.negf %181 : vector<2x128xf32>
    %183 = math.exp %182 : vector<2x128xf32>
    %cst_130 = arith.constant 1.000000e+00 : f32
    %184 = vector.broadcast %cst_130 : f32 to vector<2x128xf32>
    %185 = arith.addf %184, %183 : vector<2x128xf32>
    %186 = arith.divf %184, %185 : vector<2x128xf32>
    %c12 = arith.constant 12 : index
    %c0_131 = arith.constant 0 : index
    %187 = vector.load %arg15[%c12, %c0_131] : memref<16x128xf32, #tpu.memory_space<vmem>>, vector<2x128xf32>
    tpu.vector_store %arg15[%c12, %c0_131], %186 {strides = array<i32>} : memref<16x128xf32, #tpu.memory_space<vmem>>, vector<2x128xf32>,
    %188 = vector.extract_strided_slice %96 {offsets = [0, 1792], sizes = [2, 256], strides = [1, 1]} : vector<2x2048xf32> to vector<2x256xf32>
    %189 = arith.truncf %188 : vector<2x256xf32> to vector<2x256xbf16>
    %c0_132 = arith.constant 0 : index
    %c0_133 = arith.constant 0 : index
    %190 = vector.load %arg11[%c0_132, %c0_133] : memref<256x128xbf16, #tpu.memory_space<vmem>>, vector<256x128xbf16>
    %cst_134 = arith.constant dense<0.000000e+00> : vector<2x128xf32>
    %191 = tpu.matmul %189, %190, %cst_134 {dimension_numbers = #tpu.dot_dimension_numbers<[1], [0], [0], [1], [0, 0, 1, 1], [], []>} : vector<2x256xbf16>, vector<256x128xbf16>, vector<2x128xf32> -> vector<2x128xf32>
    %c0_135 = arith.constant 0 : index
    %c0_136 = arith.constant 0 : index
    %192 = vector.load %arg12[%c0_135, %c0_136] : memref<1x128xf32, #tpu.memory_space<vmem>>, vector<1x128xf32>
    %193 = vector.broadcast %192 : vector<1x128xf32> to vector<2x128xf32>
    %194 = arith.addf %191, %193 : vector<2x128xf32>
    %195 = arith.negf %194 : vector<2x128xf32>
    %196 = math.exp %195 : vector<2x128xf32>
    %cst_137 = arith.constant 1.000000e+00 : f32
    %197 = vector.broadcast %cst_137 : f32 to vector<2x128xf32>
    %198 = arith.addf %197, %196 : vector<2x128xf32>
    %199 = arith.divf %197, %198 : vector<2x128xf32>
    %c14 = arith.constant 14 : index
    %c0_138 = arith.constant 0 : index
    %200 = vector.load %arg15[%c14, %c0_138] : memref<16x128xf32, #tpu.memory_space<vmem>>, vector<2x128xf32>
    tpu.vector_store %arg15[%c14, %c0_138], %199 {strides = array<i32>} : memref<16x128xf32, #tpu.memory_space<vmem>>, vector<2x128xf32>,
    return
  }
  func.func @transform_0(%arg0: i32) -> (i32, i32) {
    %c0_i32 = arith.constant 0 : i32
    %c0_i32_0 = arith.constant 0 : i32
    %c0_i32_1 = arith.constant 0 : i32
    return %c0_i32, %c0_i32_0 : i32, i32
  }
  func.func @transform_1(%arg0: i32) -> (i32, i32) {
    %c0_i32 = arith.constant 0 : i32
    %c0_i32_0 = arith.constant 0 : i32
    %c0_i32_1 = arith.constant 0 : i32
    return %c0_i32, %c0_i32_0 : i32, i32
  }
  func.func @transform_2(%arg0: i32) -> (i32, i32) {
    %c0_i32 = arith.constant 0 : i32
    %c0_i32_0 = arith.constant 0 : i32
    %c0_i32_1 = arith.constant 0 : i32
    return %c0_i32, %c0_i32_0 : i32, i32
  }
  func.func @transform_3(%arg0: i32) -> (i32, i32) {
    %c0_i32 = arith.constant 0 : i32
    %c0_i32_0 = arith.constant 0 : i32
    %c0_i32_1 = arith.constant 0 : i32
    return %c0_i32, %c0_i32_0 : i32, i32
  }
  func.func @transform_4(%arg0: i32) -> (i32, i32, i32) {
    %c0_i32 = arith.constant 0 : i32
    %c0_i32_0 = arith.constant 0 : i32
    %c0_i32_1 = arith.constant 0 : i32
    %c0_i32_2 = arith.constant 0 : i32
    return %c0_i32, %c0_i32_0, %c0_i32_1 : i32, i32, i32
  }
  func.func @transform_5(%arg0: i32) -> (i32, i32) {
    %c0_i32 = arith.constant 0 : i32
    %c0_i32_0 = arith.constant 0 : i32
    %c0_i32_1 = arith.constant 0 : i32
    return %c0_i32, %c0_i32_0 : i32, i32
  }
  func.func @transform_6(%arg0: i32) -> (i32, i32, i32) {
    %c0_i32 = arith.constant 0 : i32
    %c0_i32_0 = arith.constant 0 : i32
    %c0_i32_1 = arith.constant 0 : i32
    %c0_i32_2 = arith.constant 0 : i32
    return %c0_i32, %c0_i32_0, %c0_i32_1 : i32, i32, i32
  }
  func.func @transform_7(%arg0: i32) -> (i32, i32) {
    %c0_i32 = arith.constant 0 : i32
    %c0_i32_0 = arith.constant 0 : i32
    %c0_i32_1 = arith.constant 0 : i32
    return %c0_i32, %c0_i32_0 : i32, i32
  }
  func.func @transform_8(%arg0: i32) -> (i32, i32) {
    %c0_i32 = arith.constant 0 : i32
    %c0_i32_0 = arith.constant 0 : i32
    %c0_i32_1 = arith.constant 0 : i32
    return %c0_i32, %c0_i32_0 : i32, i32
  }
  func.func @transform_9(%arg0: i32) -> (i32, i32) {
    %c0_i32 = arith.constant 0 : i32
    %c0_i32_0 = arith.constant 0 : i32
    %c0_i32_1 = arith.constant 0 : i32
    return %c0_i32, %c0_i32_0 : i32, i32
  }
  func.func @transform_10(%arg0: i32) -> (i32, i32) {
    %c0_i32 = arith.constant 0 : i32
    %c0_i32_0 = arith.constant 0 : i32
    %c0_i32_1 = arith.constant 0 : i32
    return %c0_i32, %c0_i32_0 : i32, i32
  }
  func.func @transform_11(%arg0: i32) -> (i32, i32) {
    %c0_i32 = arith.constant 0 : i32
    %c0_i32_0 = arith.constant 0 : i32
    %c0_i32_1 = arith.constant 0 : i32
    return %c0_i32, %c0_i32_0 : i32, i32
  }
  func.func @transform_12(%arg0: i32) -> (i32, i32) {
    %c0_i32 = arith.constant 0 : i32
    %c0_i32_0 = arith.constant 0 : i32
    %c0_i32_1 = arith.constant 0 : i32
    return %c0_i32, %c0_i32_0 : i32, i32
  }
  func.func @transform_13(%arg0: i32) -> (i32, i32) {
    %c0_i32 = arith.constant 0 : i32
    %c0_i32_0 = arith.constant 0 : i32
    %c0_i32_1 = arith.constant 0 : i32
    return %c0_i32, %c0_i32_0 : i32, i32
  }
  func.func @transform_14(%arg0: i32) -> (i32, i32) {
    %c0_i32 = arith.constant 0 : i32
    %c0_i32_0 = arith.constant 0 : i32
    %c0_i32_1 = arith.constant 0 : i32
    return %c0_i32, %c0_i32_0 : i32, i32
  }
}

</mosaic_0001>

<llo_original>
// kernel: net_forward.1
$region0: #{net_forward.1}
  #allocation0 [shape = 'u32[]', space=smem, size = 0x4, offset = 0x4, fixed_abs, tag = 'smem constant byte address 0x4 - core index']
  #allocation1 [shape = 'u32[144,128]{1,0:T(1,128)}', space=vmem, size = 0x12000, scoped, tag = 'internal scratch']
  %s0 = inlined_call_operand.vmem [shape: f32[16,256], index: 0, kind: input, shape index: {}]
  %s1 = inlined_call_operand.vmem [shape: f32[2,8], index: 1, kind: input, shape index: {}]
  %s2 = inlined_call_operand.vmem [shape: f32[256,64], index: 2, kind: input, shape index: {}]
  %s3 = inlined_call_operand.vmem [shape: f32[1,64], index: 3, kind: input, shape index: {}]
  %s4 = inlined_call_operand.vmem [shape: f32[8,64,8], index: 4, kind: input, shape index: {}]
  %s5 = inlined_call_operand.vmem [shape: f32[1,8], index: 5, kind: input, shape index: {}]
  %s6 = inlined_call_operand.vmem [shape: f32[8,64,8], index: 6, kind: input, shape index: {}]
  %s7 = inlined_call_operand.vmem [shape: f32[1,8], index: 7, kind: input, shape index: {}]
  %s8 = inlined_call_operand.vmem [shape: bf16[8,2048], index: 8, kind: input, shape index: {}]
  %s9 = inlined_call_operand.vmem [shape: f32[1,2048], index: 9, kind: input, shape index: {}]
  %s10 = inlined_call_operand.vmem [shape: bf16[256,128], index: 10, kind: input, shape index: {}]
  %s11 = inlined_call_operand.vmem [shape: f32[1,128], index: 11, kind: input, shape index: {}]
  %s12 = inlined_call_operand.hbm [shape: f32[2,8], index: 12, kind: output, shape index: {0}]
  %s13 = inlined_call_operand.hbm [shape: f32[2,8], index: 13, kind: output, shape index: {1}]
  %s14 = inlined_call_operand.vmem [shape: f32[16,128], index: 14, kind: output, shape index: {2}]
  %15 = xla_tuple %s12, %s13, %s14
  %s16 = sld [smem:[#allocation0]]
  $region74: #{net_forward.1} parent=0
    _
  %s18 = ssub.s32 1, %s16
  %s19 = scalar_select 0, %s18, %s16
  $region1: #{net_forward.1} parent=0
    #allocation2 [shape = 'u8[1024]{0}', space=vmem, size = 0x400, scoped, tag = 'output window, operand 0, single buffered']
    #allocation3 [shape = 's32[1]{0}', space=sflag, size = 0x4, scoped, tag = 'scoped memory for net_forward.1']
    #allocation4 [shape = 'u8[1024]{0}', space=vmem, size = 0x400, scoped, tag = 'output window, operand 1, single buffered']
    #allocation5 [shape = 's32[1]{0}', space=sflag, size = 0x4, scoped, tag = 'scoped memory for net_forward.1']
    %20 = vsyncpa [#allocation3], 0
    %21 = vsyncpa [#allocation5], 0
    // Predicated region
    $region2: #{net_forward.1} parent=1 // pred_check
      _
    $region3: #{net_forward.1} parent=1 // pred_check_branch
      %23 = sbr.rel (0) target = $region5
    $region4: #{net_forward.1} parent=1 // pred_region
      _
    $region5: #{net_forward.1} parent=1 // pred_fallthru
      _
    // Predicated region
    $region6: #{net_forward.1} parent=1 // pred_check
      _
    $region7: #{net_forward.1} parent=1 // pred_check_branch
      %25 = sbr.rel (0) target = $region9
    $region8: #{net_forward.1} parent=1 // pred_region
      _
    $region9: #{net_forward.1} parent=1 // pred_fallthru
      _
    // Predicated region
    $region10: #{net_forward.1} parent=1 // pred_check
      _
    $region11: #{net_forward.1} parent=1 // pred_check_branch
      %27 = sbr.rel (0) target = $region13
    $region12: #{net_forward.1} parent=1 // pred_region
      _
    $region13: #{net_forward.1} parent=1 // pred_fallthru
      _
    // Predicated region
    $region14: #{net_forward.1} parent=1 // pred_check
      _
    $region15: #{net_forward.1} parent=1 // pred_check_branch
      %29 = sbr.rel (0) target = $region17
    $region16: #{net_forward.1} parent=1 // pred_region
      _
    $region17: #{net_forward.1} parent=1 // pred_fallthru
      _
    // Predicated region
    $region18: #{net_forward.1} parent=1 // pred_check
      _
    $region19: #{net_forward.1} parent=1 // pred_check_branch
      %31 = sbr.rel (0) target = $region21
    $region20: #{net_forward.1} parent=1 // pred_region
      _
    $region21: #{net_forward.1} parent=1 // pred_fallthru
      _
    // Predicated region
    $region22: #{net_forward.1} parent=1 // pred_check
      _
    $region23: #{net_forward.1} parent=1 // pred_check_branch
      %33 = sbr.rel (0) target = $region25
    $region24: #{net_forward.1} parent=1 // pred_region
      _
    $region25: #{net_forward.1} parent=1 // pred_fallthru
      _
    // Predicated region
    $region26: #{net_forward.1} parent=1 // pred_check
      _
    $region27: #{net_forward.1} parent=1 // pred_check_branch
      %35 = sbr.rel (0) target = $region29
    $region28: #{net_forward.1} parent=1 // pred_region
      _
    $region29: #{net_forward.1} parent=1 // pred_fallthru
      _
    // Predicated region
    $region30: #{net_forward.1} parent=1 // pred_check
      _
    $region31: #{net_forward.1} parent=1 // pred_check_branch
      %37 = sbr.rel (0) target = $region33
    $region32: #{net_forward.1} parent=1 // pred_region
      _
    $region33: #{net_forward.1} parent=1 // pred_fallthru
      _
    // Predicated region
    $region34: #{net_forward.1} parent=1 // pred_check
      _
    $region35: #{net_forward.1} parent=1 // pred_check_branch
      %39 = sbr.rel (0) target = $region37
    $region36: #{net_forward.1} parent=1 // pred_region
      _
    $region37: #{net_forward.1} parent=1 // pred_fallthru
      _
    // Predicated region
    $region38: #{net_forward.1} parent=1 // pred_check
      _
    $region39: #{net_forward.1} parent=1 // pred_check_branch
      %41 = sbr.rel (0) target = $region41
    $region40: #{net_forward.1} parent=1 // pred_region
      _
    $region41: #{net_forward.1} parent=1 // pred_fallthru
      _
    // Predicated region
    $region42: #{net_forward.1} parent=1 // pred_check
      _
    $region43: #{net_forward.1} parent=1 // pred_check_branch
      %43 = sbr.rel (0) target = $region45
    $region44: #{net_forward.1} parent=1 // pred_region
      _
    $region45: #{net_forward.1} parent=1 // pred_fallthru
      _
    // Predicated region
    $region46: #{net_forward.1} parent=1 // pred_check
      _
    $region47: #{net_forward.1} parent=1 // pred_check_branch
      %45 = sbr.rel (0) target = $region49
    $region48: #{net_forward.1} parent=1 // pred_region
      _
    $region49: #{net_forward.1} parent=1 // pred_fallthru
      _
    %v47 = vld [vmem:[%s0] sm:$0xff]
    %v48 = vld [vmem:[%s0 + $0x8] sm:$0xff]
    %v49 = vld [vmem:[%s0 + $0x10] sm:$0xff]
    %v50 = vld [vmem:[%s0 + $0x18] sm:$0xff]
    %v51 = vld [vmem:[%s2] sm:$0xff]
    %v52 = vld [vmem:[%s2 + $0x8] sm:$0xff]
    %v53 = vld [vmem:[%s2 + $0x10] sm:$0xff]
    %v54 = vld [vmem:[%s2 + $0x18] sm:$0xff]
    %v55 = vld [vmem:[%s2 + $0x20] sm:$0xff]
    %v56 = vld [vmem:[%s2 + $0x28] sm:$0xff]
    %v57 = vld [vmem:[%s2 + $0x30] sm:$0xff]
    %v58 = vld [vmem:[%s2 + $0x38] sm:$0xff]
    %v59 = vld [vmem:[%s2 + $0x40] sm:$0xff]
    %v60 = vld [vmem:[%s2 + $0x48] sm:$0xff]
    %v61 = vld [vmem:[%s2 + $0x50] sm:$0xff]
    %v62 = vld [vmem:[%s2 + $0x58] sm:$0xff]
    %v63 = vld [vmem:[%s2 + $0x60] sm:$0xff]
    %v64 = vld [vmem:[%s2 + $0x68] sm:$0xff]
    %v65 = vld [vmem:[%s2 + $0x70] sm:$0xff]
    %v66 = vld [vmem:[%s2 + $0x78] sm:$0xff]
    %v67 = vld [vmem:[%s2 + $0x80] sm:$0xff]
    %v68 = vld [vmem:[%s2 + $0x88] sm:$0xff]
    %v69 = vld [vmem:[%s2 + $0x90] sm:$0xff]
    %v70 = vld [vmem:[%s2 + $0x98] sm:$0xff]
    %v71 = vld [vmem:[%s2 + $0xa0] sm:$0xff]
    %v72 = vld [vmem:[%s2 + $0xa8] sm:$0xff]
    %v73 = vld [vmem:[%s2 + $0xb0] sm:$0xff]
    %v74 = vld [vmem:[%s2 + $0xb8] sm:$0xff]
    %v75 = vld [vmem:[%s2 + $0xc0] sm:$0xff]
    %v76 = vld [vmem:[%s2 + $0xc8] sm:$0xff]
    %v77 = vld [vmem:[%s2 + $0xd0] sm:$0xff]
    %v78 = vld [vmem:[%s2 + $0xd8] sm:$0xff]
    %v79 = vld [vmem:[%s2 + $0xe0] sm:$0xff]
    %v80 = vld [vmem:[%s2 + $0xe8] sm:$0xff]
    %v81 = vld [vmem:[%s2 + $0xf0] sm:$0xff]
    %v82 = vld [vmem:[%s2 + $0xf8] sm:$0xff]
    %v83 = vld [vmem:[%s3] sm:$0x1]
    %v85 = vlaneseq
    %v86 = vshrl.u32 %v85, 7
    %v87 = vsub.s32 0, %v86
    %v88 = vrot.slane %v83, %v87
    %90 = vmatprep.subr.mxu0 0.0
    %91 = vmatpush1.msra.mxu0 %v66
    %92 = vmatprep.subr.mxu0 0.0
    %93 = vmatpush1.msra.mxu0 %v65
    %94 = vmatprep.subr.mxu0 0.0
    %95 = vmatpush1.msra.mxu0 %v64
    %96 = vmatprep.subr.mxu0 0.0
    %97 = vmatpush1.msra.mxu0 %v63
    %98 = vmatprep.subr.mxu0 0.0
    %99 = vmatpush1.msra.mxu0 %v62
    %100 = vmatprep.subr.mxu0 0.0
    %101 = vmatpush1.msra.mxu0 %v61
    %102 = vmatprep.subr.mxu0 0.0
    %103 = vmatpush1.msra.mxu0 %v60
    %104 = vmatprep.subr.mxu0 0.0
    %105 = vmatpush1.msra.mxu0 %v59
    %106 = vmatprep.subr.mxu0 0.0
    %107 = vmatpush1.msra.mxu0 %v58
    %108 = vmatprep.subr.mxu0 0.0
    %109 = vmatpush1.msra.mxu0 %v57
    %110 = vmatprep.subr.mxu0 0.0
    %111 = vmatpush1.msra.mxu0 %v56
    %112 = vmatprep.subr.mxu0 0.0
    %113 = vmatpush1.msra.mxu0 %v55
    %114 = vmatprep.subr.mxu0 0.0
    %115 = vmatpush1.msra.mxu0 %v54
    %116 = vmatprep.subr.mxu0 0.0
    %117 = vmatpush1.msra.mxu0 %v53
    %118 = vmatprep.subr.mxu0 0.0
    %119 = vmatpush1.msra.mxu0 %v52
    %120 = vmatprep.subr.mxu0 0.0
    %121 = vmatpush1.msra.mxu0 %v51
    %122 = vmatprep.subr.mxu0 0.0
    %123 = vmatpush2.msra.mxu0 %v82
    %124 = vmatprep.subr.mxu0 0.0
    %125 = vmatpush2.msra.mxu0 %v81
    %126 = vmatprep.subr.mxu0 0.0
    %127 = vmatpush2.msra.mxu0 %v80
    %128 = vmatprep.subr.mxu0 0.0
    %129 = vmatpush2.msra.mxu0 %v79
    %130 = vmatprep.subr.mxu0 0.0
    %131 = vmatpush2.msra.mxu0 %v78
    %132 = vmatprep.subr.mxu0 0.0
    %133 = vmatpush2.msra.mxu0 %v77
    %134 = vmatprep.subr.mxu0 0.0
    %135 = vmatpush2.msra.mxu0 %v76
    %136 = vmatprep.subr.mxu0 0.0
    %137 = vmatpush2.msra.mxu0 %v75
    %138 = vmatprep.subr.mxu0 0.0
    %139 = vmatpush2.msra.mxu0 %v74
    %140 = vmatprep.subr.mxu0 0.0
    %141 = vmatpush2.msra.mxu0 %v73
    %142 = vmatprep.subr.mxu0 0.0
    %143 = vmatpush2.msra.mxu0 %v72
    %144 = vmatprep.subr.mxu0 0.0
    %145 = vmatpush2.msra.mxu0 %v71
    %146 = vmatprep.subr.mxu0 0.0
    %147 = vmatpush2.msra.mxu0 %v70
    %148 = vmatprep.subr.mxu0 0.0
    %149 = vmatpush2.msra.mxu0 %v69
    %150 = vmatprep.subr.mxu0 0.0
    %151 = vmatpush2.msra.mxu0 %v68
    %152 = vmatprep.subr.mxu0 0.0
    %153 = vmatpush2.msra.mxu0 %v67
    %154 = vmatprep.mubr.f32.mxu0 %v48
    %155 = vmatmul.mubr.f32.gmra.mxu0 %v47
    %v156 = vpop.f32.mrf.mxu0
    %v157 = vadd.f32 %v88, %v156
    %v158 = vpop.f32.mrf.mxu0
    %159 = vmatprep.mubr.f32.mxu0 %v50
    %160 = vmatmul.mubr.f32.gmra.mxu0 %v49
    %v161 = vpop.f32.mrf.mxu0
    %v162 = vadd.f32 %v88, %v161
    %v163 = vpop.f32.mrf.mxu0
    %164 = vdwg.mxu0
    %v165 = vmax.f32 %v157, 0.0
    %v166 = vmax.f32 %v162, 0.0
    %v167 = vld [vmem:[%s5] sm:$0x1]
    %v168 = vld [vmem:[%s7] sm:$0x1]
    %v169 = vld [vmem:[%s4] sm:$0xff]
    %v170 = vld [vmem:[%s4 + $0x8] sm:$0xff]
    %v171 = vld [vmem:[%s4 + $0x10] sm:$0xff]
    %v172 = vld [vmem:[%s4 + $0x18] sm:$0xff]
    %v173 = vld [vmem:[%s4 + $0x20] sm:$0xff]
    %v174 = vld [vmem:[%s4 + $0x28] sm:$0xff]
    %v175 = vld [vmem:[%s4 + $0x30] sm:$0xff]
    %v176 = vld [vmem:[%s4 + $0x38] sm:$0xff]
    %vm177 = vcmask 523264
    %v179 = vsel %vm177, %v165, 0
    %181 = vmatprep.subr.mxu0 0.0
    %182 = vmatpush1.msra.mxu0 0.0
    %183 = vmatprep.subr.mxu0 0.0
    %184 = vmatpush1.msra.mxu0 0.0
    %185 = vmatprep.subr.mxu0 0.0
    %186 = vmatpush1.msra.mxu0 0.0
    %187 = vmatprep.subr.mxu0 0.0
    %188 = vmatpush1.msra.mxu0 0.0
    %189 = vmatprep.subr.mxu0 0.0
    %190 = vmatpush1.msra.mxu0 0.0
    %191 = vmatprep.subr.mxu0 0.0
    %192 = vmatpush1.msra.mxu0 0.0
    %193 = vmatprep.subr.mxu0 0.0
    %194 = vmatpush1.msra.mxu0 0.0
    %195 = vmatprep.subr.mxu0 0.0
    %196 = vmatpush1.msra.mxu0 0.0
    %197 = vmatprep.subr.mxu0 0.0
    %198 = vmatpush1.msra.mxu0 %v176
    %199 = vmatprep.subr.mxu0 0.0
    %200 = vmatpush1.msra.mxu0 %v175
    %201 = vmatprep.subr.mxu0 0.0
    %202 = vmatpush1.msra.mxu0 %v174
    %203 = vmatprep.subr.mxu0 0.0
    %204 = vmatpush1.msra.mxu0 %v173
    %205 = vmatprep.subr.mxu0 0.0
    %206 = vmatpush1.msra.mxu0 %v172
    %207 = vmatprep.subr.mxu0 0.0
    %208 = vmatpush1.msra.mxu0 %v171
    %209 = vmatprep.subr.mxu0 0.0
    %210 = vmatpush1.msra.mxu0 %v170
    %211 = vmatprep.subr.mxu0 0.0
    %212 = vmatpush1.msra.mxu0 %v169
    %213 = vmatprep.subr.mxu0 0.0
    %214 = vmatpush2.msra.mxu0 0.0
    %215 = vmatprep.subr.mxu0 0.0
    %216 = vmatpush2.msra.mxu0 0.0
    %217 = vmatprep.subr.mxu0 0.0
    %218 = vmatpush2.msra.mxu0 0.0
    %219 = vmatprep.subr.mxu0 0.0
    %220 = vmatpush2.msra.mxu0 0.0
    %221 = vmatprep.subr.mxu0 0.0
    %222 = vmatpush2.msra.mxu0 0.0
    %223 = vmatprep.subr.mxu0 0.0
    %224 = vmatpush2.msra.mxu0 0.0
    %225 = vmatprep.subr.mxu0 0.0
    %226 = vmatpush2.msra.mxu0 0.0
    %227 = vmatprep.subr.mxu0 0.0
    %228 = vmatpush2.msra.mxu0 0.0
    %229 = vmatprep.subr.mxu0 0.0
    %230 = vmatpush2.msra.mxu0 0.0
    %231 = vmatprep.subr.mxu0 0.0
    %232 = vmatpush2.msra.mxu0 0.0
    %233 = vmatprep.subr.mxu0 0.0
    %234 = vmatpush2.msra.mxu0 0.0
    %235 = vmatprep.subr.mxu0 0.0
    %236 = vmatpush2.msra.mxu0 0.0
    %237 = vmatprep.subr.mxu0 0.0
    %238 = vmatpush2.msra.mxu0 0.0
    %239 = vmatprep.subr.mxu0 0.0
    %240 = vmatpush2.msra.mxu0 0.0
    %241 = vmatprep.subr.mxu0 0.0
    %242 = vmatpush2.msra.mxu0 0.0
    %243 = vmatprep.subr.mxu0 0.0
    %244 = vmatpush2.msra.mxu0 0.0
    %245 = vmatprep.mubr.f32.mxu0 0.0
    %246 = vmatmul.mubr.f32.gmra.mxu0 %v179
    %v247 = vpop.f32.mrf.mxu0
    %v248 = vadd.f32 0.0, %v247
    %v249 = vpop.f32.mrf.mxu0
    %250 = vdwg.mxu0
    %v252 = vlaneseq
    %v253 = vshrl.u32 %v252, 7
    %v254 = vsub.s32 0, %v253
    %v255 = vrot.slane %v167, %v254
    %v257 = vadd.f32 %v255, %v248
    %v258 = vld [vmem:[%s6] sm:$0xff]
    %v259 = vld [vmem:[%s6 + $0x8] sm:$0xff]
    %v260 = vld [vmem:[%s6 + $0x10] sm:$0xff]
    %v261 = vld [vmem:[%s6 + $0x18] sm:$0xff]
    %v262 = vld [vmem:[%s6 + $0x20] sm:$0xff]
    %v263 = vld [vmem:[%s6 + $0x28] sm:$0xff]
    %v264 = vld [vmem:[%s6 + $0x30] sm:$0xff]
    %v265 = vld [vmem:[%s6 + $0x38] sm:$0xff]
    %266 = vmatprep.subr.mxu0 0.0
    %267 = vmatpush1.msra.mxu0 0.0
    %268 = vmatprep.subr.mxu0 0.0
    %269 = vmatpush1.msra.mxu0 0.0
    %270 = vmatprep.subr.mxu0 0.0
    %271 = vmatpush1.msra.mxu0 0.0
    %272 = vmatprep.subr.mxu0 0.0
    %273 = vmatpush1.msra.mxu0 0.0
    %274 = vmatprep.subr.mxu0 0.0
    %275 = vmatpush1.msra.mxu0 0.0
    %276 = vmatprep.subr.mxu0 0.0
    %277 = vmatpush1.msra.mxu0 0.0
    %278 = vmatprep.subr.mxu0 0.0
    %279 = vmatpush1.msra.mxu0 0.0
    %280 = vmatprep.subr.mxu0 0.0
    %281 = vmatpush1.msra.mxu0 0.0
    %282 = vmatprep.subr.mxu0 0.0
    %283 = vmatpush1.msra.mxu0 %v265
    %284 = vmatprep.subr.mxu0 0.0
    %285 = vmatpush1.msra.mxu0 %v264
    %286 = vmatprep.subr.mxu0 0.0
    %287 = vmatpush1.msra.mxu0 %v263
    %288 = vmatprep.subr.mxu0 0.0
    %289 = vmatpush1.msra.mxu0 %v262
    %290 = vmatprep.subr.mxu0 0.0
    %291 = vmatpush1.msra.mxu0 %v261
    %292 = vmatprep.subr.mxu0 0.0
    %293 = vmatpush1.msra.mxu0 %v260
    %294 = vmatprep.subr.mxu0 0.0
    %295 = vmatpush1.msra.mxu0 %v259
    %296 = vmatprep.subr.mxu0 0.0
    %297 = vmatpush1.msra.mxu0 %v258
    %298 = vmatprep.subr.mxu0 0.0
    %299 = vmatpush2.msra.mxu0 0.0
    %300 = vmatprep.subr.mxu0 0.0
    %301 = vmatpush2.msra.mxu0 0.0
    %302 = vmatprep.subr.mxu0 0.0
    %303 = vmatpush2.msra.mxu0 0.0
    %304 = vmatprep.subr.mxu0 0.0
    %305 = vmatpush2.msra.mxu0 0.0
    %306 = vmatprep.subr.mxu0 0.0
    %307 = vmatpush2.msra.mxu0 0.0
    %308 = vmatprep.subr.mxu0 0.0
    %309 = vmatpush2.msra.mxu0 0.0
    %310 = vmatprep.subr.mxu0 0.0
    %311 = vmatpush2.msra.mxu0 0.0
    %312 = vmatprep.subr.mxu0 0.0
    %313 = vmatpush2.msra.mxu0 0.0
    %314 = vmatprep.subr.mxu0 0.0
    %315 = vmatpush2.msra.mxu0 0.0
    %316 = vmatprep.subr.mxu0 0.0
    %317 = vmatpush2.msra.mxu0 0.0
    %318 = vmatprep.subr.mxu0 0.0
    %319 = vmatpush2.msra.mxu0 0.0
    %320 = vmatprep.subr.mxu0 0.0
    %321 = vmatpush2.msra.mxu0 0.0
    %322 = vmatprep.subr.mxu0 0.0
    %323 = vmatpush2.msra.mxu0 0.0
    %324 = vmatprep.subr.mxu0 0.0
    %325 = vmatpush2.msra.mxu0 0.0
    %326 = vmatprep.subr.mxu0 0.0
    %327 = vmatpush2.msra.mxu0 0.0
    %328 = vmatprep.subr.mxu0 0.0
    %329 = vmatpush2.msra.mxu0 0.0
    %330 = vmatprep.mubr.f32.mxu0 0.0
    %331 = vmatmul.mubr.f32.gmra.mxu0 %v179
    %v332 = vpop.f32.mrf.mxu0
    %v333 = vadd.f32 0.0, %v332
    %v334 = vpop.f32.mrf.mxu0
    %335 = vdwg.mxu0
    %v337 = vlaneseq
    %v338 = vshrl.u32 %v337, 7
    %v339 = vsub.s32 0, %v338
    %v340 = vrot.slane %v168, %v339
    %v342 = vadd.f32 %v340, %v333
    %s343 = scalar_lea.vmem %s4, 64
    %v344 = vld [vmem:[%s343] sm:$0xff]
    %v345 = vld [vmem:[%s343 + $0x8] sm:$0xff]
    %v346 = vld [vmem:[%s343 + $0x10] sm:$0xff]
    %v347 = vld [vmem:[%s343 + $0x18] sm:$0xff]
    %v348 = vld [vmem:[%s343 + $0x20] sm:$0xff]
    %v349 = vld [vmem:[%s343 + $0x28] sm:$0xff]
    %v350 = vld [vmem:[%s343 + $0x30] sm:$0xff]
    %v351 = vld [vmem:[%s343 + $0x38] sm:$0xff]
    %v352 = vrot.slane %v165, 2
    %v353 = vsel %vm177, %v352, 0
    %355 = vmatprep.subr.mxu0 0.0
    %356 = vmatpush1.msra.mxu0 0.0
    %357 = vmatprep.subr.mxu0 0.0
    %358 = vmatpush1.msra.mxu0 0.0
    %359 = vmatprep.subr.mxu0 0.0
    %360 = vmatpush1.msra.mxu0 0.0
    %361 = vmatprep.subr.mxu0 0.0
    %362 = vmatpush1.msra.mxu0 0.0
    %363 = vmatprep.subr.mxu0 0.0
    %364 = vmatpush1.msra.mxu0 0.0
    %365 = vmatprep.subr.mxu0 0.0
    %366 = vmatpush1.msra.mxu0 0.0
    %367 = vmatprep.subr.mxu0 0.0
    %368 = vmatpush1.msra.mxu0 0.0
    %369 = vmatprep.subr.mxu0 0.0
    %370 = vmatpush1.msra.mxu0 0.0
    %371 = vmatprep.subr.mxu0 0.0
    %372 = vmatpush1.msra.mxu0 %v351
    %373 = vmatprep.subr.mxu0 0.0
    %374 = vmatpush1.msra.mxu0 %v350
    %375 = vmatprep.subr.mxu0 0.0
    %376 = vmatpush1.msra.mxu0 %v349
    %377 = vmatprep.subr.mxu0 0.0
    %378 = vmatpush1.msra.mxu0 %v348
    %379 = vmatprep.subr.mxu0 0.0
    %380 = vmatpush1.msra.mxu0 %v347
    %381 = vmatprep.subr.mxu0 0.0
    %382 = vmatpush1.msra.mxu0 %v346
    %383 = vmatprep.subr.mxu0 0.0
    %384 = vmatpush1.msra.mxu0 %v345
    %385 = vmatprep.subr.mxu0 0.0
    %386 = vmatpush1.msra.mxu0 %v344
    %387 = vmatprep.subr.mxu0 0.0
    %388 = vmatpush2.msra.mxu0 0.0
    %389 = vmatprep.subr.mxu0 0.0
    %390 = vmatpush2.msra.mxu0 0.0
    %391 = vmatprep.subr.mxu0 0.0
    %392 = vmatpush2.msra.mxu0 0.0
    %393 = vmatprep.subr.mxu0 0.0
    %394 = vmatpush2.msra.mxu0 0.0
    %395 = vmatprep.subr.mxu0 0.0
    %396 = vmatpush2.msra.mxu0 0.0
    %397 = vmatprep.subr.mxu0 0.0
    %398 = vmatpush2.msra.mxu0 0.0
    %399 = vmatprep.subr.mxu0 0.0
    %400 = vmatpush2.msra.mxu0 0.0
    %401 = vmatprep.subr.mxu0 0.0
    %402 = vmatpush2.msra.mxu0 0.0
    %403 = vmatprep.subr.mxu0 0.0
    %404 = vmatpush2.msra.mxu0 0.0
    %405 = vmatprep.subr.mxu0 0.0
    %406 = vmatpush2.msra.mxu0 0.0
    %407 = vmatprep.subr.mxu0 0.0
    %408 = vmatpush2.msra.mxu0 0.0
    %409 = vmatprep.subr.mxu0 0.0
    %410 = vmatpush2.msra.mxu0 0.0
    %411 = vmatprep.subr.mxu0 0.0
    %412 = vmatpush2.msra.mxu0 0.0
    %413 = vmatprep.subr.mxu0 0.0
    %414 = vmatpush2.msra.mxu0 0.0
    %415 = vmatprep.subr.mxu0 0.0
    %416 = vmatpush2.msra.mxu0 0.0
    %417 = vmatprep.subr.mxu0 0.0
    %418 = vmatpush2.msra.mxu0 0.0
    %419 = vmatprep.mubr.f32.mxu0 0.0
    %420 = vmatmul.mubr.f32.gmra.mxu0 %v353
    %v421 = vpop.f32.mrf.mxu0
    %v422 = vadd.f32 0.0, %v421
    %v423 = vpop.f32.mrf.mxu0
    %424 = vdwg.mxu0
    %v425 = vadd.f32 %v257, %v422
    %s426 = scalar_lea.vmem %s6, 64
    %v427 = vld [vmem:[%s426] sm:$0xff]
    %v428 = vld [vmem:[%s426 + $0x8] sm:$0xff]
    %v429 = vld [vmem:[%s426 + $0x10] sm:$0xff]
    %v430 = vld [vmem:[%s426 + $0x18] sm:$0xff]
    %v431 = vld [vmem:[%s426 + $0x20] sm:$0xff]
    %v432 = vld [vmem:[%s426 + $0x28] sm:$0xff]
    %v433 = vld [vmem:[%s426 + $0x30] sm:$0xff]
    %v434 = vld [vmem:[%s426 + $0x38] sm:$0xff]
    %435 = vmatprep.subr.mxu0 0.0
    %436 = vmatpush1.msra.mxu0 0.0
    %437 = vmatprep.subr.mxu0 0.0
    %438 = vmatpush1.msra.mxu0 0.0
    %439 = vmatprep.subr.mxu0 0.0
    %440 = vmatpush1.msra.mxu0 0.0
    %441 = vmatprep.subr.mxu0 0.0
    %442 = vmatpush1.msra.mxu0 0.0
    %443 = vmatprep.subr.mxu0 0.0
    %444 = vmatpush1.msra.mxu0 0.0
    %445 = vmatprep.subr.mxu0 0.0
    %446 = vmatpush1.msra.mxu0 0.0
    %447 = vmatprep.subr.mxu0 0.0
    %448 = vmatpush1.msra.mxu0 0.0
    %449 = vmatprep.subr.mxu0 0.0
    %450 = vmatpush1.msra.mxu0 0.0
    %451 = vmatprep.subr.mxu0 0.0
    %452 = vmatpush1.msra.mxu0 %v434
    %453 = vmatprep.subr.mxu0 0.0
    %454 = vmatpush1.msra.mxu0 %v433
    %455 = vmatprep.subr.mxu0 0.0
    %456 = vmatpush1.msra.mxu0 %v432
    %457 = vmatprep.subr.mxu0 0.0
    %458 = vmatpush1.msra.mxu0 %v431
    %459 = vmatprep.subr.mxu0 0.0
    %460 = vmatpush1.msra.mxu0 %v430
    %461 = vmatprep.subr.mxu0 0.0
    %462 = vmatpush1.msra.mxu0 %v429
    %463 = vmatprep.subr.mxu0 0.0
    %464 = vmatpush1.msra.mxu0 %v428
    %465 = vmatprep.subr.mxu0 0.0
    %466 = vmatpush1.msra.mxu0 %v427
    %467 = vmatprep.subr.mxu0 0.0
    %468 = vmatpush2.msra.mxu0 0.0
    %469 = vmatprep.subr.mxu0 0.0
    %470 = vmatpush2.msra.mxu0 0.0
    %471 = vmatprep.subr.mxu0 0.0
    %472 = vmatpush2.msra.mxu0 0.0
    %473 = vmatprep.subr.mxu0 0.0
    %474 = vmatpush2.msra.mxu0 0.0
    %475 = vmatprep.subr.mxu0 0.0
    %476 = vmatpush2.msra.mxu0 0.0
    %477 = vmatprep.subr.mxu0 0.0
    %478 = vmatpush2.msra.mxu0 0.0
    %479 = vmatprep.subr.mxu0 0.0
    %480 = vmatpush2.msra.mxu0 0.0
    %481 = vmatprep.subr.mxu0 0.0
    %482 = vmatpush2.msra.mxu0 0.0
    %483 = vmatprep.subr.mxu0 0.0
    %484 = vmatpush2.msra.mxu0 0.0
    %485 = vmatprep.subr.mxu0 0.0
    %486 = vmatpush2.msra.mxu0 0.0
    %487 = vmatprep.subr.mxu0 0.0
    %488 = vmatpush2.msra.mxu0 0.0
    %489 = vmatprep.subr.mxu0 0.0
    %490 = vmatpush2.msra.mxu0 0.0
    %491 = vmatprep.subr.mxu0 0.0
    %492 = vmatpush2.msra.mxu0 0.0
    %493 = vmatprep.subr.mxu0 0.0
    %494 = vmatpush2.msra.mxu0 0.0
    %495 = vmatprep.subr.mxu0 0.0
    %496 = vmatpush2.msra.mxu0 0.0
    %497 = vmatprep.subr.mxu0 0.0
    %498 = vmatpush2.msra.mxu0 0.0
    %499 = vmatprep.mubr.f32.mxu0 0.0
    %500 = vmatmul.mubr.f32.gmra.mxu0 %v353
    %v501 = vpop.f32.mrf.mxu0
    %v502 = vadd.f32 0.0, %v501
    %v503 = vpop.f32.mrf.mxu0
    %504 = vdwg.mxu0
    %v505 = vadd.f32 %v342, %v502
    %s506 = scalar_lea.vmem %s4, 128
    %v507 = vld [vmem:[%s506] sm:$0xff]
    %v508 = vld [vmem:[%s506 + $0x8] sm:$0xff]
    %v509 = vld [vmem:[%s506 + $0x10] sm:$0xff]
    %v510 = vld [vmem:[%s506 + $0x18] sm:$0xff]
    %v511 = vld [vmem:[%s506 + $0x20] sm:$0xff]
    %v512 = vld [vmem:[%s506 + $0x28] sm:$0xff]
    %v513 = vld [vmem:[%s506 + $0x30] sm:$0xff]
    %v514 = vld [vmem:[%s506 + $0x38] sm:$0xff]
    %v515 = vrot.slane %v165, 4
    %v516 = vsel %vm177, %v515, 0
    %518 = vmatprep.subr.mxu0 0.0
    %519 = vmatpush1.msra.mxu0 0.0
    %520 = vmatprep.subr.mxu0 0.0
    %521 = vmatpush1.msra.mxu0 0.0
    %522 = vmatprep.subr.mxu0 0.0
    %523 = vmatpush1.msra.mxu0 0.0
    %524 = vmatprep.subr.mxu0 0.0
    %525 = vmatpush1.msra.mxu0 0.0
    %526 = vmatprep.subr.mxu0 0.0
    %527 = vmatpush1.msra.mxu0 0.0
    %528 = vmatprep.subr.mxu0 0.0
    %529 = vmatpush1.msra.mxu0 0.0
    %530 = vmatprep.subr.mxu0 0.0
    %531 = vmatpush1.msra.mxu0 0.0
    %532 = vmatprep.subr.mxu0 0.0
    %533 = vmatpush1.msra.mxu0 0.0
    %534 = vmatprep.subr.mxu0 0.0
    %535 = vmatpush1.msra.mxu0 %v514
    %536 = vmatprep.subr.mxu0 0.0
    %537 = vmatpush1.msra.mxu0 %v513
    %538 = vmatprep.subr.mxu0 0.0
    %539 = vmatpush1.msra.mxu0 %v512
    %540 = vmatprep.subr.mxu0 0.0
    %541 = vmatpush1.msra.mxu0 %v511
    %542 = vmatprep.subr.mxu0 0.0
    %543 = vmatpush1.msra.mxu0 %v510
    %544 = vmatprep.subr.mxu0 0.0
    %545 = vmatpush1.msra.mxu0 %v509
    %546 = vmatprep.subr.mxu0 0.0
    %547 = vmatpush1.msra.mxu0 %v508
    %548 = vmatprep.subr.mxu0 0.0
    %549 = vmatpush1.msra.mxu0 %v507
    %550 = vmatprep.subr.mxu0 0.0
    %551 = vmatpush2.msra.mxu0 0.0
    %552 = vmatprep.subr.mxu0 0.0
    %553 = vmatpush2.msra.mxu0 0.0
    %554 = vmatprep.subr.mxu0 0.0
    %555 = vmatpush2.msra.mxu0 0.0
    %556 = vmatprep.subr.mxu0 0.0
    %557 = vmatpush2.msra.mxu0 0.0
    %558 = vmatprep.subr.mxu0 0.0
    %559 = vmatpush2.msra.mxu0 0.0
    %560 = vmatprep.subr.mxu0 0.0
    %561 = vmatpush2.msra.mxu0 0.0
    %562 = vmatprep.subr.mxu0 0.0
    %563 = vmatpush2.msra.mxu0 0.0
    %564 = vmatprep.subr.mxu0 0.0
    %565 = vmatpush2.msra.mxu0 0.0
    %566 = vmatprep.subr.mxu0 0.0
    %567 = vmatpush2.msra.mxu0 0.0
    %568 = vmatprep.subr.mxu0 0.0
    %569 = vmatpush2.msra.mxu0 0.0
    %570 = vmatprep.subr.mxu0 0.0
    %571 = vmatpush2.msra.mxu0 0.0
    %572 = vmatprep.subr.mxu0 0.0
    %573 = vmatpush2.msra.mxu0 0.0
    %574 = vmatprep.subr.mxu0 0.0
    %575 = vmatpush2.msra.mxu0 0.0
    %576 = vmatprep.subr.mxu0 0.0
    %577 = vmatpush2.msra.mxu0 0.0
    %578 = vmatprep.subr.mxu0 0.0
    %579 = vmatpush2.msra.mxu0 0.0
    %580 = vmatprep.subr.mxu0 0.0
    %581 = vmatpush2.msra.mxu0 0.0
    %582 = vmatprep.mubr.f32.mxu0 0.0
    %583 = vmatmul.mubr.f32.gmra.mxu0 %v516
    %v584 = vpop.f32.mrf.mxu0
    %v585 = vadd.f32 0.0, %v584
    %v586 = vpop.f32.mrf.mxu0
    %587 = vdwg.mxu0
    %v588 = vadd.f32 %v425, %v585
    %s589 = scalar_lea.vmem %s6, 128
    %v590 = vld [vmem:[%s589] sm:$0xff]
    %v591 = vld [vmem:[%s589 + $0x8] sm:$0xff]
    %v592 = vld [vmem:[%s589 + $0x10] sm:$0xff]
    %v593 = vld [vmem:[%s589 + $0x18] sm:$0xff]
    %v594 = vld [vmem:[%s589 + $0x20] sm:$0xff]
    %v595 = vld [vmem:[%s589 + $0x28] sm:$0xff]
    %v596 = vld [vmem:[%s589 + $0x30] sm:$0xff]
    %v597 = vld [vmem:[%s589 + $0x38] sm:$0xff]
    %598 = vmatprep.subr.mxu0 0.0
    %599 = vmatpush1.msra.mxu0 0.0
    %600 = vmatprep.subr.mxu0 0.0
    %601 = vmatpush1.msra.mxu0 0.0
    %602 = vmatprep.subr.mxu0 0.0
    %603 = vmatpush1.msra.mxu0 0.0
    %604 = vmatprep.subr.mxu0 0.0
    %605 = vmatpush1.msra.mxu0 0.0
    %606 = vmatprep.subr.mxu0 0.0
    %607 = vmatpush1.msra.mxu0 0.0
    %608 = vmatprep.subr.mxu0 0.0
    %609 = vmatpush1.msra.mxu0 0.0
    %610 = vmatprep.subr.mxu0 0.0
    %611 = vmatpush1.msra.mxu0 0.0
    %612 = vmatprep.subr.mxu0 0.0
    %613 = vmatpush1.msra.mxu0 0.0
    %614 = vmatprep.subr.mxu0 0.0
    %615 = vmatpush1.msra.mxu0 %v597
    %616 = vmatprep.subr.mxu0 0.0
    %617 = vmatpush1.msra.mxu0 %v596
    %618 = vmatprep.subr.mxu0 0.0
    %619 = vmatpush1.msra.mxu0 %v595
    %620 = vmatprep.subr.mxu0 0.0
    %621 = vmatpush1.msra.mxu0 %v594
    %622 = vmatprep.subr.mxu0 0.0
    %623 = vmatpush1.msra.mxu0 %v593
    %624 = vmatprep.subr.mxu0 0.0
    %625 = vmatpush1.msra.mxu0 %v592
    %626 = vmatprep.subr.mxu0 0.0
    %627 = vmatpush1.msra.mxu0 %v591
    %628 = vmatprep.subr.mxu0 0.0
    %629 = vmatpush1.msra.mxu0 %v590
    %630 = vmatprep.subr.mxu0 0.0
    %631 = vmatpush2.msra.mxu0 0.0
    %632 = vmatprep.subr.mxu0 0.0
    %633 = vmatpush2.msra.mxu0 0.0
    %634 = vmatprep.subr.mxu0 0.0
    %635 = vmatpush2.msra.mxu0 0.0
    %636 = vmatprep.subr.mxu0 0.0
    %637 = vmatpush2.msra.mxu0 0.0
    %638 = vmatprep.subr.mxu0 0.0
    %639 = vmatpush2.msra.mxu0 0.0
    %640 = vmatprep.subr.mxu0 0.0
    %641 = vmatpush2.msra.mxu0 0.0
    %642 = vmatprep.subr.mxu0 0.0
    %643 = vmatpush2.msra.mxu0 0.0
    %644 = vmatprep.subr.mxu0 0.0
    %645 = vmatpush2.msra.mxu0 0.0
    %646 = vmatprep.subr.mxu0 0.0
    %647 = vmatpush2.msra.mxu0 0.0
    %648 = vmatprep.subr.mxu0 0.0
    %649 = vmatpush2.msra.mxu0 0.0
    %650 = vmatprep.subr.mxu0 0.0
    %651 = vmatpush2.msra.mxu0 0.0
    %652 = vmatprep.subr.mxu0 0.0
    %653 = vmatpush2.msra.mxu0 0.0
    %654 = vmatprep.subr.mxu0 0.0
    %655 = vmatpush2.msra.mxu0 0.0
    %656 = vmatprep.subr.mxu0 0.0
    %657 = vmatpush2.msra.mxu0 0.0
    %658 = vmatprep.subr.mxu0 0.0
    %659 = vmatpush2.msra.mxu0 0.0
    %660 = vmatprep.subr.mxu0 0.0
    %661 = vmatpush2.msra.mxu0 0.0
    %662 = vmatprep.mubr.f32.mxu0 0.0
    %663 = vmatmul.mubr.f32.gmra.mxu0 %v516
    %v664 = vpop.f32.mrf.mxu0
    %v665 = vadd.f32 0.0, %v664
    %v666 = vpop.f32.mrf.mxu0
    %667 = vdwg.mxu0
    %v668 = vadd.f32 %v505, %v665
    %s669 = scalar_lea.vmem %s4, 192
    %v670 = vld [vmem:[%s669] sm:$0xff]
    %v671 = vld [vmem:[%s669 + $0x8] sm:$0xff]
    %v672 = vld [vmem:[%s669 + $0x10] sm:$0xff]
    %v673 = vld [vmem:[%s669 + $0x18] sm:$0xff]
    %v674 = vld [vmem:[%s669 + $0x20] sm:$0xff]
    %v675 = vld [vmem:[%s669 + $0x28] sm:$0xff]
    %v676 = vld [vmem:[%s669 + $0x30] sm:$0xff]
    %v677 = vld [vmem:[%s669 + $0x38] sm:$0xff]
    %v678 = vrot.slane %v165, 6
    %v679 = vsel %vm177, %v678, 0
    %681 = vmatprep.subr.mxu0 0.0
    %682 = vmatpush1.msra.mxu0 0.0
    %683 = vmatprep.subr.mxu0 0.0
    %684 = vmatpush1.msra.mxu0 0.0
    %685 = vmatprep.subr.mxu0 0.0
    %686 = vmatpush1.msra.mxu0 0.0
    %687 = vmatprep.subr.mxu0 0.0
    %688 = vmatpush1.msra.mxu0 0.0
    %689 = vmatprep.subr.mxu0 0.0
    %690 = vmatpush1.msra.mxu0 0.0
    %691 = vmatprep.subr.mxu0 0.0
    %692 = vmatpush1.msra.mxu0 0.0
    %693 = vmatprep.subr.mxu0 0.0
    %694 = vmatpush1.msra.mxu0 0.0
    %695 = vmatprep.subr.mxu0 0.0
    %696 = vmatpush1.msra.mxu0 0.0
    %697 = vmatprep.subr.mxu0 0.0
    %698 = vmatpush1.msra.mxu0 %v677
    %699 = vmatprep.subr.mxu0 0.0
    %700 = vmatpush1.msra.mxu0 %v676
    %701 = vmatprep.subr.mxu0 0.0
    %702 = vmatpush1.msra.mxu0 %v675
    %703 = vmatprep.subr.mxu0 0.0
    %704 = vmatpush1.msra.mxu0 %v674
    %705 = vmatprep.subr.mxu0 0.0
    %706 = vmatpush1.msra.mxu0 %v673
    %707 = vmatprep.subr.mxu0 0.0
    %708 = vmatpush1.msra.mxu0 %v672
    %709 = vmatprep.subr.mxu0 0.0
    %710 = vmatpush1.msra.mxu0 %v671
    %711 = vmatprep.subr.mxu0 0.0
    %712 = vmatpush1.msra.mxu0 %v670
    %713 = vmatprep.subr.mxu0 0.0
    %714 = vmatpush2.msra.mxu0 0.0
    %715 = vmatprep.subr.mxu0 0.0
    %716 = vmatpush2.msra.mxu0 0.0
    %717 = vmatprep.subr.mxu0 0.0
    %718 = vmatpush2.msra.mxu0 0.0
    %719 = vmatprep.subr.mxu0 0.0
    %720 = vmatpush2.msra.mxu0 0.0
    %721 = vmatprep.subr.mxu0 0.0
    %722 = vmatpush2.msra.mxu0 0.0
    %723 = vmatprep.subr.mxu0 0.0
    %724 = vmatpush2.msra.mxu0 0.0
    %725 = vmatprep.subr.mxu0 0.0
    %726 = vmatpush2.msra.mxu0 0.0
    %727 = vmatprep.subr.mxu0 0.0
    %728 = vmatpush2.msra.mxu0 0.0
    %729 = vmatprep.subr.mxu0 0.0
    %730 = vmatpush2.msra.mxu0 0.0
    %731 = vmatprep.subr.mxu0 0.0
    %732 = vmatpush2.msra.mxu0 0.0
    %733 = vmatprep.subr.mxu0 0.0
    %734 = vmatpush2.msra.mxu0 0.0
    %735 = vmatprep.subr.mxu0 0.0
    %736 = vmatpush2.msra.mxu0 0.0
    %737 = vmatprep.subr.mxu0 0.0
    %738 = vmatpush2.msra.mxu0 0.0
    %739 = vmatprep.subr.mxu0 0.0
    %740 = vmatpush2.msra.mxu0 0.0
    %741 = vmatprep.subr.mxu0 0.0
    %742 = vmatpush2.msra.mxu0 0.0
    %743 = vmatprep.subr.mxu0 0.0
    %744 = vmatpush2.msra.mxu0 0.0
    %745 = vmatprep.mubr.f32.mxu0 0.0
    %746 = vmatmul.mubr.f32.gmra.mxu0 %v679
    %v747 = vpop.f32.mrf.mxu0
    %v748 = vadd.f32 0.0, %v747
    %v749 = vpop.f32.mrf.mxu0
    %750 = vdwg.mxu0
    %v751 = vadd.f32 %v588, %v748
    %s752 = scalar_lea.vmem %s6, 192
    %v753 = vld [vmem:[%s752] sm:$0xff]
    %v754 = vld [vmem:[%s752 + $0x8] sm:$0xff]
    %v755 = vld [vmem:[%s752 + $0x10] sm:$0xff]
    %v756 = vld [vmem:[%s752 + $0x18] sm:$0xff]
    %v757 = vld [vmem:[%s752 + $0x20] sm:$0xff]
    %v758 = vld [vmem:[%s752 + $0x28] sm:$0xff]
    %v759 = vld [vmem:[%s752 + $0x30] sm:$0xff]
    %v760 = vld [vmem:[%s752 + $0x38] sm:$0xff]
    %761 = vmatprep.subr.mxu0 0.0
    %762 = vmatpush1.msra.mxu0 0.0
    %763 = vmatprep.subr.mxu0 0.0
    %764 = vmatpush1.msra.mxu0 0.0
    %765 = vmatprep.subr.mxu0 0.0
    %766 = vmatpush1.msra.mxu0 0.0
    %767 = vmatprep.subr.mxu0 0.0
    %768 = vmatpush1.msra.mxu0 0.0
    %769 = vmatprep.subr.mxu0 0.0
    %770 = vmatpush1.msra.mxu0 0.0
    %771 = vmatprep.subr.mxu0 0.0
    %772 = vmatpush1.msra.mxu0 0.0
    %773 = vmatprep.subr.mxu0 0.0
    %774 = vmatpush1.msra.mxu0 0.0
    %775 = vmatprep.subr.mxu0 0.0
    %776 = vmatpush1.msra.mxu0 0.0
    %777 = vmatprep.subr.mxu0 0.0
    %778 = vmatpush1.msra.mxu0 %v760
    %779 = vmatprep.subr.mxu0 0.0
    %780 = vmatpush1.msra.mxu0 %v759
    %781 = vmatprep.subr.mxu0 0.0
    %782 = vmatpush1.msra.mxu0 %v758
    %783 = vmatprep.subr.mxu0 0.0
    %784 = vmatpush1.msra.mxu0 %v757
    %785 = vmatprep.subr.mxu0 0.0
    %786 = vmatpush1.msra.mxu0 %v756
    %787 = vmatprep.subr.mxu0 0.0
    %788 = vmatpush1.msra.mxu0 %v755
    %789 = vmatprep.subr.mxu0 0.0
    %790 = vmatpush1.msra.mxu0 %v754
    %791 = vmatprep.subr.mxu0 0.0
    %792 = vmatpush1.msra.mxu0 %v753
    %793 = vmatprep.subr.mxu0 0.0
    %794 = vmatpush2.msra.mxu0 0.0
    %795 = vmatprep.subr.mxu0 0.0
    %796 = vmatpush2.msra.mxu0 0.0
    %797 = vmatprep.subr.mxu0 0.0
    %798 = vmatpush2.msra.mxu0 0.0
    %799 = vmatprep.subr.mxu0 0.0
    %800 = vmatpush2.msra.mxu0 0.0
    %801 = vmatprep.subr.mxu0 0.0
    %802 = vmatpush2.msra.mxu0 0.0
    %803 = vmatprep.subr.mxu0 0.0
    %804 = vmatpush2.msra.mxu0 0.0
    %805 = vmatprep.subr.mxu0 0.0
    %806 = vmatpush2.msra.mxu0 0.0
    %807 = vmatprep.subr.mxu0 0.0
    %808 = vmatpush2.msra.mxu0 0.0
    %809 = vmatprep.subr.mxu0 0.0
    %810 = vmatpush2.msra.mxu0 0.0
    %811 = vmatprep.subr.mxu0 0.0
    %812 = vmatpush2.msra.mxu0 0.0
    %813 = vmatprep.subr.mxu0 0.0
    %814 = vmatpush2.msra.mxu0 0.0
    %815 = vmatprep.subr.mxu0 0.0
    %816 = vmatpush2.msra.mxu0 0.0
    %817 = vmatprep.subr.mxu0 0.0
    %818 = vmatpush2.msra.mxu0 0.0
    %819 = vmatprep.subr.mxu0 0.0
    %820 = vmatpush2.msra.mxu0 0.0
    %821 = vmatprep.subr.mxu0 0.0
    %822 = vmatpush2.msra.mxu0 0.0
    %823 = vmatprep.subr.mxu0 0.0
    %824 = vmatpush2.msra.mxu0 0.0
    %825 = vmatprep.mubr.f32.mxu0 0.0
    %826 = vmatmul.mubr.f32.gmra.mxu0 %v679
    %v827 = vpop.f32.mrf.mxu0
    %v828 = vadd.f32 0.0, %v827
    %v829 = vpop.f32.mrf.mxu0
    %830 = vdwg.mxu0
    %v831 = vadd.f32 %v668, %v828
    %s832 = scalar_lea.vmem %s4, 256
    %v833 = vld [vmem:[%s832] sm:$0xff]
    %v834 = vld [vmem:[%s832 + $0x8] sm:$0xff]
    %v835 = vld [vmem:[%s832 + $0x10] sm:$0xff]
    %v836 = vld [vmem:[%s832 + $0x18] sm:$0xff]
    %v837 = vld [vmem:[%s832 + $0x20] sm:$0xff]
    %v838 = vld [vmem:[%s832 + $0x28] sm:$0xff]
    %v839 = vld [vmem:[%s832 + $0x30] sm:$0xff]
    %v840 = vld [vmem:[%s832 + $0x38] sm:$0xff]
    %v842 = vsel %vm177, %v166, 0
    %844 = vmatprep.subr.mxu0 0.0
    %845 = vmatpush1.msra.mxu0 0.0
    %846 = vmatprep.subr.mxu0 0.0
    %847 = vmatpush1.msra.mxu0 0.0
    %848 = vmatprep.subr.mxu0 0.0
    %849 = vmatpush1.msra.mxu0 0.0
    %850 = vmatprep.subr.mxu0 0.0
    %851 = vmatpush1.msra.mxu0 0.0
    %852 = vmatprep.subr.mxu0 0.0
    %853 = vmatpush1.msra.mxu0 0.0
    %854 = vmatprep.subr.mxu0 0.0
    %855 = vmatpush1.msra.mxu0 0.0
    %856 = vmatprep.subr.mxu0 0.0
    %857 = vmatpush1.msra.mxu0 0.0
    %858 = vmatprep.subr.mxu0 0.0
    %859 = vmatpush1.msra.mxu0 0.0
    %860 = vmatprep.subr.mxu0 0.0
    %861 = vmatpush1.msra.mxu0 %v840
    %862 = vmatprep.subr.mxu0 0.0
    %863 = vmatpush1.msra.mxu0 %v839
    %864 = vmatprep.subr.mxu0 0.0
    %865 = vmatpush1.msra.mxu0 %v838
    %866 = vmatprep.subr.mxu0 0.0
    %867 = vmatpush1.msra.mxu0 %v837
    %868 = vmatprep.subr.mxu0 0.0
    %869 = vmatpush1.msra.mxu0 %v836
    %870 = vmatprep.subr.mxu0 0.0
    %871 = vmatpush1.msra.mxu0 %v835
    %872 = vmatprep.subr.mxu0 0.0
    %873 = vmatpush1.msra.mxu0 %v834
    %874 = vmatprep.subr.mxu0 0.0
    %875 = vmatpush1.msra.mxu0 %v833
    %876 = vmatprep.subr.mxu0 0.0
    %877 = vmatpush2.msra.mxu0 0.0
    %878 = vmatprep.subr.mxu0 0.0
    %879 = vmatpush2.msra.mxu0 0.0
    %880 = vmatprep.subr.mxu0 0.0
    %881 = vmatpush2.msra.mxu0 0.0
    %882 = vmatprep.subr.mxu0 0.0
    %883 = vmatpush2.msra.mxu0 0.0
    %884 = vmatprep.subr.mxu0 0.0
    %885 = vmatpush2.msra.mxu0 0.0
    %886 = vmatprep.subr.mxu0 0.0
    %887 = vmatpush2.msra.mxu0 0.0
    %888 = vmatprep.subr.mxu0 0.0
    %889 = vmatpush2.msra.mxu0 0.0
    %890 = vmatprep.subr.mxu0 0.0
    %891 = vmatpush2.msra.mxu0 0.0
    %892 = vmatprep.subr.mxu0 0.0
    %893 = vmatpush2.msra.mxu0 0.0
    %894 = vmatprep.subr.mxu0 0.0
    %895 = vmatpush2.msra.mxu0 0.0
    %896 = vmatprep.subr.mxu0 0.0
    %897 = vmatpush2.msra.mxu0 0.0
    %898 = vmatprep.subr.mxu0 0.0
    %899 = vmatpush2.msra.mxu0 0.0
    %900 = vmatprep.subr.mxu0 0.0
    %901 = vmatpush2.msra.mxu0 0.0
    %902 = vmatprep.subr.mxu0 0.0
    %903 = vmatpush2.msra.mxu0 0.0
    %904 = vmatprep.subr.mxu0 0.0
    %905 = vmatpush2.msra.mxu0 0.0
    %906 = vmatprep.subr.mxu0 0.0
    %907 = vmatpush2.msra.mxu0 0.0
    %908 = vmatprep.mubr.f32.mxu0 0.0
    %909 = vmatmul.mubr.f32.gmra.mxu0 %v842
    %v910 = vpop.f32.mrf.mxu0
    %v911 = vadd.f32 0.0, %v910
    %v912 = vpop.f32.mrf.mxu0
    %913 = vdwg.mxu0
    %v914 = vadd.f32 %v751, %v911
    %s915 = scalar_lea.vmem %s6, 256
    %v916 = vld [vmem:[%s915] sm:$0xff]
    %v917 = vld [vmem:[%s915 + $0x8] sm:$0xff]
    %v918 = vld [vmem:[%s915 + $0x10] sm:$0xff]
    %v919 = vld [vmem:[%s915 + $0x18] sm:$0xff]
    %v920 = vld [vmem:[%s915 + $0x20] sm:$0xff]
    %v921 = vld [vmem:[%s915 + $0x28] sm:$0xff]
    %v922 = vld [vmem:[%s915 + $0x30] sm:$0xff]
    %v923 = vld [vmem:[%s915 + $0x38] sm:$0xff]
    %924 = vmatprep.subr.mxu0 0.0
    %925 = vmatpush1.msra.mxu0 0.0
    %926 = vmatprep.subr.mxu0 0.0
    %927 = vmatpush1.msra.mxu0 0.0
    %928 = vmatprep.subr.mxu0 0.0
    %929 = vmatpush1.msra.mxu0 0.0
    %930 = vmatprep.subr.mxu0 0.0
    %931 = vmatpush1.msra.mxu0 0.0
    %932 = vmatprep.subr.mxu0 0.0
    %933 = vmatpush1.msra.mxu0 0.0
    %934 = vmatprep.subr.mxu0 0.0
    %935 = vmatpush1.msra.mxu0 0.0
    %936 = vmatprep.subr.mxu0 0.0
    %937 = vmatpush1.msra.mxu0 0.0
    %938 = vmatprep.subr.mxu0 0.0
    %939 = vmatpush1.msra.mxu0 0.0
    %940 = vmatprep.subr.mxu0 0.0
    %941 = vmatpush1.msra.mxu0 %v923
    %942 = vmatprep.subr.mxu0 0.0
    %943 = vmatpush1.msra.mxu0 %v922
    %944 = vmatprep.subr.mxu0 0.0
    %945 = vmatpush1.msra.mxu0 %v921
    %946 = vmatprep.subr.mxu0 0.0
    %947 = vmatpush1.msra.mxu0 %v920
    %948 = vmatprep.subr.mxu0 0.0
    %949 = vmatpush1.msra.mxu0 %v919
    %950 = vmatprep.subr.mxu0 0.0
    %951 = vmatpush1.msra.mxu0 %v918
    %952 = vmatprep.subr.mxu0 0.0
    %953 = vmatpush1.msra.mxu0 %v917
    %954 = vmatprep.subr.mxu0 0.0
    %955 = vmatpush1.msra.mxu0 %v916
    %956 = vmatprep.subr.mxu0 0.0
    %957 = vmatpush2.msra.mxu0 0.0
    %958 = vmatprep.subr.mxu0 0.0
    %959 = vmatpush2.msra.mxu0 0.0
    %960 = vmatprep.subr.mxu0 0.0
    %961 = vmatpush2.msra.mxu0 0.0
    %962 = vmatprep.subr.mxu0 0.0
    %963 = vmatpush2.msra.mxu0 0.0
    %964 = vmatprep.subr.mxu0 0.0
    %965 = vmatpush2.msra.mxu0 0.0
    %966 = vmatprep.subr.mxu0 0.0
    %967 = vmatpush2.msra.mxu0 0.0
    %968 = vmatprep.subr.mxu0 0.0
    %969 = vmatpush2.msra.mxu0 0.0
    %970 = vmatprep.subr.mxu0 0.0
    %971 = vmatpush2.msra.mxu0 0.0
    %972 = vmatprep.subr.mxu0 0.0
    %973 = vmatpush2.msra.mxu0 0.0
    %974 = vmatprep.subr.mxu0 0.0
    %975 = vmatpush2.msra.mxu0 0.0
    %976 = vmatprep.subr.mxu0 0.0
    %977 = vmatpush2.msra.mxu0 0.0
    %978 = vmatprep.subr.mxu0 0.0
    %979 = vmatpush2.msra.mxu0 0.0
    %980 = vmatprep.subr.mxu0 0.0
    %981 = vmatpush2.msra.mxu0 0.0
    %982 = vmatprep.subr.mxu0 0.0
    %983 = vmatpush2.msra.mxu0 0.0
    %984 = vmatprep.subr.mxu0 0.0
    %985 = vmatpush2.msra.mxu0 0.0
    %986 = vmatprep.subr.mxu0 0.0
    %987 = vmatpush2.msra.mxu0 0.0
    %988 = vmatprep.mubr.f32.mxu0 0.0
    %989 = vmatmul.mubr.f32.gmra.mxu0 %v842
    %v990 = vpop.f32.mrf.mxu0
    %v991 = vadd.f32 0.0, %v990
    %v992 = vpop.f32.mrf.mxu0
    %993 = vdwg.mxu0
    %v994 = vadd.f32 %v831, %v991
    %s995 = scalar_lea.vmem %s4, 320
    %v996 = vld [vmem:[%s995] sm:$0xff]
    %v997 = vld [vmem:[%s995 + $0x8] sm:$0xff]
    %v998 = vld [vmem:[%s995 + $0x10] sm:$0xff]
    %v999 = vld [vmem:[%s995 + $0x18] sm:$0xff]
    %v1000 = vld [vmem:[%s995 + $0x20] sm:$0xff]
    %v1001 = vld [vmem:[%s995 + $0x28] sm:$0xff]
    %v1002 = vld [vmem:[%s995 + $0x30] sm:$0xff]
    %v1003 = vld [vmem:[%s995 + $0x38] sm:$0xff]
    %v1004 = vrot.slane %v166, 2
    %v1005 = vsel %vm177, %v1004, 0
    %1007 = vmatprep.subr.mxu0 0.0
    %1008 = vmatpush1.msra.mxu0 0.0
    %1009 = vmatprep.subr.mxu0 0.0
    %1010 = vmatpush1.msra.mxu0 0.0
    %1011 = vmatprep.subr.mxu0 0.0
    %1012 = vmatpush1.msra.mxu0 0.0
    %1013 = vmatprep.subr.mxu0 0.0
    %1014 = vmatpush1.msra.mxu0 0.0
    %1015 = vmatprep.subr.mxu0 0.0
    %1016 = vmatpush1.msra.mxu0 0.0
    %1017 = vmatprep.subr.mxu0 0.0
    %1018 = vmatpush1.msra.mxu0 0.0
    %1019 = vmatprep.subr.mxu0 0.0
    %1020 = vmatpush1.msra.mxu0 0.0
    %1021 = vmatprep.subr.mxu0 0.0
    %1022 = vmatpush1.msra.mxu0 0.0
    %1023 = vmatprep.subr.mxu0 0.0
    %1024 = vmatpush1.msra.mxu0 %v1003
    %1025 = vmatprep.subr.mxu0 0.0
    %1026 = vmatpush1.msra.mxu0 %v1002
    %1027 = vmatprep.subr.mxu0 0.0
    %1028 = vmatpush1.msra.mxu0 %v1001
    %1029 = vmatprep.subr.mxu0 0.0
    %1030 = vmatpush1.msra.mxu0 %v1000
    %1031 = vmatprep.subr.mxu0 0.0
    %1032 = vmatpush1.msra.mxu0 %v999
    %1033 = vmatprep.subr.mxu0 0.0
    %1034 = vmatpush1.msra.mxu0 %v998
    %1035 = vmatprep.subr.mxu0 0.0
    %1036 = vmatpush1.msra.mxu0 %v997
    %1037 = vmatprep.subr.mxu0 0.0
    %1038 = vmatpush1.msra.mxu0 %v996
    %1039 = vmatprep.subr.mxu0 0.0
    %1040 = vmatpush2.msra.mxu0 0.0
    %1041 = vmatprep.subr.mxu0 0.0
    %1042 = vmatpush2.msra.mxu0 0.0
    %1043 = vmatprep.subr.mxu0 0.0
    %1044 = vmatpush2.msra.mxu0 0.0
    %1045 = vmatprep.subr.mxu0 0.0
    %1046 = vmatpush2.msra.mxu0 0.0
    %1047 = vmatprep.subr.mxu0 0.0
    %1048 = vmatpush2.msra.mxu0 0.0
    %1049 = vmatprep.subr.mxu0 0.0
    %1050 = vmatpush2.msra.mxu0 0.0
    %1051 = vmatprep.subr.mxu0 0.0
    %1052 = vmatpush2.msra.mxu0 0.0
    %1053 = vmatprep.subr.mxu0 0.0
    %1054 = vmatpush2.msra.mxu0 0.0
    %1055 = vmatprep.subr.mxu0 0.0
    %1056 = vmatpush2.msra.mxu0 0.0
    %1057 = vmatprep.subr.mxu0 0.0
    %1058 = vmatpush2.msra.mxu0 0.0
    %1059 = vmatprep.subr.mxu0 0.0
    %1060 = vmatpush2.msra.mxu0 0.0
    %1061 = vmatprep.subr.mxu0 0.0
    %1062 = vmatpush2.msra.mxu0 0.0
    %1063 = vmatprep.subr.mxu0 0.0
    %1064 = vmatpush2.msra.mxu0 0.0
    %1065 = vmatprep.subr.mxu0 0.0
    %1066 = vmatpush2.msra.mxu0 0.0
    %1067 = vmatprep.subr.mxu0 0.0
    %1068 = vmatpush2.msra.mxu0 0.0
    %1069 = vmatprep.subr.mxu0 0.0
    %1070 = vmatpush2.msra.mxu0 0.0
    %1071 = vmatprep.mubr.f32.mxu0 0.0
    %1072 = vmatmul.mubr.f32.gmra.mxu0 %v1005
    %v1073 = vpop.f32.mrf.mxu0
    %v1074 = vadd.f32 0.0, %v1073
    %v1075 = vpop.f32.mrf.mxu0
    %1076 = vdwg.mxu0
    %v1077 = vadd.f32 %v914, %v1074
    %s1078 = scalar_lea.vmem %s6, 320
    %v1079 = vld [vmem:[%s1078] sm:$0xff]
    %v1080 = vld [vmem:[%s1078 + $0x8] sm:$0xff]
    %v1081 = vld [vmem:[%s1078 + $0x10] sm:$0xff]
    %v1082 = vld [vmem:[%s1078 + $0x18] sm:$0xff]
    %v1083 = vld [vmem:[%s1078 + $0x20] sm:$0xff]
    %v1084 = vld [vmem:[%s1078 + $0x28] sm:$0xff]
    %v1085 = vld [vmem:[%s1078 + $0x30] sm:$0xff]
    %v1086 = vld [vmem:[%s1078 + $0x38] sm:$0xff]
    %1087 = vmatprep.subr.mxu0 0.0
    %1088 = vmatpush1.msra.mxu0 0.0
    %1089 = vmatprep.subr.mxu0 0.0
    %1090 = vmatpush1.msra.mxu0 0.0
    %1091 = vmatprep.subr.mxu0 0.0
    %1092 = vmatpush1.msra.mxu0 0.0
    %1093 = vmatprep.subr.mxu0 0.0
    %1094 = vmatpush1.msra.mxu0 0.0
    %1095 = vmatprep.subr.mxu0 0.0
    %1096 = vmatpush1.msra.mxu0 0.0
    %1097 = vmatprep.subr.mxu0 0.0
    %1098 = vmatpush1.msra.mxu0 0.0
    %1099 = vmatprep.subr.mxu0 0.0
    %1100 = vmatpush1.msra.mxu0 0.0
    %1101 = vmatprep.subr.mxu0 0.0
    %1102 = vmatpush1.msra.mxu0 0.0
    %1103 = vmatprep.subr.mxu0 0.0
    %1104 = vmatpush1.msra.mxu0 %v1086
    %1105 = vmatprep.subr.mxu0 0.0
    %1106 = vmatpush1.msra.mxu0 %v1085
    %1107 = vmatprep.subr.mxu0 0.0
    %1108 = vmatpush1.msra.mxu0 %v1084
    %1109 = vmatprep.subr.mxu0 0.0
    %1110 = vmatpush1.msra.mxu0 %v1083
    %1111 = vmatprep.subr.mxu0 0.0
    %1112 = vmatpush1.msra.mxu0 %v1082
    %1113 = vmatprep.subr.mxu0 0.0
    %1114 = vmatpush1.msra.mxu0 %v1081
    %1115 = vmatprep.subr.mxu0 0.0
    %1116 = vmatpush1.msra.mxu0 %v1080
    %1117 = vmatprep.subr.mxu0 0.0
    %1118 = vmatpush1.msra.mxu0 %v1079
    %1119 = vmatprep.subr.mxu0 0.0
    %1120 = vmatpush2.msra.mxu0 0.0
    %1121 = vmatprep.subr.mxu0 0.0
    %1122 = vmatpush2.msra.mxu0 0.0
    %1123 = vmatprep.subr.mxu0 0.0
    %1124 = vmatpush2.msra.mxu0 0.0
    %1125 = vmatprep.subr.mxu0 0.0
    %1126 = vmatpush2.msra.mxu0 0.0
    %1127 = vmatprep.subr.mxu0 0.0
    %1128 = vmatpush2.msra.mxu0 0.0
    %1129 = vmatprep.subr.mxu0 0.0
    %1130 = vmatpush2.msra.mxu0 0.0
    %1131 = vmatprep.subr.mxu0 0.0
    %1132 = vmatpush2.msra.mxu0 0.0
    %1133 = vmatprep.subr.mxu0 0.0
    %1134 = vmatpush2.msra.mxu0 0.0
    %1135 = vmatprep.subr.mxu0 0.0
    %1136 = vmatpush2.msra.mxu0 0.0
    %1137 = vmatprep.subr.mxu0 0.0
    %1138 = vmatpush2.msra.mxu0 0.0
    %1139 = vmatprep.subr.mxu0 0.0
    %1140 = vmatpush2.msra.mxu0 0.0
    %1141 = vmatprep.subr.mxu0 0.0
    %1142 = vmatpush2.msra.mxu0 0.0
    %1143 = vmatprep.subr.mxu0 0.0
    %1144 = vmatpush2.msra.mxu0 0.0
    %1145 = vmatprep.subr.mxu0 0.0
    %1146 = vmatpush2.msra.mxu0 0.0
    %1147 = vmatprep.subr.mxu0 0.0
    %1148 = vmatpush2.msra.mxu0 0.0
    %1149 = vmatprep.subr.mxu0 0.0
    %1150 = vmatpush2.msra.mxu0 0.0
    %1151 = vmatprep.mubr.f32.mxu0 0.0
    %1152 = vmatmul.mubr.f32.gmra.mxu0 %v1005
    %v1153 = vpop.f32.mrf.mxu0
    %v1154 = vadd.f32 0.0, %v1153
    %v1155 = vpop.f32.mrf.mxu0
    %1156 = vdwg.mxu0
    %v1157 = vadd.f32 %v994, %v1154
    %s1158 = scalar_lea.vmem %s4, 384
    %v1159 = vld [vmem:[%s1158] sm:$0xff]
    %v1160 = vld [vmem:[%s1158 + $0x8] sm:$0xff]
    %v1161 = vld [vmem:[%s1158 + $0x10] sm:$0xff]
    %v1162 = vld [vmem:[%s1158 + $0x18] sm:$0xff]
    %v1163 = vld [vmem:[%s1158 + $0x20] sm:$0xff]
    %v1164 = vld [vmem:[%s1158 + $0x28] sm:$0xff]
    %v1165 = vld [vmem:[%s1158 + $0x30] sm:$0xff]
    %v1166 = vld [vmem:[%s1158 + $0x38] sm:$0xff]
    %v1167 = vrot.slane %v166, 4
    %v1168 = vsel %vm177, %v1167, 0
    %1170 = vmatprep.subr.mxu0 0.0
    %1171 = vmatpush1.msra.mxu0 0.0
    %1172 = vmatprep.subr.mxu0 0.0
    %1173 = vmatpush1.msra.mxu0 0.0
    %1174 = vmatprep.subr.mxu0 0.0
    %1175 = vmatpush1.msra.mxu0 0.0
    %1176 = vmatprep.subr.mxu0 0.0
    %1177 = vmatpush1.msra.mxu0 0.0
    %1178 = vmatprep.subr.mxu0 0.0
    %1179 = vmatpush1.msra.mxu0 0.0
    %1180 = vmatprep.subr.mxu0 0.0
    %1181 = vmatpush1.msra.mxu0 0.0
    %1182 = vmatprep.subr.mxu0 0.0
    %1183 = vmatpush1.msra.mxu0 0.0
    %1184 = vmatprep.subr.mxu0 0.0
    %1185 = vmatpush1.msra.mxu0 0.0
    %1186 = vmatprep.subr.mxu0 0.0
    %1187 = vmatpush1.msra.mxu0 %v1166
    %1188 = vmatprep.subr.mxu0 0.0
    %1189 = vmatpush1.msra.mxu0 %v1165
    %1190 = vmatprep.subr.mxu0 0.0
    %1191 = vmatpush1.msra.mxu0 %v1164
    %1192 = vmatprep.subr.mxu0 0.0
    %1193 = vmatpush1.msra.mxu0 %v1163
    %1194 = vmatprep.subr.mxu0 0.0
    %1195 = vmatpush1.msra.mxu0 %v1162
    %1196 = vmatprep.subr.mxu0 0.0
    %1197 = vmatpush1.msra.mxu0 %v1161
    %1198 = vmatprep.subr.mxu0 0.0
    %1199 = vmatpush1.msra.mxu0 %v1160
    %1200 = vmatprep.subr.mxu0 0.0
    %1201 = vmatpush1.msra.mxu0 %v1159
    %1202 = vmatprep.subr.mxu0 0.0
    %1203 = vmatpush2.msra.mxu0 0.0
    %1204 = vmatprep.subr.mxu0 0.0
    %1205 = vmatpush2.msra.mxu0 0.0
    %1206 = vmatprep.subr.mxu0 0.0
    %1207 = vmatpush2.msra.mxu0 0.0
    %1208 = vmatprep.subr.mxu0 0.0
    %1209 = vmatpush2.msra.mxu0 0.0
    %1210 = vmatprep.subr.mxu0 0.0
    %1211 = vmatpush2.msra.mxu0 0.0
    %1212 = vmatprep.subr.mxu0 0.0
    %1213 = vmatpush2.msra.mxu0 0.0
    %1214 = vmatprep.subr.mxu0 0.0
    %1215 = vmatpush2.msra.mxu0 0.0
    %1216 = vmatprep.subr.mxu0 0.0
    %1217 = vmatpush2.msra.mxu0 0.0
    %1218 = vmatprep.subr.mxu0 0.0
    %1219 = vmatpush2.msra.mxu0 0.0
    %1220 = vmatprep.subr.mxu0 0.0
    %1221 = vmatpush2.msra.mxu0 0.0
    %1222 = vmatprep.subr.mxu0 0.0
    %1223 = vmatpush2.msra.mxu0 0.0
    %1224 = vmatprep.subr.mxu0 0.0
    %1225 = vmatpush2.msra.mxu0 0.0
    %1226 = vmatprep.subr.mxu0 0.0
    %1227 = vmatpush2.msra.mxu0 0.0
    %1228 = vmatprep.subr.mxu0 0.0
    %1229 = vmatpush2.msra.mxu0 0.0
    %1230 = vmatprep.subr.mxu0 0.0
    %1231 = vmatpush2.msra.mxu0 0.0
    %1232 = vmatprep.subr.mxu0 0.0
    %1233 = vmatpush2.msra.mxu0 0.0
    %1234 = vmatprep.mubr.f32.mxu0 0.0
    %1235 = vmatmul.mubr.f32.gmra.mxu0 %v1168
    %v1236 = vpop.f32.mrf.mxu0
    %v1237 = vadd.f32 0.0, %v1236
    %v1238 = vpop.f32.mrf.mxu0
    %1239 = vdwg.mxu0
    %v1240 = vadd.f32 %v1077, %v1237
    %s1241 = scalar_lea.vmem %s6, 384
    %v1242 = vld [vmem:[%s1241] sm:$0xff]
    %v1243 = vld [vmem:[%s1241 + $0x8] sm:$0xff]
    %v1244 = vld [vmem:[%s1241 + $0x10] sm:$0xff]
    %v1245 = vld [vmem:[%s1241 + $0x18] sm:$0xff]
    %v1246 = vld [vmem:[%s1241 + $0x20] sm:$0xff]
    %v1247 = vld [vmem:[%s1241 + $0x28] sm:$0xff]
    %v1248 = vld [vmem:[%s1241 + $0x30] sm:$0xff]
    %v1249 = vld [vmem:[%s1241 + $0x38] sm:$0xff]
    %1250 = vmatprep.subr.mxu0 0.0
    %1251 = vmatpush1.msra.mxu0 0.0
    %1252 = vmatprep.subr.mxu0 0.0
    %1253 = vmatpush1.msra.mxu0 0.0
    %1254 = vmatprep.subr.mxu0 0.0
    %1255 = vmatpush1.msra.mxu0 0.0
    %1256 = vmatprep.subr.mxu0 0.0
    %1257 = vmatpush1.msra.mxu0 0.0
    %1258 = vmatprep.subr.mxu0 0.0
    %1259 = vmatpush1.msra.mxu0 0.0
    %1260 = vmatprep.subr.mxu0 0.0
    %1261 = vmatpush1.msra.mxu0 0.0
    %1262 = vmatprep.subr.mxu0 0.0
    %1263 = vmatpush1.msra.mxu0 0.0
    %1264 = vmatprep.subr.mxu0 0.0
    %1265 = vmatpush1.msra.mxu0 0.0
    %1266 = vmatprep.subr.mxu0 0.0
    %1267 = vmatpush1.msra.mxu0 %v1249
    %1268 = vmatprep.subr.mxu0 0.0
    %1269 = vmatpush1.msra.mxu0 %v1248
    %1270 = vmatprep.subr.mxu0 0.0
    %1271 = vmatpush1.msra.mxu0 %v1247
    %1272 = vmatprep.subr.mxu0 0.0
    %1273 = vmatpush1.msra.mxu0 %v1246
    %1274 = vmatprep.subr.mxu0 0.0
    %1275 = vmatpush1.msra.mxu0 %v1245
    %1276 = vmatprep.subr.mxu0 0.0
    %1277 = vmatpush1.msra.mxu0 %v1244
    %1278 = vmatprep.subr.mxu0 0.0
    %1279 = vmatpush1.msra.mxu0 %v1243
    %1280 = vmatprep.subr.mxu0 0.0
    %1281 = vmatpush1.msra.mxu0 %v1242
    %1282 = vmatprep.subr.mxu0 0.0
    %1283 = vmatpush2.msra.mxu0 0.0
    %1284 = vmatprep.subr.mxu0 0.0
    %1285 = vmatpush2.msra.mxu0 0.0
    %1286 = vmatprep.subr.mxu0 0.0
    %1287 = vmatpush2.msra.mxu0 0.0
    %1288 = vmatprep.subr.mxu0 0.0
    %1289 = vmatpush2.msra.mxu0 0.0
    %1290 = vmatprep.subr.mxu0 0.0
    %1291 = vmatpush2.msra.mxu0 0.0
    %1292 = vmatprep.subr.mxu0 0.0
    %1293 = vmatpush2.msra.mxu0 0.0
    %1294 = vmatprep.subr.mxu0 0.0
    %1295 = vmatpush2.msra.mxu0 0.0
    %1296 = vmatprep.subr.mxu0 0.0
    %1297 = vmatpush2.msra.mxu0 0.0
    %1298 = vmatprep.subr.mxu0 0.0
    %1299 = vmatpush2.msra.mxu0 0.0
    %1300 = vmatprep.subr.mxu0 0.0
    %1301 = vmatpush2.msra.mxu0 0.0
    %1302 = vmatprep.subr.mxu0 0.0
    %1303 = vmatpush2.msra.mxu0 0.0
    %1304 = vmatprep.subr.mxu0 0.0
    %1305 = vmatpush2.msra.mxu0 0.0
    %1306 = vmatprep.subr.mxu0 0.0
    %1307 = vmatpush2.msra.mxu0 0.0
    %1308 = vmatprep.subr.mxu0 0.0
    %1309 = vmatpush2.msra.mxu0 0.0
    %1310 = vmatprep.subr.mxu0 0.0
    %1311 = vmatpush2.msra.mxu0 0.0
    %1312 = vmatprep.subr.mxu0 0.0
    %1313 = vmatpush2.msra.mxu0 0.0
    %1314 = vmatprep.mubr.f32.mxu0 0.0
    %1315 = vmatmul.mubr.f32.gmra.mxu0 %v1168
    %v1316 = vpop.f32.mrf.mxu0
    %v1317 = vadd.f32 0.0, %v1316
    %v1318 = vpop.f32.mrf.mxu0
    %1319 = vdwg.mxu0
    %v1320 = vadd.f32 %v1157, %v1317
    %s1321 = scalar_lea.vmem %s4, 448
    %v1322 = vld [vmem:[%s1321] sm:$0xff]
    %v1323 = vld [vmem:[%s1321 + $0x8] sm:$0xff]
    %v1324 = vld [vmem:[%s1321 + $0x10] sm:$0xff]
    %v1325 = vld [vmem:[%s1321 + $0x18] sm:$0xff]
    %v1326 = vld [vmem:[%s1321 + $0x20] sm:$0xff]
    %v1327 = vld [vmem:[%s1321 + $0x28] sm:$0xff]
    %v1328 = vld [vmem:[%s1321 + $0x30] sm:$0xff]
    %v1329 = vld [vmem:[%s1321 + $0x38] sm:$0xff]
    %v1330 = vrot.slane %v166, 6
    %v1331 = vsel %vm177, %v1330, 0
    %1333 = vmatprep.subr.mxu0 0.0
    %1334 = vmatpush1.msra.mxu0 0.0
    %1335 = vmatprep.subr.mxu0 0.0
    %1336 = vmatpush1.msra.mxu0 0.0
    %1337 = vmatprep.subr.mxu0 0.0
    %1338 = vmatpush1.msra.mxu0 0.0
    %1339 = vmatprep.subr.mxu0 0.0
    %1340 = vmatpush1.msra.mxu0 0.0
    %1341 = vmatprep.subr.mxu0 0.0
    %1342 = vmatpush1.msra.mxu0 0.0
    %1343 = vmatprep.subr.mxu0 0.0
    %1344 = vmatpush1.msra.mxu0 0.0
    %1345 = vmatprep.subr.mxu0 0.0
    %1346 = vmatpush1.msra.mxu0 0.0
    %1347 = vmatprep.subr.mxu0 0.0
    %1348 = vmatpush1.msra.mxu0 0.0
    %1349 = vmatprep.subr.mxu0 0.0
    %1350 = vmatpush1.msra.mxu0 %v1329
    %1351 = vmatprep.subr.mxu0 0.0
    %1352 = vmatpush1.msra.mxu0 %v1328
    %1353 = vmatprep.subr.mxu0 0.0
    %1354 = vmatpush1.msra.mxu0 %v1327
    %1355 = vmatprep.subr.mxu0 0.0
    %1356 = vmatpush1.msra.mxu0 %v1326
    %1357 = vmatprep.subr.mxu0 0.0
    %1358 = vmatpush1.msra.mxu0 %v1325
    %1359 = vmatprep.subr.mxu0 0.0
    %1360 = vmatpush1.msra.mxu0 %v1324
    %1361 = vmatprep.subr.mxu0 0.0
    %1362 = vmatpush1.msra.mxu0 %v1323
    %1363 = vmatprep.subr.mxu0 0.0
    %1364 = vmatpush1.msra.mxu0 %v1322
    %1365 = vmatprep.subr.mxu0 0.0
    %1366 = vmatpush2.msra.mxu0 0.0
    %1367 = vmatprep.subr.mxu0 0.0
    %1368 = vmatpush2.msra.mxu0 0.0
    %1369 = vmatprep.subr.mxu0 0.0
    %1370 = vmatpush2.msra.mxu0 0.0
    %1371 = vmatprep.subr.mxu0 0.0
    %1372 = vmatpush2.msra.mxu0 0.0
    %1373 = vmatprep.subr.mxu0 0.0
    %1374 = vmatpush2.msra.mxu0 0.0
    %1375 = vmatprep.subr.mxu0 0.0
    %1376 = vmatpush2.msra.mxu0 0.0
    %1377 = vmatprep.subr.mxu0 0.0
    %1378 = vmatpush2.msra.mxu0 0.0
    %1379 = vmatprep.subr.mxu0 0.0
    %1380 = vmatpush2.msra.mxu0 0.0
    %1381 = vmatprep.subr.mxu0 0.0
    %1382 = vmatpush2.msra.mxu0 0.0
    %1383 = vmatprep.subr.mxu0 0.0
    %1384 = vmatpush2.msra.mxu0 0.0
    %1385 = vmatprep.subr.mxu0 0.0
    %1386 = vmatpush2.msra.mxu0 0.0
    %1387 = vmatprep.subr.mxu0 0.0
    %1388 = vmatpush2.msra.mxu0 0.0
    %1389 = vmatprep.subr.mxu0 0.0
    %1390 = vmatpush2.msra.mxu0 0.0
    %1391 = vmatprep.subr.mxu0 0.0
    %1392 = vmatpush2.msra.mxu0 0.0
    %1393 = vmatprep.subr.mxu0 0.0
    %1394 = vmatpush2.msra.mxu0 0.0
    %1395 = vmatprep.subr.mxu0 0.0
    %1396 = vmatpush2.msra.mxu0 0.0
    %1397 = vmatprep.mubr.f32.mxu0 0.0
    %1398 = vmatmul.mubr.f32.gmra.mxu0 %v1331
    %v1399 = vpop.f32.mrf.mxu0
    %v1400 = vadd.f32 0.0, %v1399
    %v1401 = vpop.f32.mrf.mxu0
    %1402 = vdwg.mxu0
    %v1403 = vadd.f32 %v1240, %v1400
    %s1404 = scalar_lea.vmem %s6, 448
    %v1405 = vld [vmem:[%s1404] sm:$0xff]
    %v1406 = vld [vmem:[%s1404 + $0x8] sm:$0xff]
    %v1407 = vld [vmem:[%s1404 + $0x10] sm:$0xff]
    %v1408 = vld [vmem:[%s1404 + $0x18] sm:$0xff]
    %v1409 = vld [vmem:[%s1404 + $0x20] sm:$0xff]
    %v1410 = vld [vmem:[%s1404 + $0x28] sm:$0xff]
    %v1411 = vld [vmem:[%s1404 + $0x30] sm:$0xff]
    %v1412 = vld [vmem:[%s1404 + $0x38] sm:$0xff]
    %1413 = vmatprep.subr.mxu0 0.0
    %1414 = vmatpush1.msra.mxu0 0.0
    %1415 = vmatprep.subr.mxu0 0.0
    %1416 = vmatpush1.msra.mxu0 0.0
    %1417 = vmatprep.subr.mxu0 0.0
    %1418 = vmatpush1.msra.mxu0 0.0
    %1419 = vmatprep.subr.mxu0 0.0
    %1420 = vmatpush1.msra.mxu0 0.0
    %1421 = vmatprep.subr.mxu0 0.0
    %1422 = vmatpush1.msra.mxu0 0.0
    %1423 = vmatprep.subr.mxu0 0.0
    %1424 = vmatpush1.msra.mxu0 0.0
    %1425 = vmatprep.subr.mxu0 0.0
    %1426 = vmatpush1.msra.mxu0 0.0
    %1427 = vmatprep.subr.mxu0 0.0
    %1428 = vmatpush1.msra.mxu0 0.0
    %1429 = vmatprep.subr.mxu0 0.0
    %1430 = vmatpush1.msra.mxu0 %v1412
    %1431 = vmatprep.subr.mxu0 0.0
    %1432 = vmatpush1.msra.mxu0 %v1411
    %1433 = vmatprep.subr.mxu0 0.0
    %1434 = vmatpush1.msra.mxu0 %v1410
    %1435 = vmatprep.subr.mxu0 0.0
    %1436 = vmatpush1.msra.mxu0 %v1409
    %1437 = vmatprep.subr.mxu0 0.0
    %1438 = vmatpush1.msra.mxu0 %v1408
    %1439 = vmatprep.subr.mxu0 0.0
    %1440 = vmatpush1.msra.mxu0 %v1407
    %1441 = vmatprep.subr.mxu0 0.0
    %1442 = vmatpush1.msra.mxu0 %v1406
    %1443 = vmatprep.subr.mxu0 0.0
    %1444 = vmatpush1.msra.mxu0 %v1405
    %1445 = vmatprep.subr.mxu0 0.0
    %1446 = vmatpush2.msra.mxu0 0.0
    %1447 = vmatprep.subr.mxu0 0.0
    %1448 = vmatpush2.msra.mxu0 0.0
    %1449 = vmatprep.subr.mxu0 0.0
    %1450 = vmatpush2.msra.mxu0 0.0
    %1451 = vmatprep.subr.mxu0 0.0
    %1452 = vmatpush2.msra.mxu0 0.0
    %1453 = vmatprep.subr.mxu0 0.0
    %1454 = vmatpush2.msra.mxu0 0.0
    %1455 = vmatprep.subr.mxu0 0.0
    %1456 = vmatpush2.msra.mxu0 0.0
    %1457 = vmatprep.subr.mxu0 0.0
    %1458 = vmatpush2.msra.mxu0 0.0
    %1459 = vmatprep.subr.mxu0 0.0
    %1460 = vmatpush2.msra.mxu0 0.0
    %1461 = vmatprep.subr.mxu0 0.0
    %1462 = vmatpush2.msra.mxu0 0.0
    %1463 = vmatprep.subr.mxu0 0.0
    %1464 = vmatpush2.msra.mxu0 0.0
    %1465 = vmatprep.subr.mxu0 0.0
    %1466 = vmatpush2.msra.mxu0 0.0
    %1467 = vmatprep.subr.mxu0 0.0
    %1468 = vmatpush2.msra.mxu0 0.0
    %1469 = vmatprep.subr.mxu0 0.0
    %1470 = vmatpush2.msra.mxu0 0.0
    %1471 = vmatprep.subr.mxu0 0.0
    %1472 = vmatpush2.msra.mxu0 0.0
    %1473 = vmatprep.subr.mxu0 0.0
    %1474 = vmatpush2.msra.mxu0 0.0
    %1475 = vmatprep.subr.mxu0 0.0
    %1476 = vmatpush2.msra.mxu0 0.0
    %1477 = vmatprep.mubr.f32.mxu0 0.0
    %1478 = vmatmul.mubr.f32.gmra.mxu0 %v1331
    %v1479 = vpop.f32.mrf.mxu0
    %v1480 = vadd.f32 0.0, %v1479
    %v1481 = vpop.f32.mrf.mxu0
    %1482 = vdwg.mxu0
    %v1483 = vadd.f32 %v1320, %v1480
    %vm1484 = vcmask 58368
    %1485 = vst.msk [vmem:[#allocation2] sm:$0x3] %vm1484, %v1403
    %1486 = vst.msk [vmem:[#allocation4] sm:$0x3] %vm1484, %v1483
    %v1487 = vld [vmem:[%s1] sm:$0x3]
    %v1488 = vmul.f32 %v1487, %v1483
    %v1489 = vadd.f32 %v1488, %v1403
    %v1490 = vpack.c.bf16 %v1489, %v1489
    %v1491 = vld [vmem:[%s8] sm:$0xff]
    %v1492 = vld [vmem:[%s8 + $0x8] sm:$0xff]
    %v1493 = vld [vmem:[%s8 + $0x10] sm:$0xff]
    %v1494 = vld [vmem:[%s8 + $0x18] sm:$0xff]
    %v1495 = vld [vmem:[%s8 + $0x20] sm:$0xff]
    %v1496 = vld [vmem:[%s8 + $0x28] sm:$0xff]
    %v1497 = vld [vmem:[%s8 + $0x30] sm:$0xff]
    %v1498 = vld [vmem:[%s8 + $0x38] sm:$0xff]
    %v1499 = vld [vmem:[%s9] sm:$0xff]
    %v1500 = vld [vmem:[%s9 + $0x8] sm:$0xff]
    %v1503 = vlaneseq
    %v1504 = vshrl.u32 %v1503, 7
    %v1505 = vsub.s32 0, %v1504
    %v1506 = vrot.slane %v1499, %v1505
    %v1507 = vlaneseq
    %v1508 = vshrl.u32 %v1507, 7
    %v1509 = vsub.s32 1, %v1508
    %v1510 = vrot.slane %v1499, %v1509
    %v1511 = vlaneseq
    %v1512 = vshrl.u32 %v1511, 7
    %v1513 = vsub.s32 2, %v1512
    %v1514 = vrot.slane %v1499, %v1513
    %v1515 = vlaneseq
    %v1516 = vshrl.u32 %v1515, 7
    %v1517 = vsub.s32 3, %v1516
    %v1518 = vrot.slane %v1499, %v1517
    %v1519 = vlaneseq
    %v1520 = vshrl.u32 %v1519, 7
    %v1521 = vsub.s32 4, %v1520
    %v1522 = vrot.slane %v1499, %v1521
    %v1523 = vlaneseq
    %v1524 = vshrl.u32 %v1523, 7
    %v1525 = vsub.s32 5, %v1524
    %v1526 = vrot.slane %v1499, %v1525
    %v1527 = vlaneseq
    %v1528 = vshrl.u32 %v1527, 7
    %v1529 = vsub.s32 6, %v1528
    %v1530 = vrot.slane %v1499, %v1529
    %v1531 = vlaneseq
    %v1532 = vshrl.u32 %v1531, 7
    %v1533 = vsub.s32 7, %v1532
    %v1534 = vrot.slane %v1499, %v1533
    %v1535 = vlaneseq
    %v1536 = vshrl.u32 %v1535, 7
    %v1537 = vsub.s32 0, %v1536
    %v1538 = vrot.slane %v1500, %v1537
    %v1539 = vlaneseq
    %v1540 = vshrl.u32 %v1539, 7
    %v1541 = vsub.s32 1, %v1540
    %v1542 = vrot.slane %v1500, %v1541
    %v1543 = vlaneseq
    %v1544 = vshrl.u32 %v1543, 7
    %v1545 = vsub.s32 2, %v1544
    %v1546 = vrot.slane %v1500, %v1545
    %v1547 = vlaneseq
    %v1548 = vshrl.u32 %v1547, 7
    %v1549 = vsub.s32 3, %v1548
    %v1550 = vrot.slane %v1500, %v1549
    %v1551 = vlaneseq
    %v1552 = vshrl.u32 %v1551, 7
    %v1553 = vsub.s32 4, %v1552
    %v1554 = vrot.slane %v1500, %v1553
    %v1555 = vlaneseq
    %v1556 = vshrl.u32 %v1555, 7
    %v1557 = vsub.s32 5, %v1556
    %v1558 = vrot.slane %v1500, %v1557
    %v1559 = vlaneseq
    %v1560 = vshrl.u32 %v1559, 7
    %v1561 = vsub.s32 6, %v1560
    %v1562 = vrot.slane %v1500, %v1561
    %v1563 = vlaneseq
    %v1564 = vshrl.u32 %v1563, 7
    %v1565 = vsub.s32 7, %v1564
    %v1566 = vrot.slane %v1500, %v1565
    %v1591 = vunpack.c.l.b16 %v1491
    %v1592 = vunpack.c.h.b16 %v1491
    %v1593 = vunpack.c.l.b16 %v1492
    %v1594 = vunpack.c.h.b16 %v1492
    %v1595 = vunpack.c.l.b16 %v1493
    %v1596 = vunpack.c.h.b16 %v1493
    %v1597 = vunpack.c.l.b16 %v1494
    %v1598 = vunpack.c.h.b16 %v1494
    %v1599 = vunpack.c.l.b16 %v1495
    %v1600 = vunpack.c.h.b16 %v1495
    %v1601 = vunpack.c.l.b16 %v1496
    %v1602 = vunpack.c.h.b16 %v1496
    %v1603 = vunpack.c.l.b16 %v1497
    %v1604 = vunpack.c.h.b16 %v1497
    %v1605 = vunpack.c.l.b16 %v1498
    %v1606 = vunpack.c.h.b16 %v1498
    %v1607 = vpack.c.b16 %v1591, %v1591
    %v1608 = vpack.c.b16 %v1592, %v1592
    %v1609 = vpack.c.b16 %v1593, %v1593
    %v1610 = vpack.c.b16 %v1594, %v1594
    %v1611 = vpack.c.b16 %v1595, %v1595
    %v1612 = vpack.c.b16 %v1596, %v1596
    %v1613 = vpack.c.b16 %v1597, %v1597
    %v1614 = vpack.c.b16 %v1598, %v1598
    %v1615 = vpack.c.b16 %v1599, %v1599
    %v1616 = vpack.c.b16 %v1600, %v1600
    %v1617 = vpack.c.b16 %v1601, %v1601
    %v1618 = vpack.c.b16 %v1602, %v1602
    %v1619 = vpack.c.b16 %v1603, %v1603
    %v1620 = vpack.c.b16 %v1604, %v1604
    %v1621 = vpack.c.b16 %v1605, %v1605
    %v1622 = vpack.c.b16 %v1606, %v1606
    %vm1623 = vcmask 64512
    %v1625 = vsel %vm1623, %v1490, 0
    %vm1627 = vcmask 1043456
    %v1629 = vsel %vm1627, %v1607, 0
    %v1632 = vsel %vm1627, %v1608, 0
    %v1635 = vsel %vm1627, %v1609, 0
    %v1638 = vsel %vm1627, %v1610, 0
    %v1641 = vsel %vm1627, %v1611, 0
    %v1644 = vsel %vm1627, %v1612, 0
    %v1647 = vsel %vm1627, %v1613, 0
    %v1650 = vsel %vm1627, %v1614, 0
    %v1653 = vsel %vm1627, %v1615, 0
    %v1656 = vsel %vm1627, %v1616, 0
    %v1659 = vsel %vm1627, %v1617, 0
    %v1662 = vsel %vm1627, %v1618, 0
    %v1665 = vsel %vm1627, %v1619, 0
    %v1668 = vsel %vm1627, %v1620, 0
    %v1671 = vsel %vm1627, %v1621, 0
    %v1674 = vsel %vm1627, %v1622, 0
    %1676 = vmatprep.subr.bf16.mxu0 0
    %1677 = vmatpush1.bf16.msra.mxu0 0
    %1678 = vmatprep.subr.bf16.mxu0 0
    %1679 = vmatpush1.bf16.msra.mxu0 0
    %1680 = vmatprep.subr.bf16.mxu0 0
    %1681 = vmatpush1.bf16.msra.mxu0 0
    %1682 = vmatprep.subr.bf16.mxu0 0
    %1683 = vmatpush1.bf16.msra.mxu0 0
    %1684 = vmatprep.subr.bf16.mxu0 0
    %1685 = vmatpush1.bf16.msra.mxu0 0
    %1686 = vmatprep.subr.bf16.mxu0 0
    %1687 = vmatpush1.bf16.msra.mxu0 0
    %1688 = vmatprep.subr.bf16.mxu0 0
    %1689 = vmatpush1.bf16.msra.mxu0 0
    %1690 = vmatprep.subr.bf16.mxu0 %v1632
    %1691 = vmatpush1.bf16.msra.mxu0 %v1629
    %1692 = vmatprep.subr.bf16.mxu0 0
    %1693 = vmatpush2.bf16.msra.mxu0 0
    %1694 = vmatprep.subr.bf16.mxu0 0
    %1695 = vmatpush2.bf16.msra.mxu0 0
    %1696 = vmatprep.subr.bf16.mxu0 0
    %1697 = vmatpush2.bf16.msra.mxu0 0
    %1698 = vmatprep.subr.bf16.mxu0 0
    %1699 = vmatpush2.bf16.msra.mxu0 0
    %1700 = vmatprep.subr.bf16.mxu0 0
    %1701 = vmatpush2.bf16.msra.mxu0 0
    %1702 = vmatprep.subr.bf16.mxu0 0
    %1703 = vmatpush2.bf16.msra.mxu0 0
    %1704 = vmatprep.subr.bf16.mxu0 0
    %1705 = vmatpush2.bf16.msra.mxu0 0
    %1706 = vmatprep.subr.bf16.mxu0 0
    %1707 = vmatpush2.bf16.msra.mxu0 0
    %1708 = vmatprep.mubr.bf16.mxu0 0
    %1709 = vmatmul.mubr.bf16.gmra.mxu0 %v1625
    %v1710 = vpop.f32.mrf.mxu0
    %v1711 = vadd.f32 %v1506, %v1710
    %v1712 = vpop.f32.mrf.mxu0
    %v1713 = vadd.f32 %v1510, %v1712
    %v1714 = vpop.f32.mrf.mxu0
    %v1715 = vpop.f32.mrf.mxu0
    %1716 = vdwg.mxu0
    %1717 = vmatprep.subr.bf16.mxu0 0
    %1718 = vmatpush1.bf16.msra.mxu0 0
    %1719 = vmatprep.subr.bf16.mxu0 0
    %1720 = vmatpush1.bf16.msra.mxu0 0
    %1721 = vmatprep.subr.bf16.mxu0 0
    %1722 = vmatpush1.bf16.msra.mxu0 0
    %1723 = vmatprep.subr.bf16.mxu0 0
    %1724 = vmatpush1.bf16.msra.mxu0 0
    %1725 = vmatprep.subr.bf16.mxu0 0
    %1726 = vmatpush1.bf16.msra.mxu0 0
    %1727 = vmatprep.subr.bf16.mxu0 0
    %1728 = vmatpush1.bf16.msra.mxu0 0
    %1729 = vmatprep.subr.bf16.mxu0 0
    %1730 = vmatpush1.bf16.msra.mxu0 0
    %1731 = vmatprep.subr.bf16.mxu0 %v1638
    %1732 = vmatpush1.bf16.msra.mxu0 %v1635
    %1733 = vmatprep.subr.bf16.mxu0 0
    %1734 = vmatpush2.bf16.msra.mxu0 0
    %1735 = vmatprep.subr.bf16.mxu0 0
    %1736 = vmatpush2.bf16.msra.mxu0 0
    %1737 = vmatprep.subr.bf16.mxu0 0
    %1738 = vmatpush2.bf16.msra.mxu0 0
    %1739 = vmatprep.subr.bf16.mxu0 0
    %1740 = vmatpush2.bf16.msra.mxu0 0
    %1741 = vmatprep.subr.bf16.mxu0 0
    %1742 = vmatpush2.bf16.msra.mxu0 0
    %1743 = vmatprep.subr.bf16.mxu0 0
    %1744 = vmatpush2.bf16.msra.mxu0 0
    %1745 = vmatprep.subr.bf16.mxu0 0
    %1746 = vmatpush2.bf16.msra.mxu0 0
    %1747 = vmatprep.subr.bf16.mxu0 0
    %1748 = vmatpush2.bf16.msra.mxu0 0
    %1749 = vmatprep.mubr.bf16.mxu0 0
    %1750 = vmatmul.mubr.bf16.gmra.mxu0 %v1625
    %v1751 = vpop.f32.mrf.mxu0
    %v1752 = vadd.f32 %v1514, %v1751
    %v1753 = vpop.f32.mrf.mxu0
    %v1754 = vadd.f32 %v1518, %v1753
    %v1755 = vpop.f32.mrf.mxu0
    %v1756 = vpop.f32.mrf.mxu0
    %1757 = vdwg.mxu0
    %1758 = vmatprep.subr.bf16.mxu0 0
    %1759 = vmatpush1.bf16.msra.mxu0 0
    %1760 = vmatprep.subr.bf16.mxu0 0
    %1761 = vmatpush1.bf16.msra.mxu0 0
    %1762 = vmatprep.subr.bf16.mxu0 0
    %1763 = vmatpush1.bf16.msra.mxu0 0
    %1764 = vmatprep.subr.bf16.mxu0 0
    %1765 = vmatpush1.bf16.msra.mxu0 0
    %1766 = vmatprep.subr.bf16.mxu0 0
    %1767 = vmatpush1.bf16.msra.mxu0 0
    %1768 = vmatprep.subr.bf16.mxu0 0
    %1769 = vmatpush1.bf16.msra.mxu0 0
    %1770 = vmatprep.subr.bf16.mxu0 0
    %1771 = vmatpush1.bf16.msra.mxu0 0
    %1772 = vmatprep.subr.bf16.mxu0 %v1644
    %1773 = vmatpush1.bf16.msra.mxu0 %v1641
    %1774 = vmatprep.subr.bf16.mxu0 0
    %1775 = vmatpush2.bf16.msra.mxu0 0
    %1776 = vmatprep.subr.bf16.mxu0 0
    %1777 = vmatpush2.bf16.msra.mxu0 0
    %1778 = vmatprep.subr.bf16.mxu0 0
    %1779 = vmatpush2.bf16.msra.mxu0 0
    %1780 = vmatprep.subr.bf16.mxu0 0
    %1781 = vmatpush2.bf16.msra.mxu0 0
    %1782 = vmatprep.subr.bf16.mxu0 0
    %1783 = vmatpush2.bf16.msra.mxu0 0
    %1784 = vmatprep.subr.bf16.mxu0 0
    %1785 = vmatpush2.bf16.msra.mxu0 0
    %1786 = vmatprep.subr.bf16.mxu0 0
    %1787 = vmatpush2.bf16.msra.mxu0 0
    %1788 = vmatprep.subr.bf16.mxu0 0
    %1789 = vmatpush2.bf16.msra.mxu0 0
    %1790 = vmatprep.mubr.bf16.mxu0 0
    %1791 = vmatmul.mubr.bf16.gmra.mxu0 %v1625
    %v1792 = vpop.f32.mrf.mxu0
    %v1793 = vadd.f32 %v1522, %v1792
    %v1794 = vpop.f32.mrf.mxu0
    %v1795 = vadd.f32 %v1526, %v1794
    %v1796 = vpop.f32.mrf.mxu0
    %v1797 = vpop.f32.mrf.mxu0
    %1798 = vdwg.mxu0
    %1799 = vmatprep.subr.bf16.mxu0 0
    %1800 = vmatpush1.bf16.msra.mxu0 0
    %1801 = vmatprep.subr.bf16.mxu0 0
    %1802 = vmatpush1.bf16.msra.mxu0 0
    %1803 = vmatprep.subr.bf16.mxu0 0
    %1804 = vmatpush1.bf16.msra.mxu0 0
    %1805 = vmatprep.subr.bf16.mxu0 0
    %1806 = vmatpush1.bf16.msra.mxu0 0
    %1807 = vmatprep.subr.bf16.mxu0 0
    %1808 = vmatpush1.bf16.msra.mxu0 0
    %1809 = vmatprep.subr.bf16.mxu0 0
    %1810 = vmatpush1.bf16.msra.mxu0 0
    %1811 = vmatprep.subr.bf16.mxu0 0
    %1812 = vmatpush1.bf16.msra.mxu0 0
    %1813 = vmatprep.subr.bf16.mxu0 %v1650
    %1814 = vmatpush1.bf16.msra.mxu0 %v1647
    %1815 = vmatprep.subr.bf16.mxu0 0
    %1816 = vmatpush2.bf16.msra.mxu0 0
    %1817 = vmatprep.subr.bf16.mxu0 0
    %1818 = vmatpush2.bf16.msra.mxu0 0
    %1819 = vmatprep.subr.bf16.mxu0 0
    %1820 = vmatpush2.bf16.msra.mxu0 0
    %1821 = vmatprep.subr.bf16.mxu0 0
    %1822 = vmatpush2.bf16.msra.mxu0 0
    %1823 = vmatprep.subr.bf16.mxu0 0
    %1824 = vmatpush2.bf16.msra.mxu0 0
    %1825 = vmatprep.subr.bf16.mxu0 0
    %1826 = vmatpush2.bf16.msra.mxu0 0
    %1827 = vmatprep.subr.bf16.mxu0 0
    %1828 = vmatpush2.bf16.msra.mxu0 0
    %1829 = vmatprep.subr.bf16.mxu0 0
    %1830 = vmatpush2.bf16.msra.mxu0 0
    %1831 = vmatprep.mubr.bf16.mxu0 0
    %1832 = vmatmul.mubr.bf16.gmra.mxu0 %v1625
    %v1833 = vpop.f32.mrf.mxu0
    %v1834 = vadd.f32 %v1530, %v1833
    %v1835 = vpop.f32.mrf.mxu0
    %v1836 = vadd.f32 %v1534, %v1835
    %v1837 = vpop.f32.mrf.mxu0
    %v1838 = vpop.f32.mrf.mxu0
    %1839 = vdwg.mxu0
    %1840 = vmatprep.subr.bf16.mxu0 0
    %1841 = vmatpush1.bf16.msra.mxu0 0
    %1842 = vmatprep.subr.bf16.mxu0 0
    %1843 = vmatpush1.bf16.msra.mxu0 0
    %1844 = vmatprep.subr.bf16.mxu0 0
    %1845 = vmatpush1.bf16.msra.mxu0 0
    %1846 = vmatprep.subr.bf16.mxu0 0
    %1847 = vmatpush1.bf16.msra.mxu0 0
    %1848 = vmatprep.subr.bf16.mxu0 0
    %1849 = vmatpush1.bf16.msra.mxu0 0
    %1850 = vmatprep.subr.bf16.mxu0 0
    %1851 = vmatpush1.bf16.msra.mxu0 0
    %1852 = vmatprep.subr.bf16.mxu0 0
    %1853 = vmatpush1.bf16.msra.mxu0 0
    %1854 = vmatprep.subr.bf16.mxu0 %v1656
    %1855 = vmatpush1.bf16.msra.mxu0 %v1653
    %1856 = vmatprep.subr.bf16.mxu0 0
    %1857 = vmatpush2.bf16.msra.mxu0 0
    %1858 = vmatprep.subr.bf16.mxu0 0
    %1859 = vmatpush2.bf16.msra.mxu0 0
    %1860 = vmatprep.subr.bf16.mxu0 0
    %1861 = vmatpush2.bf16.msra.mxu0 0
    %1862 = vmatprep.subr.bf16.mxu0 0
    %1863 = vmatpush2.bf16.msra.mxu0 0
    %1864 = vmatprep.subr.bf16.mxu0 0
    %1865 = vmatpush2.bf16.msra.mxu0 0
    %1866 = vmatprep.subr.bf16.mxu0 0
    %1867 = vmatpush2.bf16.msra.mxu0 0
    %1868 = vmatprep.subr.bf16.mxu0 0
    %1869 = vmatpush2.bf16.msra.mxu0 0
    %1870 = vmatprep.subr.bf16.mxu0 0
    %1871 = vmatpush2.bf16.msra.mxu0 0
    %1872 = vmatprep.mubr.bf16.mxu0 0
    %1873 = vmatmul.mubr.bf16.gmra.mxu0 %v1625
    %v1874 = vpop.f32.mrf.mxu0
    %v1875 = vadd.f32 %v1538, %v1874
    %v1876 = vpop.f32.mrf.mxu0
    %v1877 = vadd.f32 %v1542, %v1876
    %v1878 = vpop.f32.mrf.mxu0
    %v1879 = vpop.f32.mrf.mxu0
    %1880 = vdwg.mxu0
    %1881 = vmatprep.subr.bf16.mxu0 0
    %1882 = vmatpush1.bf16.msra.mxu0 0
    %1883 = vmatprep.subr.bf16.mxu0 0
    %1884 = vmatpush1.bf16.msra.mxu0 0
    %1885 = vmatprep.subr.bf16.mxu0 0
    %1886 = vmatpush1.bf16.msra.mxu0 0
    %1887 = vmatprep.subr.bf16.mxu0 0
    %1888 = vmatpush1.bf16.msra.mxu0 0
    %1889 = vmatprep.subr.bf16.mxu0 0
    %1890 = vmatpush1.bf16.msra.mxu0 0
    %1891 = vmatprep.subr.bf16.mxu0 0
    %1892 = vmatpush1.bf16.msra.mxu0 0
    %1893 = vmatprep.subr.bf16.mxu0 0
    %1894 = vmatpush1.bf16.msra.mxu0 0
    %1895 = vmatprep.subr.bf16.mxu0 %v1662
    %1896 = vmatpush1.bf16.msra.mxu0 %v1659
    %1897 = vmatprep.subr.bf16.mxu0 0
    %1898 = vmatpush2.bf16.msra.mxu0 0
    %1899 = vmatprep.subr.bf16.mxu0 0
    %1900 = vmatpush2.bf16.msra.mxu0 0
    %1901 = vmatprep.subr.bf16.mxu0 0
    %1902 = vmatpush2.bf16.msra.mxu0 0
    %1903 = vmatprep.subr.bf16.mxu0 0
    %1904 = vmatpush2.bf16.msra.mxu0 0
    %1905 = vmatprep.subr.bf16.mxu0 0
    %1906 = vmatpush2.bf16.msra.mxu0 0
    %1907 = vmatprep.subr.bf16.mxu0 0
    %1908 = vmatpush2.bf16.msra.mxu0 0
    %1909 = vmatprep.subr.bf16.mxu0 0
    %1910 = vmatpush2.bf16.msra.mxu0 0
    %1911 = vmatprep.subr.bf16.mxu0 0
    %1912 = vmatpush2.bf16.msra.mxu0 0
    %1913 = vmatprep.mubr.bf16.mxu0 0
    %1914 = vmatmul.mubr.bf16.gmra.mxu0 %v1625
    %v1915 = vpop.f32.mrf.mxu0
    %v1916 = vadd.f32 %v1546, %v1915
    %v1917 = vpop.f32.mrf.mxu0
    %v1918 = vadd.f32 %v1550, %v1917
    %v1919 = vpop.f32.mrf.mxu0
    %v1920 = vpop.f32.mrf.mxu0
    %1921 = vdwg.mxu0
    %1922 = vmatprep.subr.bf16.mxu0 0
    %1923 = vmatpush1.bf16.msra.mxu0 0
    %1924 = vmatprep.subr.bf16.mxu0 0
    %1925 = vmatpush1.bf16.msra.mxu0 0
    %1926 = vmatprep.subr.bf16.mxu0 0
    %1927 = vmatpush1.bf16.msra.mxu0 0
    %1928 = vmatprep.subr.bf16.mxu0 0
    %1929 = vmatpush1.bf16.msra.mxu0 0
    %1930 = vmatprep.subr.bf16.mxu0 0
    %1931 = vmatpush1.bf16.msra.mxu0 0
    %1932 = vmatprep.subr.bf16.mxu0 0
    %1933 = vmatpush1.bf16.msra.mxu0 0
    %1934 = vmatprep.subr.bf16.mxu0 0
    %1935 = vmatpush1.bf16.msra.mxu0 0
    %1936 = vmatprep.subr.bf16.mxu0 %v1668
    %1937 = vmatpush1.bf16.msra.mxu0 %v1665
    %1938 = vmatprep.subr.bf16.mxu0 0
    %1939 = vmatpush2.bf16.msra.mxu0 0
    %1940 = vmatprep.subr.bf16.mxu0 0
    %1941 = vmatpush2.bf16.msra.mxu0 0
    %1942 = vmatprep.subr.bf16.mxu0 0
    %1943 = vmatpush2.bf16.msra.mxu0 0
    %1944 = vmatprep.subr.bf16.mxu0 0
    %1945 = vmatpush2.bf16.msra.mxu0 0
    %1946 = vmatprep.subr.bf16.mxu0 0
    %1947 = vmatpush2.bf16.msra.mxu0 0
    %1948 = vmatprep.subr.bf16.mxu0 0
    %1949 = vmatpush2.bf16.msra.mxu0 0
    %1950 = vmatprep.subr.bf16.mxu0 0
    %1951 = vmatpush2.bf16.msra.mxu0 0
    %1952 = vmatprep.subr.bf16.mxu0 0
    %1953 = vmatpush2.bf16.msra.mxu0 0
    %1954 = vmatprep.mubr.bf16.mxu0 0
    %1955 = vmatmul.mubr.bf16.gmra.mxu0 %v1625
    %v1956 = vpop.f32.mrf.mxu0
    %v1957 = vadd.f32 %v1554, %v1956
    %v1958 = vpop.f32.mrf.mxu0
    %v1959 = vadd.f32 %v1558, %v1958
    %v1960 = vpop.f32.mrf.mxu0
    %v1961 = vpop.f32.mrf.mxu0
    %1962 = vdwg.mxu0
    %1963 = vmatprep.subr.bf16.mxu0 0
    %1964 = vmatpush1.bf16.msra.mxu0 0
    %1965 = vmatprep.subr.bf16.mxu0 0
    %1966 = vmatpush1.bf16.msra.mxu0 0
    %1967 = vmatprep.subr.bf16.mxu0 0
    %1968 = vmatpush1.bf16.msra.mxu0 0
    %1969 = vmatprep.subr.bf16.mxu0 0
    %1970 = vmatpush1.bf16.msra.mxu0 0
    %1971 = vmatprep.subr.bf16.mxu0 0
    %1972 = vmatpush1.bf16.msra.mxu0 0
    %1973 = vmatprep.subr.bf16.mxu0 0
    %1974 = vmatpush1.bf16.msra.mxu0 0
    %1975 = vmatprep.subr.bf16.mxu0 0
    %1976 = vmatpush1.bf16.msra.mxu0 0
    %1977 = vmatprep.subr.bf16.mxu0 %v1674
    %1978 = vmatpush1.bf16.msra.mxu0 %v1671
    %1979 = vmatprep.subr.bf16.mxu0 0
    %1980 = vmatpush2.bf16.msra.mxu0 0
    %1981 = vmatprep.subr.bf16.mxu0 0
    %1982 = vmatpush2.bf16.msra.mxu0 0
    %1983 = vmatprep.subr.bf16.mxu0 0
    %1984 = vmatpush2.bf16.msra.mxu0 0
    %1985 = vmatprep.subr.bf16.mxu0 0
    %1986 = vmatpush2.bf16.msra.mxu0 0
    %1987 = vmatprep.subr.bf16.mxu0 0
    %1988 = vmatpush2.bf16.msra.mxu0 0
    %1989 = vmatprep.subr.bf16.mxu0 0
    %1990 = vmatpush2.bf16.msra.mxu0 0
    %1991 = vmatprep.subr.bf16.mxu0 0
    %1992 = vmatpush2.bf16.msra.mxu0 0
    %1993 = vmatprep.subr.bf16.mxu0 0
    %1994 = vmatpush2.bf16.msra.mxu0 0
    %1995 = vmatprep.mubr.bf16.mxu0 0
    %1996 = vmatmul.mubr.bf16.gmra.mxu0 %v1625
    %v1997 = vpop.f32.mrf.mxu0
    %v1998 = vadd.f32 %v1562, %v1997
    %v1999 = vpop.f32.mrf.mxu0
    %v2000 = vadd.f32 %v1566, %v1999
    %v2001 = vpop.f32.mrf.mxu0
    %v2002 = vpop.f32.mrf.mxu0
    %2003 = vdwg.mxu0
    %v2004 = vmax.f32 %v1711, 0.0
    %v2005 = vmax.f32 %v1713, 0.0
    %v2006 = vmax.f32 %v1752, 0.0
    %v2007 = vmax.f32 %v1754, 0.0
    %v2008 = vmax.f32 %v1793, 0.0
    %v2009 = vmax.f32 %v1795, 0.0
    %v2010 = vmax.f32 %v1834, 0.0
    %v2011 = vmax.f32 %v1836, 0.0
    %v2012 = vmax.f32 %v1875, 0.0
    %v2013 = vmax.f32 %v1877, 0.0
    %v2014 = vmax.f32 %v1916, 0.0
    %v2015 = vmax.f32 %v1918, 0.0
    %v2016 = vmax.f32 %v1957, 0.0
    %v2017 = vmax.f32 %v1959, 0.0
    %v2018 = vmax.f32 %v1998, 0.0
    %v2019 = vmax.f32 %v2000, 0.0
    %v2020 = vpack.c.bf16 %v2004, %v2004
    %v2021 = vpack.c.bf16 %v2005, %v2005
    %v2022 = vld [vmem:[%s10] sm:$0xf]
    %v2023 = vld [vmem:[%s10 + $0x4] sm:$0xf]
    %v2024 = vld [vmem:[%s10 + $0x8] sm:$0xf]
    %v2025 = vld [vmem:[%s10 + $0xc] sm:$0xf]
    %v2026 = vld [vmem:[%s10 + $0x10] sm:$0xf]
    %v2027 = vld [vmem:[%s10 + $0x14] sm:$0xf]
    %v2028 = vld [vmem:[%s10 + $0x18] sm:$0xf]
    %v2029 = vld [vmem:[%s10 + $0x1c] sm:$0xf]
    %v2030 = vld [vmem:[%s10 + $0x20] sm:$0xf]
    %v2031 = vld [vmem:[%s10 + $0x24] sm:$0xf]
    %v2032 = vld [vmem:[%s10 + $0x28] sm:$0xf]
    %v2033 = vld [vmem:[%s10 + $0x2c] sm:$0xf]
    %v2034 = vld [vmem:[%s10 + $0x30] sm:$0xf]
    %v2035 = vld [vmem:[%s10 + $0x34] sm:$0xf]
    %v2036 = vld [vmem:[%s10 + $0x38] sm:$0xf]
    %v2037 = vld [vmem:[%s10 + $0x3c] sm:$0xf]
    %v2038 = vld [vmem:[%s10 + $0x40] sm:$0xf]
    %v2039 = vld [vmem:[%s10 + $0x44] sm:$0xf]
    %v2040 = vld [vmem:[%s10 + $0x48] sm:$0xf]
    %v2041 = vld [vmem:[%s10 + $0x4c] sm:$0xf]
    %v2042 = vld [vmem:[%s10 + $0x50] sm:$0xf]
    %v2043 = vld [vmem:[%s10 + $0x54] sm:$0xf]
    %v2044 = vld [vmem:[%s10 + $0x58] sm:$0xf]
    %v2045 = vld [vmem:[%s10 + $0x5c] sm:$0xf]
    %v2046 = vld [vmem:[%s10 + $0x60] sm:$0xf]
    %v2047 = vld [vmem:[%s10 + $0x64] sm:$0xf]
    %v2048 = vld [vmem:[%s10 + $0x68] sm:$0xf]
    %v2049 = vld [vmem:[%s10 + $0x6c] sm:$0xf]
    %v2050 = vld [vmem:[%s10 + $0x70] sm:$0xf]
    %v2051 = vld [vmem:[%s10 + $0x74] sm:$0xf]
    %v2052 = vld [vmem:[%s10 + $0x78] sm:$0xf]
    %v2053 = vld [vmem:[%s10 + $0x7c] sm:$0xf]
    %v2054 = vld [vmem:[%s11] sm:$0x1]
    %v2056 = vlaneseq
    %v2057 = vshrl.u32 %v2056, 7
    %v2058 = vsub.s32 0, %v2057
    %v2059 = vrot.slane %v2054, %v2058
    %v2093 = vunpack.c.l.b16 %v2022
    %v2094 = vunpack.c.l.b16 %v2023
    %v2095 = vunpack.c.l.b16 %v2024
    %v2096 = vunpack.c.l.b16 %v2025
    %v2097 = vunpack.c.l.b16 %v2026
    %v2098 = vunpack.c.l.b16 %v2027
    %v2099 = vunpack.c.l.b16 %v2028
    %v2100 = vunpack.c.l.b16 %v2029
    %v2101 = vunpack.c.l.b16 %v2030
    %v2102 = vunpack.c.l.b16 %v2031
    %v2103 = vunpack.c.l.b16 %v2032
    %v2104 = vunpack.c.l.b16 %v2033
    %v2105 = vunpack.c.l.b16 %v2034
    %v2106 = vunpack.c.l.b16 %v2035
    %v2107 = vunpack.c.l.b16 %v2036
    %v2108 = vunpack.c.l.b16 %v2037
    %v2109 = vunpack.c.l.b16 %v2038
    %v2110 = vunpack.c.l.b16 %v2039
    %v2111 = vunpack.c.l.b16 %v2040
    %v2112 = vunpack.c.l.b16 %v2041
    %v2113 = vunpack.c.l.b16 %v2042
    %v2114 = vunpack.c.l.b16 %v2043
    %v2115 = vunpack.c.l.b16 %v2044
    %v2116 = vunpack.c.l.b16 %v2045
    %v2117 = vunpack.c.l.b16 %v2046
    %v2118 = vunpack.c.l.b16 %v2047
    %v2119 = vunpack.c.l.b16 %v2048
    %v2120 = vunpack.c.l.b16 %v2049
    %v2121 = vunpack.c.l.b16 %v2050
    %v2122 = vunpack.c.l.b16 %v2051
    %v2123 = vunpack.c.l.b16 %v2052
    %v2124 = vunpack.c.l.b16 %v2053
    %v2125 = vpack.c.b16 %v2094, %v2093
    %v2126 = vpack.c.b16 %v2096, %v2095
    %v2127 = vpack.c.b16 %v2098, %v2097
    %v2128 = vpack.c.b16 %v2100, %v2099
    %v2129 = vpack.c.b16 %v2102, %v2101
    %v2130 = vpack.c.b16 %v2104, %v2103
    %v2131 = vpack.c.b16 %v2106, %v2105
    %v2132 = vpack.c.b16 %v2108, %v2107
    %v2133 = vpack.c.b16 %v2110, %v2109
    %v2134 = vpack.c.b16 %v2112, %v2111
    %v2135 = vpack.c.b16 %v2114, %v2113
    %v2136 = vpack.c.b16 %v2116, %v2115
    %v2137 = vpack.c.b16 %v2118, %v2117
    %v2138 = vpack.c.b16 %v2120, %v2119
    %v2139 = vpack.c.b16 %v2122, %v2121
    %v2140 = vpack.c.b16 %v2124, %v2123
    %2157 = vmatprep.subr.bf16.mxu0 0
    %2158 = vmatpush1.bf16.msra.mxu0 %v2132
    %2159 = vmatprep.subr.bf16.mxu0 0
    %2160 = vmatpush1.bf16.msra.mxu0 %v2131
    %2161 = vmatprep.subr.bf16.mxu0 0
    %2162 = vmatpush1.bf16.msra.mxu0 %v2130
    %2163 = vmatprep.subr.bf16.mxu0 0
    %2164 = vmatpush1.bf16.msra.mxu0 %v2129
    %2165 = vmatprep.subr.bf16.mxu0 0
    %2166 = vmatpush1.bf16.msra.mxu0 %v2128
    %2167 = vmatprep.subr.bf16.mxu0 0
    %2168 = vmatpush1.bf16.msra.mxu0 %v2127
    %2169 = vmatprep.subr.bf16.mxu0 0
    %2170 = vmatpush1.bf16.msra.mxu0 %v2126
    %2171 = vmatprep.subr.bf16.mxu0 0
    %2172 = vmatpush1.bf16.msra.mxu0 %v2125
    %2173 = vmatprep.subr.bf16.mxu0 0
    %2174 = vmatpush2.bf16.msra.mxu0 %v2140
    %2175 = vmatprep.subr.bf16.mxu0 0
    %2176 = vmatpush2.bf16.msra.mxu0 %v2139
    %2177 = vmatprep.subr.bf16.mxu0 0
    %2178 = vmatpush2.bf16.msra.mxu0 %v2138
    %2179 = vmatprep.subr.bf16.mxu0 0
    %2180 = vmatpush2.bf16.msra.mxu0 %v2137
    %2181 = vmatprep.subr.bf16.mxu0 0
    %2182 = vmatpush2.bf16.msra.mxu0 %v2136
    %2183 = vmatprep.subr.bf16.mxu0 0
    %2184 = vmatpush2.bf16.msra.mxu0 %v2135
    %2185 = vmatprep.subr.bf16.mxu0 0
    %2186 = vmatpush2.bf16.msra.mxu0 %v2134
    %2187 = vmatprep.subr.bf16.mxu0 0
    %2188 = vmatpush2.bf16.msra.mxu0 %v2133
    %2189 = vmatprep.mubr.bf16.mxu0 %v2021
    %2190 = vmatmul.mubr.bf16.gmra.mxu0 %v2020
    %v2191 = vpop.f32.mrf.mxu0
    %v2192 = vadd.f32 %v2059, %v2191
    %v2193 = vpop.f32.mrf.mxu0
    %v2194 = vpop.f32.mrf.mxu0
    %v2195 = vpop.f32.mrf.mxu0
    %2196 = vdwg.mxu0
    %v2197 = vxor.u32 %v2192, 2147483648
    %v2198 = vmul.f32 %v2197, 1.442695
    %v2199 = vpow.pop %v2198
    %v2200 = vadd.f32 %v2199, 1.0
    %v2201 = vrcp.pop %v2200
    %v2202 = vmul.f32 1.0, %v2201
    %2203 = vst [vmem:[%s14] sm:$0x3] %v2202
    %v2204 = vpack.c.bf16 %v2006, %v2006
    %v2205 = vpack.c.bf16 %v2007, %v2007
    %v2206 = vld [vmem:[%s10] sm:$0xf]
    %v2207 = vld [vmem:[%s10 + $0x4] sm:$0xf]
    %v2208 = vld [vmem:[%s10 + $0x8] sm:$0xf]
    %v2209 = vld [vmem:[%s10 + $0xc] sm:$0xf]
    %v2210 = vld [vmem:[%s10 + $0x10] sm:$0xf]
    %v2211 = vld [vmem:[%s10 + $0x14] sm:$0xf]
    %v2212 = vld [vmem:[%s10 + $0x18] sm:$0xf]
    %v2213 = vld [vmem:[%s10 + $0x1c] sm:$0xf]
    %v2214 = vld [vmem:[%s10 + $0x20] sm:$0xf]
    %v2215 = vld [vmem:[%s10 + $0x24] sm:$0xf]
    %v2216 = vld [vmem:[%s10 + $0x28] sm:$0xf]
    %v2217 = vld [vmem:[%s10 + $0x2c] sm:$0xf]
    %v2218 = vld [vmem:[%s10 + $0x30] sm:$0xf]
    %v2219 = vld [vmem:[%s10 + $0x34] sm:$0xf]
    %v2220 = vld [vmem:[%s10 + $0x38] sm:$0xf]
    %v2221 = vld [vmem:[%s10 + $0x3c] sm:$0xf]
    %v2222 = vld [vmem:[%s10 + $0x40] sm:$0xf]
    %v2223 = vld [vmem:[%s10 + $0x44] sm:$0xf]
    %v2224 = vld [vmem:[%s10 + $0x48] sm:$0xf]
    %v2225 = vld [vmem:[%s10 + $0x4c] sm:$0xf]
    %v2226 = vld [vmem:[%s10 + $0x50] sm:$0xf]
    %v2227 = vld [vmem:[%s10 + $0x54] sm:$0xf]
    %v2228 = vld [vmem:[%s10 + $0x58] sm:$0xf]
    %v2229 = vld [vmem:[%s10 + $0x5c] sm:$0xf]
    %v2230 = vld [vmem:[%s10 + $0x60] sm:$0xf]
    %v2231 = vld [vmem:[%s10 + $0x64] sm:$0xf]
    %v2232 = vld [vmem:[%s10 + $0x68] sm:$0xf]
    %v2233 = vld [vmem:[%s10 + $0x6c] sm:$0xf]
    %v2234 = vld [vmem:[%s10 + $0x70] sm:$0xf]
    %v2235 = vld [vmem:[%s10 + $0x74] sm:$0xf]
    %v2236 = vld [vmem:[%s10 + $0x78] sm:$0xf]
    %v2237 = vld [vmem:[%s10 + $0x7c] sm:$0xf]
    %v2238 = vld [vmem:[%s11] sm:$0x1]
    %v2240 = vlaneseq
    %v2241 = vshrl.u32 %v2240, 7
    %v2242 = vsub.s32 0, %v2241
    %v2243 = vrot.slane %v2238, %v2242
    %v2277 = vunpack.c.l.b16 %v2206
    %v2278 = vunpack.c.l.b16 %v2207
    %v2279 = vunpack.c.l.b16 %v2208
    %v2280 = vunpack.c.l.b16 %v2209
    %v2281 = vunpack.c.l.b16 %v2210
    %v2282 = vunpack.c.l.b16 %v2211
    %v2283 = vunpack.c.l.b16 %v2212
    %v2284 = vunpack.c.l.b16 %v2213
    %v2285 = vunpack.c.l.b16 %v2214
    %v2286 = vunpack.c.l.b16 %v2215
    %v2287 = vunpack.c.l.b16 %v2216
    %v2288 = vunpack.c.l.b16 %v2217
    %v2289 = vunpack.c.l.b16 %v2218
    %v2290 = vunpack.c.l.b16 %v2219
    %v2291 = vunpack.c.l.b16 %v2220
    %v2292 = vunpack.c.l.b16 %v2221
    %v2293 = vunpack.c.l.b16 %v2222
    %v2294 = vunpack.c.l.b16 %v2223
    %v2295 = vunpack.c.l.b16 %v2224
    %v2296 = vunpack.c.l.b16 %v2225
    %v2297 = vunpack.c.l.b16 %v2226
    %v2298 = vunpack.c.l.b16 %v2227
    %v2299 = vunpack.c.l.b16 %v2228
    %v2300 = vunpack.c.l.b16 %v2229
    %v2301 = vunpack.c.l.b16 %v2230
    %v2302 = vunpack.c.l.b16 %v2231
    %v2303 = vunpack.c.l.b16 %v2232
    %v2304 = vunpack.c.l.b16 %v2233
    %v2305 = vunpack.c.l.b16 %v2234
    %v2306 = vunpack.c.l.b16 %v2235
    %v2307 = vunpack.c.l.b16 %v2236
    %v2308 = vunpack.c.l.b16 %v2237
    %v2309 = vpack.c.b16 %v2278, %v2277
    %v2310 = vpack.c.b16 %v2280, %v2279
    %v2311 = vpack.c.b16 %v2282, %v2281
    %v2312 = vpack.c.b16 %v2284, %v2283
    %v2313 = vpack.c.b16 %v2286, %v2285
    %v2314 = vpack.c.b16 %v2288, %v2287
    %v2315 = vpack.c.b16 %v2290, %v2289
    %v2316 = vpack.c.b16 %v2292, %v2291
    %v2317 = vpack.c.b16 %v2294, %v2293
    %v2318 = vpack.c.b16 %v2296, %v2295
    %v2319 = vpack.c.b16 %v2298, %v2297
    %v2320 = vpack.c.b16 %v2300, %v2299
    %v2321 = vpack.c.b16 %v2302, %v2301
    %v2322 = vpack.c.b16 %v2304, %v2303
    %v2323 = vpack.c.b16 %v2306, %v2305
    %v2324 = vpack.c.b16 %v2308, %v2307
    %2341 = vmatprep.subr.bf16.mxu0 0
    %2342 = vmatpush1.bf16.msra.mxu0 %v2316
    %2343 = vmatprep.subr.bf16.mxu0 0
    %2344 = vmatpush1.bf16.msra.mxu0 %v2315
    %2345 = vmatprep.subr.bf16.mxu0 0
    %2346 = vmatpush1.bf16.msra.mxu0 %v2314
    %2347 = vmatprep.subr.bf16.mxu0 0
    %2348 = vmatpush1.bf16.msra.mxu0 %v2313
    %2349 = vmatprep.subr.bf16.mxu0 0
    %2350 = vmatpush1.bf16.msra.mxu0 %v2312
    %2351 = vmatprep.subr.bf16.mxu0 0
    %2352 = vmatpush1.bf16.msra.mxu0 %v2311
    %2353 = vmatprep.subr.bf16.mxu0 0
    %2354 = vmatpush1.bf16.msra.mxu0 %v2310
    %2355 = vmatprep.subr.bf16.mxu0 0
    %2356 = vmatpush1.bf16.msra.mxu0 %v2309
    %2357 = vmatprep.subr.bf16.mxu0 0
    %2358 = vmatpush2.bf16.msra.mxu0 %v2324
    %2359 = vmatprep.subr.bf16.mxu0 0
    %2360 = vmatpush2.bf16.msra.mxu0 %v2323
    %2361 = vmatprep.subr.bf16.mxu0 0
    %2362 = vmatpush2.bf16.msra.mxu0 %v2322
    %2363 = vmatprep.subr.bf16.mxu0 0
    %2364 = vmatpush2.bf16.msra.mxu0 %v2321
    %2365 = vmatprep.subr.bf16.mxu0 0
    %2366 = vmatpush2.bf16.msra.mxu0 %v2320
    %2367 = vmatprep.subr.bf16.mxu0 0
    %2368 = vmatpush2.bf16.msra.mxu0 %v2319
    %2369 = vmatprep.subr.bf16.mxu0 0
    %2370 = vmatpush2.bf16.msra.mxu0 %v2318
    %2371 = vmatprep.subr.bf16.mxu0 0
    %2372 = vmatpush2.bf16.msra.mxu0 %v2317
    %2373 = vmatprep.mubr.bf16.mxu0 %v2205
    %2374 = vmatmul.mubr.bf16.gmra.mxu0 %v2204
    %v2375 = vpop.f32.mrf.mxu0
    %v2376 = vadd.f32 %v2243, %v2375
    %v2377 = vpop.f32.mrf.mxu0
    %v2378 = vpop.f32.mrf.mxu0
    %v2379 = vpop.f32.mrf.mxu0
    %2380 = vdwg.mxu0
    %v2381 = vxor.u32 %v2376, 2147483648
    %v2382 = vmul.f32 %v2381, 1.442695
    %v2383 = vpow.pop %v2382
    %v2384 = vadd.f32 %v2383, 1.0
    %v2385 = vrcp.pop %v2384
    %v2386 = vmul.f32 1.0, %v2385
    %2387 = vst [vmem:[%s14 + $0x2] sm:$0x3] %v2386
    %v2388 = vpack.c.bf16 %v2008, %v2008
    %v2389 = vpack.c.bf16 %v2009, %v2009
    %v2390 = vld [vmem:[%s10] sm:$0xf]
    %v2391 = vld [vmem:[%s10 + $0x4] sm:$0xf]
    %v2392 = vld [vmem:[%s10 + $0x8] sm:$0xf]
    %v2393 = vld [vmem:[%s10 + $0xc] sm:$0xf]
    %v2394 = vld [vmem:[%s10 + $0x10] sm:$0xf]
    %v2395 = vld [vmem:[%s10 + $0x14] sm:$0xf]
    %v2396 = vld [vmem:[%s10 + $0x18] sm:$0xf]
    %v2397 = vld [vmem:[%s10 + $0x1c] sm:$0xf]
    %v2398 = vld [vmem:[%s10 + $0x20] sm:$0xf]
    %v2399 = vld [vmem:[%s10 + $0x24] sm:$0xf]
    %v2400 = vld [vmem:[%s10 + $0x28] sm:$0xf]
    %v2401 = vld [vmem:[%s10 + $0x2c] sm:$0xf]
    %v2402 = vld [vmem:[%s10 + $0x30] sm:$0xf]
    %v2403 = vld [vmem:[%s10 + $0x34] sm:$0xf]
    %v2404 = vld [vmem:[%s10 + $0x38] sm:$0xf]
    %v2405 = vld [vmem:[%s10 + $0x3c] sm:$0xf]
    %v2406 = vld [vmem:[%s10 + $0x40] sm:$0xf]
    %v2407 = vld [vmem:[%s10 + $0x44] sm:$0xf]
    %v2408 = vld [vmem:[%s10 + $0x48] sm:$0xf]
    %v2409 = vld [vmem:[%s10 + $0x4c] sm:$0xf]
    %v2410 = vld [vmem:[%s10 + $0x50] sm:$0xf]
    %v2411 = vld [vmem:[%s10 + $0x54] sm:$0xf]
    %v2412 = vld [vmem:[%s10 + $0x58] sm:$0xf]
    %v2413 = vld [vmem:[%s10 + $0x5c] sm:$0xf]
    %v2414 = vld [vmem:[%s10 + $0x60] sm:$0xf]
    %v2415 = vld [vmem:[%s10 + $0x64] sm:$0xf]
    %v2416 = vld [vmem:[%s10 + $0x68] sm:$0xf]
    %v2417 = vld [vmem:[%s10 + $0x6c] sm:$0xf]
    %v2418 = vld [vmem:[%s10 + $0x70] sm:$0xf]
    %v2419 = vld [vmem:[%s10 + $0x74] sm:$0xf]
    %v2420 = vld [vmem:[%s10 + $0x78] sm:$0xf]
    %v2421 = vld [vmem:[%s10 + $0x7c] sm:$0xf]
    %v2422 = vld [vmem:[%s11] sm:$0x1]
    %v2424 = vlaneseq
    %v2425 = vshrl.u32 %v2424, 7
    %v2426 = vsub.s32 0, %v2425
    %v2427 = vrot.slane %v2422, %v2426
    %v2461 = vunpack.c.l.b16 %v2390
    %v2462 = vunpack.c.l.b16 %v2391
    %v2463 = vunpack.c.l.b16 %v2392
    %v2464 = vunpack.c.l.b16 %v2393
    %v2465 = vunpack.c.l.b16 %v2394
    %v2466 = vunpack.c.l.b16 %v2395
    %v2467 = vunpack.c.l.b16 %v2396
    %v2468 = vunpack.c.l.b16 %v2397
    %v2469 = vunpack.c.l.b16 %v2398
    %v2470 = vunpack.c.l.b16 %v2399
    %v2471 = vunpack.c.l.b16 %v2400
    %v2472 = vunpack.c.l.b16 %v2401
    %v2473 = vunpack.c.l.b16 %v2402
    %v2474 = vunpack.c.l.b16 %v2403
    %v2475 = vunpack.c.l.b16 %v2404
    %v2476 = vunpack.c.l.b16 %v2405
    %v2477 = vunpack.c.l.b16 %v2406
    %v2478 = vunpack.c.l.b16 %v2407
    %v2479 = vunpack.c.l.b16 %v2408
    %v2480 = vunpack.c.l.b16 %v2409
    %v2481 = vunpack.c.l.b16 %v2410
    %v2482 = vunpack.c.l.b16 %v2411
    %v2483 = vunpack.c.l.b16 %v2412
    %v2484 = vunpack.c.l.b16 %v2413
    %v2485 = vunpack.c.l.b16 %v2414
    %v2486 = vunpack.c.l.b16 %v2415
    %v2487 = vunpack.c.l.b16 %v2416
    %v2488 = vunpack.c.l.b16 %v2417
    %v2489 = vunpack.c.l.b16 %v2418
    %v2490 = vunpack.c.l.b16 %v2419
    %v2491 = vunpack.c.l.b16 %v2420
    %v2492 = vunpack.c.l.b16 %v2421
    %v2493 = vpack.c.b16 %v2462, %v2461
    %v2494 = vpack.c.b16 %v2464, %v2463
    %v2495 = vpack.c.b16 %v2466, %v2465
    %v2496 = vpack.c.b16 %v2468, %v2467
    %v2497 = vpack.c.b16 %v2470, %v2469
    %v2498 = vpack.c.b16 %v2472, %v2471
    %v2499 = vpack.c.b16 %v2474, %v2473
    %v2500 = vpack.c.b16 %v2476, %v2475
    %v2501 = vpack.c.b16 %v2478, %v2477
    %v2502 = vpack.c.b16 %v2480, %v2479
    %v2503 = vpack.c.b16 %v2482, %v2481
    %v2504 = vpack.c.b16 %v2484, %v2483
    %v2505 = vpack.c.b16 %v2486, %v2485
    %v2506 = vpack.c.b16 %v2488, %v2487
    %v2507 = vpack.c.b16 %v2490, %v2489
    %v2508 = vpack.c.b16 %v2492, %v2491
    %2525 = vmatprep.subr.bf16.mxu0 0
    %2526 = vmatpush1.bf16.msra.mxu0 %v2500
    %2527 = vmatprep.subr.bf16.mxu0 0
    %2528 = vmatpush1.bf16.msra.mxu0 %v2499
    %2529 = vmatprep.subr.bf16.mxu0 0
    %2530 = vmatpush1.bf16.msra.mxu0 %v2498
    %2531 = vmatprep.subr.bf16.mxu0 0
    %2532 = vmatpush1.bf16.msra.mxu0 %v2497
    %2533 = vmatprep.subr.bf16.mxu0 0
    %2534 = vmatpush1.bf16.msra.mxu0 %v2496
    %2535 = vmatprep.subr.bf16.mxu0 0
    %2536 = vmatpush1.bf16.msra.mxu0 %v2495
    %2537 = vmatprep.subr.bf16.mxu0 0
    %2538 = vmatpush1.bf16.msra.mxu0 %v2494
    %2539 = vmatprep.subr.bf16.mxu0 0
    %2540 = vmatpush1.bf16.msra.mxu0 %v2493
    %2541 = vmatprep.subr.bf16.mxu0 0
    %2542 = vmatpush2.bf16.msra.mxu0 %v2508
    %2543 = vmatprep.subr.bf16.mxu0 0
    %2544 = vmatpush2.bf16.msra.mxu0 %v2507
    %2545 = vmatprep.subr.bf16.mxu0 0
    %2546 = vmatpush2.bf16.msra.mxu0 %v2506
    %2547 = vmatprep.subr.bf16.mxu0 0
    %2548 = vmatpush2.bf16.msra.mxu0 %v2505
    %2549 = vmatprep.subr.bf16.mxu0 0
    %2550 = vmatpush2.bf16.msra.mxu0 %v2504
    %2551 = vmatprep.subr.bf16.mxu0 0
    %2552 = vmatpush2.bf16.msra.mxu0 %v2503
    %2553 = vmatprep.subr.bf16.mxu0 0
    %2554 = vmatpush2.bf16.msra.mxu0 %v2502
    %2555 = vmatprep.subr.bf16.mxu0 0
    %2556 = vmatpush2.bf16.msra.mxu0 %v2501
    %2557 = vmatprep.mubr.bf16.mxu0 %v2389
    %2558 = vmatmul.mubr.bf16.gmra.mxu0 %v2388
    %v2559 = vpop.f32.mrf.mxu0
    %v2560 = vadd.f32 %v2427, %v2559
    %v2561 = vpop.f32.mrf.mxu0
    %v2562 = vpop.f32.mrf.mxu0
    %v2563 = vpop.f32.mrf.mxu0
    %2564 = vdwg.mxu0
    %v2565 = vxor.u32 %v2560, 2147483648
    %v2566 = vmul.f32 %v2565, 1.442695
    %v2567 = vpow.pop %v2566
    %v2568 = vadd.f32 %v2567, 1.0
    %v2569 = vrcp.pop %v2568
    %v2570 = vmul.f32 1.0, %v2569
    %2571 = vst [vmem:[%s14 + $0x4] sm:$0x3] %v2570
    %v2572 = vpack.c.bf16 %v2010, %v2010
    %v2573 = vpack.c.bf16 %v2011, %v2011
    %v2574 = vld [vmem:[%s10] sm:$0xf]
    %v2575 = vld [vmem:[%s10 + $0x4] sm:$0xf]
    %v2576 = vld [vmem:[%s10 + $0x8] sm:$0xf]
    %v2577 = vld [vmem:[%s10 + $0xc] sm:$0xf]
    %v2578 = vld [vmem:[%s10 + $0x10] sm:$0xf]
    %v2579 = vld [vmem:[%s10 + $0x14] sm:$0xf]
    %v2580 = vld [vmem:[%s10 + $0x18] sm:$0xf]
    %v2581 = vld [vmem:[%s10 + $0x1c] sm:$0xf]
    %v2582 = vld [vmem:[%s10 + $0x20] sm:$0xf]
    %v2583 = vld [vmem:[%s10 + $0x24] sm:$0xf]
    %v2584 = vld [vmem:[%s10 + $0x28] sm:$0xf]
    %v2585 = vld [vmem:[%s10 + $0x2c] sm:$0xf]
    %v2586 = vld [vmem:[%s10 + $0x30] sm:$0xf]
    %v2587 = vld [vmem:[%s10 + $0x34] sm:$0xf]
    %v2588 = vld [vmem:[%s10 + $0x38] sm:$0xf]
    %v2589 = vld [vmem:[%s10 + $0x3c] sm:$0xf]
    %v2590 = vld [vmem:[%s10 + $0x40] sm:$0xf]
    %v2591 = vld [vmem:[%s10 + $0x44] sm:$0xf]
    %v2592 = vld [vmem:[%s10 + $0x48] sm:$0xf]
    %v2593 = vld [vmem:[%s10 + $0x4c] sm:$0xf]
    %v2594 = vld [vmem:[%s10 + $0x50] sm:$0xf]
    %v2595 = vld [vmem:[%s10 + $0x54] sm:$0xf]
    %v2596 = vld [vmem:[%s10 + $0x58] sm:$0xf]
    %v2597 = vld [vmem:[%s10 + $0x5c] sm:$0xf]
    %v2598 = vld [vmem:[%s10 + $0x60] sm:$0xf]
    %v2599 = vld [vmem:[%s10 + $0x64] sm:$0xf]
    %v2600 = vld [vmem:[%s10 + $0x68] sm:$0xf]
    %v2601 = vld [vmem:[%s10 + $0x6c] sm:$0xf]
    %v2602 = vld [vmem:[%s10 + $0x70] sm:$0xf]
    %v2603 = vld [vmem:[%s10 + $0x74] sm:$0xf]
    %v2604 = vld [vmem:[%s10 + $0x78] sm:$0xf]
    %v2605 = vld [vmem:[%s10 + $0x7c] sm:$0xf]
    %v2606 = vld [vmem:[%s11] sm:$0x1]
    %v2608 = vlaneseq
    %v2609 = vshrl.u32 %v2608, 7
    %v2610 = vsub.s32 0, %v2609
    %v2611 = vrot.slane %v2606, %v2610
    %v2645 = vunpack.c.l.b16 %v2574
    %v2646 = vunpack.c.l.b16 %v2575
    %v2647 = vunpack.c.l.b16 %v2576
    %v2648 = vunpack.c.l.b16 %v2577
    %v2649 = vunpack.c.l.b16 %v2578
    %v2650 = vunpack.c.l.b16 %v2579
    %v2651 = vunpack.c.l.b16 %v2580
    %v2652 = vunpack.c.l.b16 %v2581
    %v2653 = vunpack.c.l.b16 %v2582
    %v2654 = vunpack.c.l.b16 %v2583
    %v2655 = vunpack.c.l.b16 %v2584
    %v2656 = vunpack.c.l.b16 %v2585
    %v2657 = vunpack.c.l.b16 %v2586
    %v2658 = vunpack.c.l.b16 %v2587
    %v2659 = vunpack.c.l.b16 %v2588
    %v2660 = vunpack.c.l.b16 %v2589
    %v2661 = vunpack.c.l.b16 %v2590
    %v2662 = vunpack.c.l.b16 %v2591
    %v2663 = vunpack.c.l.b16 %v2592
    %v2664 = vunpack.c.l.b16 %v2593
    %v2665 = vunpack.c.l.b16 %v2594
    %v2666 = vunpack.c.l.b16 %v2595
    %v2667 = vunpack.c.l.b16 %v2596
    %v2668 = vunpack.c.l.b16 %v2597
    %v2669 = vunpack.c.l.b16 %v2598
    %v2670 = vunpack.c.l.b16 %v2599
    %v2671 = vunpack.c.l.b16 %v2600
    %v2672 = vunpack.c.l.b16 %v2601
    %v2673 = vunpack.c.l.b16 %v2602
    %v2674 = vunpack.c.l.b16 %v2603
    %v2675 = vunpack.c.l.b16 %v2604
    %v2676 = vunpack.c.l.b16 %v2605
    %v2677 = vpack.c.b16 %v2646, %v2645
    %v2678 = vpack.c.b16 %v2648, %v2647
    %v2679 = vpack.c.b16 %v2650, %v2649
    %v2680 = vpack.c.b16 %v2652, %v2651
    %v2681 = vpack.c.b16 %v2654, %v2653
    %v2682 = vpack.c.b16 %v2656, %v2655
    %v2683 = vpack.c.b16 %v2658, %v2657
    %v2684 = vpack.c.b16 %v2660, %v2659
    %v2685 = vpack.c.b16 %v2662, %v2661
    %v2686 = vpack.c.b16 %v2664, %v2663
    %v2687 = vpack.c.b16 %v2666, %v2665
    %v2688 = vpack.c.b16 %v2668, %v2667
    %v2689 = vpack.c.b16 %v2670, %v2669
    %v2690 = vpack.c.b16 %v2672, %v2671
    %v2691 = vpack.c.b16 %v2674, %v2673
    %v2692 = vpack.c.b16 %v2676, %v2675
    %2709 = vmatprep.subr.bf16.mxu0 0
    %2710 = vmatpush1.bf16.msra.mxu0 %v2684
    %2711 = vmatprep.subr.bf16.mxu0 0
    %2712 = vmatpush1.bf16.msra.mxu0 %v2683
    %2713 = vmatprep.subr.bf16.mxu0 0
    %2714 = vmatpush1.bf16.msra.mxu0 %v2682
    %2715 = vmatprep.subr.bf16.mxu0 0
    %2716 = vmatpush1.bf16.msra.mxu0 %v2681
    %2717 = vmatprep.subr.bf16.mxu0 0
    %2718 = vmatpush1.bf16.msra.mxu0 %v2680
    %2719 = vmatprep.subr.bf16.mxu0 0
    %2720 = vmatpush1.bf16.msra.mxu0 %v2679
    %2721 = vmatprep.subr.bf16.mxu0 0
    %2722 = vmatpush1.bf16.msra.mxu0 %v2678
    %2723 = vmatprep.subr.bf16.mxu0 0
    %2724 = vmatpush1.bf16.msra.mxu0 %v2677
    %2725 = vmatprep.subr.bf16.mxu0 0
    %2726 = vmatpush2.bf16.msra.mxu0 %v2692
    %2727 = vmatprep.subr.bf16.mxu0 0
    %2728 = vmatpush2.bf16.msra.mxu0 %v2691
    %2729 = vmatprep.subr.bf16.mxu0 0
    %2730 = vmatpush2.bf16.msra.mxu0 %v2690
    %2731 = vmatprep.subr.bf16.mxu0 0
    %2732 = vmatpush2.bf16.msra.mxu0 %v2689
    %2733 = vmatprep.subr.bf16.mxu0 0
    %2734 = vmatpush2.bf16.msra.mxu0 %v2688
    %2735 = vmatprep.subr.bf16.mxu0 0
    %2736 = vmatpush2.bf16.msra.mxu0 %v2687
    %2737 = vmatprep.subr.bf16.mxu0 0
    %2738 = vmatpush2.bf16.msra.mxu0 %v2686
    %2739 = vmatprep.subr.bf16.mxu0 0
    %2740 = vmatpush2.bf16.msra.mxu0 %v2685
    %2741 = vmatprep.mubr.bf16.mxu0 %v2573
    %2742 = vmatmul.mubr.bf16.gmra.mxu0 %v2572
    %v2743 = vpop.f32.mrf.mxu0
    %v2744 = vadd.f32 %v2611, %v2743
    %v2745 = vpop.f32.mrf.mxu0
    %v2746 = vpop.f32.mrf.mxu0
    %v2747 = vpop.f32.mrf.mxu0
    %2748 = vdwg.mxu0
    %v2749 = vxor.u32 %v2744, 2147483648
    %v2750 = vmul.f32 %v2749, 1.442695
    %v2751 = vpow.pop %v2750
    %v2752 = vadd.f32 %v2751, 1.0
    %v2753 = vrcp.pop %v2752
    %v2754 = vmul.f32 1.0, %v2753
    %2755 = vst [vmem:[%s14 + $0x6] sm:$0x3] %v2754
    %v2756 = vpack.c.bf16 %v2012, %v2012
    %v2757 = vpack.c.bf16 %v2013, %v2013
    %v2758 = vld [vmem:[%s10] sm:$0xf]
    %v2759 = vld [vmem:[%s10 + $0x4] sm:$0xf]
    %v2760 = vld [vmem:[%s10 + $0x8] sm:$0xf]
    %v2761 = vld [vmem:[%s10 + $0xc] sm:$0xf]
    %v2762 = vld [vmem:[%s10 + $0x10] sm:$0xf]
    %v2763 = vld [vmem:[%s10 + $0x14] sm:$0xf]
    %v2764 = vld [vmem:[%s10 + $0x18] sm:$0xf]
    %v2765 = vld [vmem:[%s10 + $0x1c] sm:$0xf]
    %v2766 = vld [vmem:[%s10 + $0x20] sm:$0xf]
    %v2767 = vld [vmem:[%s10 + $0x24] sm:$0xf]
    %v2768 = vld [vmem:[%s10 + $0x28] sm:$0xf]
    %v2769 = vld [vmem:[%s10 + $0x2c] sm:$0xf]
    %v2770 = vld [vmem:[%s10 + $0x30] sm:$0xf]
    %v2771 = vld [vmem:[%s10 + $0x34] sm:$0xf]
    %v2772 = vld [vmem:[%s10 + $0x38] sm:$0xf]
    %v2773 = vld [vmem:[%s10 + $0x3c] sm:$0xf]
    %v2774 = vld [vmem:[%s10 + $0x40] sm:$0xf]
    %v2775 = vld [vmem:[%s10 + $0x44] sm:$0xf]
    %v2776 = vld [vmem:[%s10 + $0x48] sm:$0xf]
    %v2777 = vld [vmem:[%s10 + $0x4c] sm:$0xf]
    %v2778 = vld [vmem:[%s10 + $0x50] sm:$0xf]
    %v2779 = vld [vmem:[%s10 + $0x54] sm:$0xf]
    %v2780 = vld [vmem:[%s10 + $0x58] sm:$0xf]
    %v2781 = vld [vmem:[%s10 + $0x5c] sm:$0xf]
    %v2782 = vld [vmem:[%s10 + $0x60] sm:$0xf]
    %v2783 = vld [vmem:[%s10 + $0x64] sm:$0xf]
    %v2784 = vld [vmem:[%s10 + $0x68] sm:$0xf]
    %v2785 = vld [vmem:[%s10 + $0x6c] sm:$0xf]
    %v2786 = vld [vmem:[%s10 + $0x70] sm:$0xf]
    %v2787 = vld [vmem:[%s10 + $0x74] sm:$0xf]
    %v2788 = vld [vmem:[%s10 + $0x78] sm:$0xf]
    %v2789 = vld [vmem:[%s10 + $0x7c] sm:$0xf]
    %v2790 = vld [vmem:[%s11] sm:$0x1]
    %v2792 = vlaneseq
    %v2793 = vshrl.u32 %v2792, 7
    %v2794 = vsub.s32 0, %v2793
    %v2795 = vrot.slane %v2790, %v2794
    %v2829 = vunpack.c.l.b16 %v2758
    %v2830 = vunpack.c.l.b16 %v2759
    %v2831 = vunpack.c.l.b16 %v2760
    %v2832 = vunpack.c.l.b16 %v2761
    %v2833 = vunpack.c.l.b16 %v2762
    %v2834 = vunpack.c.l.b16 %v2763
    %v2835 = vunpack.c.l.b16 %v2764
    %v2836 = vunpack.c.l.b16 %v2765
    %v2837 = vunpack.c.l.b16 %v2766
    %v2838 = vunpack.c.l.b16 %v2767
    %v2839 = vunpack.c.l.b16 %v2768
    %v2840 = vunpack.c.l.b16 %v2769
    %v2841 = vunpack.c.l.b16 %v2770
    %v2842 = vunpack.c.l.b16 %v2771
    %v2843 = vunpack.c.l.b16 %v2772
    %v2844 = vunpack.c.l.b16 %v2773
    %v2845 = vunpack.c.l.b16 %v2774
    %v2846 = vunpack.c.l.b16 %v2775
    %v2847 = vunpack.c.l.b16 %v2776
    %v2848 = vunpack.c.l.b16 %v2777
    %v2849 = vunpack.c.l.b16 %v2778
    %v2850 = vunpack.c.l.b16 %v2779
    %v2851 = vunpack.c.l.b16 %v2780
    %v2852 = vunpack.c.l.b16 %v2781
    %v2853 = vunpack.c.l.b16 %v2782
    %v2854 = vunpack.c.l.b16 %v2783
    %v2855 = vunpack.c.l.b16 %v2784
    %v2856 = vunpack.c.l.b16 %v2785
    %v2857 = vunpack.c.l.b16 %v2786
    %v2858 = vunpack.c.l.b16 %v2787
    %v2859 = vunpack.c.l.b16 %v2788
    %v2860 = vunpack.c.l.b16 %v2789
    %v2861 = vpack.c.b16 %v2830, %v2829
    %v2862 = vpack.c.b16 %v2832, %v2831
    %v2863 = vpack.c.b16 %v2834, %v2833
    %v2864 = vpack.c.b16 %v2836, %v2835
    %v2865 = vpack.c.b16 %v2838, %v2837
    %v2866 = vpack.c.b16 %v2840, %v2839
    %v2867 = vpack.c.b16 %v2842, %v2841
    %v2868 = vpack.c.b16 %v2844, %v2843
    %v2869 = vpack.c.b16 %v2846, %v2845
    %v2870 = vpack.c.b16 %v2848, %v2847
    %v2871 = vpack.c.b16 %v2850, %v2849
    %v2872 = vpack.c.b16 %v2852, %v2851
    %v2873 = vpack.c.b16 %v2854, %v2853
    %v2874 = vpack.c.b16 %v2856, %v2855
    %v2875 = vpack.c.b16 %v2858, %v2857
    %v2876 = vpack.c.b16 %v2860, %v2859
    %2893 = vmatprep.subr.bf16.mxu0 0
    %2894 = vmatpush1.bf16.msra.mxu0 %v2868
    %2895 = vmatprep.subr.bf16.mxu0 0
    %2896 = vmatpush1.bf16.msra.mxu0 %v2867
    %2897 = vmatprep.subr.bf16.mxu0 0
    %2898 = vmatpush1.bf16.msra.mxu0 %v2866
    %2899 = vmatprep.subr.bf16.mxu0 0
    %2900 = vmatpush1.bf16.msra.mxu0 %v2865
    %2901 = vmatprep.subr.bf16.mxu0 0
    %2902 = vmatpush1.bf16.msra.mxu0 %v2864
    %2903 = vmatprep.subr.bf16.mxu0 0
    %2904 = vmatpush1.bf16.msra.mxu0 %v2863
    %2905 = vmatprep.subr.bf16.mxu0 0
    %2906 = vmatpush1.bf16.msra.mxu0 %v2862
    %2907 = vmatprep.subr.bf16.mxu0 0
    %2908 = vmatpush1.bf16.msra.mxu0 %v2861
    %2909 = vmatprep.subr.bf16.mxu0 0
    %2910 = vmatpush2.bf16.msra.mxu0 %v2876
    %2911 = vmatprep.subr.bf16.mxu0 0
    %2912 = vmatpush2.bf16.msra.mxu0 %v2875
    %2913 = vmatprep.subr.bf16.mxu0 0
    %2914 = vmatpush2.bf16.msra.mxu0 %v2874
    %2915 = vmatprep.subr.bf16.mxu0 0
    %2916 = vmatpush2.bf16.msra.mxu0 %v2873
    %2917 = vmatprep.subr.bf16.mxu0 0
    %2918 = vmatpush2.bf16.msra.mxu0 %v2872
    %2919 = vmatprep.subr.bf16.mxu0 0
    %2920 = vmatpush2.bf16.msra.mxu0 %v2871
    %2921 = vmatprep.subr.bf16.mxu0 0
    %2922 = vmatpush2.bf16.msra.mxu0 %v2870
    %2923 = vmatprep.subr.bf16.mxu0 0
    %2924 = vmatpush2.bf16.msra.mxu0 %v2869
    %2925 = vmatprep.mubr.bf16.mxu0 %v2757
    %2926 = vmatmul.mubr.bf16.gmra.mxu0 %v2756
    %v2927 = vpop.f32.mrf.mxu0
    %v2928 = vadd.f32 %v2795, %v2927
    %v2929 = vpop.f32.mrf.mxu0
    %v2930 = vpop.f32.mrf.mxu0
    %v2931 = vpop.f32.mrf.mxu0
    %2932 = vdwg.mxu0
    %v2933 = vxor.u32 %v2928, 2147483648
    %v2934 = vmul.f32 %v2933, 1.442695
    %v2935 = vpow.pop %v2934
    %v2936 = vadd.f32 %v2935, 1.0
    %v2937 = vrcp.pop %v2936
    %v2938 = vmul.f32 1.0, %v2937
    %2939 = vst [vmem:[%s14 + $0x8] sm:$0x3] %v2938
    %v2940 = vpack.c.bf16 %v2014, %v2014
    %v2941 = vpack.c.bf16 %v2015, %v2015
    %v2942 = vld [vmem:[%s10] sm:$0xf]
    %v2943 = vld [vmem:[%s10 + $0x4] sm:$0xf]
    %v2944 = vld [vmem:[%s10 + $0x8] sm:$0xf]
    %v2945 = vld [vmem:[%s10 + $0xc] sm:$0xf]
    %v2946 = vld [vmem:[%s10 + $0x10] sm:$0xf]
    %v2947 = vld [vmem:[%s10 + $0x14] sm:$0xf]
    %v2948 = vld [vmem:[%s10 + $0x18] sm:$0xf]
    %v2949 = vld [vmem:[%s10 + $0x1c] sm:$0xf]
    %v2950 = vld [vmem:[%s10 + $0x20] sm:$0xf]
    %v2951 = vld [vmem:[%s10 + $0x24] sm:$0xf]
    %v2952 = vld [vmem:[%s10 + $0x28] sm:$0xf]
    %v2953 = vld [vmem:[%s10 + $0x2c] sm:$0xf]
    %v2954 = vld [vmem:[%s10 + $0x30] sm:$0xf]
    %v2955 = vld [vmem:[%s10 + $0x34] sm:$0xf]
    %v2956 = vld [vmem:[%s10 + $0x38] sm:$0xf]
    %v2957 = vld [vmem:[%s10 + $0x3c] sm:$0xf]
    %v2958 = vld [vmem:[%s10 + $0x40] sm:$0xf]
    %v2959 = vld [vmem:[%s10 + $0x44] sm:$0xf]
    %v2960 = vld [vmem:[%s10 + $0x48] sm:$0xf]
    %v2961 = vld [vmem:[%s10 + $0x4c] sm:$0xf]
    %v2962 = vld [vmem:[%s10 + $0x50] sm:$0xf]
    %v2963 = vld [vmem:[%s10 + $0x54] sm:$0xf]
    %v2964 = vld [vmem:[%s10 + $0x58] sm:$0xf]
    %v2965 = vld [vmem:[%s10 + $0x5c] sm:$0xf]
    %v2966 = vld [vmem:[%s10 + $0x60] sm:$0xf]
    %v2967 = vld [vmem:[%s10 + $0x64] sm:$0xf]
    %v2968 = vld [vmem:[%s10 + $0x68] sm:$0xf]
    %v2969 = vld [vmem:[%s10 + $0x6c] sm:$0xf]
    %v2970 = vld [vmem:[%s10 + $0x70] sm:$0xf]
    %v2971 = vld [vmem:[%s10 + $0x74] sm:$0xf]
    %v2972 = vld [vmem:[%s10 + $0x78] sm:$0xf]
    %v2973 = vld [vmem:[%s10 + $0x7c] sm:$0xf]
    %v2974 = vld [vmem:[%s11] sm:$0x1]
    %v2976 = vlaneseq
    %v2977 = vshrl.u32 %v2976, 7
    %v2978 = vsub.s32 0, %v2977
    %v2979 = vrot.slane %v2974, %v2978
    %v3013 = vunpack.c.l.b16 %v2942
    %v3014 = vunpack.c.l.b16 %v2943
    %v3015 = vunpack.c.l.b16 %v2944
    %v3016 = vunpack.c.l.b16 %v2945
    %v3017 = vunpack.c.l.b16 %v2946
    %v3018 = vunpack.c.l.b16 %v2947
    %v3019 = vunpack.c.l.b16 %v2948
    %v3020 = vunpack.c.l.b16 %v2949
    %v3021 = vunpack.c.l.b16 %v2950
    %v3022 = vunpack.c.l.b16 %v2951
    %v3023 = vunpack.c.l.b16 %v2952
    %v3024 = vunpack.c.l.b16 %v2953
    %v3025 = vunpack.c.l.b16 %v2954
    %v3026 = vunpack.c.l.b16 %v2955
    %v3027 = vunpack.c.l.b16 %v2956
    %v3028 = vunpack.c.l.b16 %v2957
    %v3029 = vunpack.c.l.b16 %v2958
    %v3030 = vunpack.c.l.b16 %v2959
    %v3031 = vunpack.c.l.b16 %v2960
    %v3032 = vunpack.c.l.b16 %v2961
    %v3033 = vunpack.c.l.b16 %v2962
    %v3034 = vunpack.c.l.b16 %v2963
    %v3035 = vunpack.c.l.b16 %v2964
    %v3036 = vunpack.c.l.b16 %v2965
    %v3037 = vunpack.c.l.b16 %v2966
    %v3038 = vunpack.c.l.b16 %v2967
    %v3039 = vunpack.c.l.b16 %v2968
    %v3040 = vunpack.c.l.b16 %v2969
    %v3041 = vunpack.c.l.b16 %v2970
    %v3042 = vunpack.c.l.b16 %v2971
    %v3043 = vunpack.c.l.b16 %v2972
    %v3044 = vunpack.c.l.b16 %v2973
    %v3045 = vpack.c.b16 %v3014, %v3013
    %v3046 = vpack.c.b16 %v3016, %v3015
    %v3047 = vpack.c.b16 %v3018, %v3017
    %v3048 = vpack.c.b16 %v3020, %v3019
    %v3049 = vpack.c.b16 %v3022, %v3021
    %v3050 = vpack.c.b16 %v3024, %v3023
    %v3051 = vpack.c.b16 %v3026, %v3025
    %v3052 = vpack.c.b16 %v3028, %v3027
    %v3053 = vpack.c.b16 %v3030, %v3029
    %v3054 = vpack.c.b16 %v3032, %v3031
    %v3055 = vpack.c.b16 %v3034, %v3033
    %v3056 = vpack.c.b16 %v3036, %v3035
    %v3057 = vpack.c.b16 %v3038, %v3037
    %v3058 = vpack.c.b16 %v3040, %v3039
    %v3059 = vpack.c.b16 %v3042, %v3041
    %v3060 = vpack.c.b16 %v3044, %v3043
    %3077 = vmatprep.subr.bf16.mxu0 0
    %3078 = vmatpush1.bf16.msra.mxu0 %v3052
    %3079 = vmatprep.subr.bf16.mxu0 0
    %3080 = vmatpush1.bf16.msra.mxu0 %v3051
    %3081 = vmatprep.subr.bf16.mxu0 0
    %3082 = vmatpush1.bf16.msra.mxu0 %v3050
    %3083 = vmatprep.subr.bf16.mxu0 0
    %3084 = vmatpush1.bf16.msra.mxu0 %v3049
    %3085 = vmatprep.subr.bf16.mxu0 0
    %3086 = vmatpush1.bf16.msra.mxu0 %v3048
    %3087 = vmatprep.subr.bf16.mxu0 0
    %3088 = vmatpush1.bf16.msra.mxu0 %v3047
    %3089 = vmatprep.subr.bf16.mxu0 0
    %3090 = vmatpush1.bf16.msra.mxu0 %v3046
    %3091 = vmatprep.subr.bf16.mxu0 0
    %3092 = vmatpush1.bf16.msra.mxu0 %v3045
    %3093 = vmatprep.subr.bf16.mxu0 0
    %3094 = vmatpush2.bf16.msra.mxu0 %v3060
    %3095 = vmatprep.subr.bf16.mxu0 0
    %3096 = vmatpush2.bf16.msra.mxu0 %v3059
    %3097 = vmatprep.subr.bf16.mxu0 0
    %3098 = vmatpush2.bf16.msra.mxu0 %v3058
    %3099 = vmatprep.subr.bf16.mxu0 0
    %3100 = vmatpush2.bf16.msra.mxu0 %v3057
    %3101 = vmatprep.subr.bf16.mxu0 0
    %3102 = vmatpush2.bf16.msra.mxu0 %v3056
    %3103 = vmatprep.subr.bf16.mxu0 0
    %3104 = vmatpush2.bf16.msra.mxu0 %v3055
    %3105 = vmatprep.subr.bf16.mxu0 0
    %3106 = vmatpush2.bf16.msra.mxu0 %v3054
    %3107 = vmatprep.subr.bf16.mxu0 0
    %3108 = vmatpush2.bf16.msra.mxu0 %v3053
    %3109 = vmatprep.mubr.bf16.mxu0 %v2941
    %3110 = vmatmul.mubr.bf16.gmra.mxu0 %v2940
    %v3111 = vpop.f32.mrf.mxu0
    %v3112 = vadd.f32 %v2979, %v3111
    %v3113 = vpop.f32.mrf.mxu0
    %v3114 = vpop.f32.mrf.mxu0
    %v3115 = vpop.f32.mrf.mxu0
    %3116 = vdwg.mxu0
    %v3117 = vxor.u32 %v3112, 2147483648
    %v3118 = vmul.f32 %v3117, 1.442695
    %v3119 = vpow.pop %v3118
    %v3120 = vadd.f32 %v3119, 1.0
    %v3121 = vrcp.pop %v3120
    %v3122 = vmul.f32 1.0, %v3121
    %3123 = vst [vmem:[%s14 + $0xa] sm:$0x3] %v3122
    %v3124 = vpack.c.bf16 %v2016, %v2016
    %v3125 = vpack.c.bf16 %v2017, %v2017
    %v3126 = vld [vmem:[%s10] sm:$0xf]
    %v3127 = vld [vmem:[%s10 + $0x4] sm:$0xf]
    %v3128 = vld [vmem:[%s10 + $0x8] sm:$0xf]
    %v3129 = vld [vmem:[%s10 + $0xc] sm:$0xf]
    %v3130 = vld [vmem:[%s10 + $0x10] sm:$0xf]
    %v3131 = vld [vmem:[%s10 + $0x14] sm:$0xf]
    %v3132 = vld [vmem:[%s10 + $0x18] sm:$0xf]
    %v3133 = vld [vmem:[%s10 + $0x1c] sm:$0xf]
    %v3134 = vld [vmem:[%s10 + $0x20] sm:$0xf]
    %v3135 = vld [vmem:[%s10 + $0x24] sm:$0xf]
    %v3136 = vld [vmem:[%s10 + $0x28] sm:$0xf]
    %v3137 = vld [vmem:[%s10 + $0x2c] sm:$0xf]
    %v3138 = vld [vmem:[%s10 + $0x30] sm:$0xf]
    %v3139 = vld [vmem:[%s10 + $0x34] sm:$0xf]
    %v3140 = vld [vmem:[%s10 + $0x38] sm:$0xf]
    %v3141 = vld [vmem:[%s10 + $0x3c] sm:$0xf]
    %v3142 = vld [vmem:[%s10 + $0x40] sm:$0xf]
    %v3143 = vld [vmem:[%s10 + $0x44] sm:$0xf]
    %v3144 = vld [vmem:[%s10 + $0x48] sm:$0xf]
    %v3145 = vld [vmem:[%s10 + $0x4c] sm:$0xf]
    %v3146 = vld [vmem:[%s10 + $0x50] sm:$0xf]
    %v3147 = vld [vmem:[%s10 + $0x54] sm:$0xf]
    %v3148 = vld [vmem:[%s10 + $0x58] sm:$0xf]
    %v3149 = vld [vmem:[%s10 + $0x5c] sm:$0xf]
    %v3150 = vld [vmem:[%s10 + $0x60] sm:$0xf]
    %v3151 = vld [vmem:[%s10 + $0x64] sm:$0xf]
    %v3152 = vld [vmem:[%s10 + $0x68] sm:$0xf]
    %v3153 = vld [vmem:[%s10 + $0x6c] sm:$0xf]
    %v3154 = vld [vmem:[%s10 + $0x70] sm:$0xf]
    %v3155 = vld [vmem:[%s10 + $0x74] sm:$0xf]
    %v3156 = vld [vmem:[%s10 + $0x78] sm:$0xf]
    %v3157 = vld [vmem:[%s10 + $0x7c] sm:$0xf]
    %v3158 = vld [vmem:[%s11] sm:$0x1]
    %v3160 = vlaneseq
    %v3161 = vshrl.u32 %v3160, 7
    %v3162 = vsub.s32 0, %v3161
    %v3163 = vrot.slane %v3158, %v3162
    %v3197 = vunpack.c.l.b16 %v3126
    %v3198 = vunpack.c.l.b16 %v3127
    %v3199 = vunpack.c.l.b16 %v3128
    %v3200 = vunpack.c.l.b16 %v3129
    %v3201 = vunpack.c.l.b16 %v3130
    %v3202 = vunpack.c.l.b16 %v3131
    %v3203 = vunpack.c.l.b16 %v3132
    %v3204 = vunpack.c.l.b16 %v3133
    %v3205 = vunpack.c.l.b16 %v3134
    %v3206 = vunpack.c.l.b16 %v3135
    %v3207 = vunpack.c.l.b16 %v3136
    %v3208 = vunpack.c.l.b16 %v3137
    %v3209 = vunpack.c.l.b16 %v3138
    %v3210 = vunpack.c.l.b16 %v3139
    %v3211 = vunpack.c.l.b16 %v3140
    %v3212 = vunpack.c.l.b16 %v3141
    %v3213 = vunpack.c.l.b16 %v3142
    %v3214 = vunpack.c.l.b16 %v3143
    %v3215 = vunpack.c.l.b16 %v3144
    %v3216 = vunpack.c.l.b16 %v3145
    %v3217 = vunpack.c.l.b16 %v3146
    %v3218 = vunpack.c.l.b16 %v3147
    %v3219 = vunpack.c.l.b16 %v3148
    %v3220 = vunpack.c.l.b16 %v3149
    %v3221 = vunpack.c.l.b16 %v3150
    %v3222 = vunpack.c.l.b16 %v3151
    %v3223 = vunpack.c.l.b16 %v3152
    %v3224 = vunpack.c.l.b16 %v3153
    %v3225 = vunpack.c.l.b16 %v3154
    %v3226 = vunpack.c.l.b16 %v3155
    %v3227 = vunpack.c.l.b16 %v3156
    %v3228 = vunpack.c.l.b16 %v3157
    %v3229 = vpack.c.b16 %v3198, %v3197
    %v3230 = vpack.c.b16 %v3200, %v3199
    %v3231 = vpack.c.b16 %v3202, %v3201
    %v3232 = vpack.c.b16 %v3204, %v3203
    %v3233 = vpack.c.b16 %v3206, %v3205
    %v3234 = vpack.c.b16 %v3208, %v3207
    %v3235 = vpack.c.b16 %v3210, %v3209
    %v3236 = vpack.c.b16 %v3212, %v3211
    %v3237 = vpack.c.b16 %v3214, %v3213
    %v3238 = vpack.c.b16 %v3216, %v3215
    %v3239 = vpack.c.b16 %v3218, %v3217
    %v3240 = vpack.c.b16 %v3220, %v3219
    %v3241 = vpack.c.b16 %v3222, %v3221
    %v3242 = vpack.c.b16 %v3224, %v3223
    %v3243 = vpack.c.b16 %v3226, %v3225
    %v3244 = vpack.c.b16 %v3228, %v3227
    %3261 = vmatprep.subr.bf16.mxu0 0
    %3262 = vmatpush1.bf16.msra.mxu0 %v3236
    %3263 = vmatprep.subr.bf16.mxu0 0
    %3264 = vmatpush1.bf16.msra.mxu0 %v3235
    %3265 = vmatprep.subr.bf16.mxu0 0
    %3266 = vmatpush1.bf16.msra.mxu0 %v3234
    %3267 = vmatprep.subr.bf16.mxu0 0
    %3268 = vmatpush1.bf16.msra.mxu0 %v3233
    %3269 = vmatprep.subr.bf16.mxu0 0
    %3270 = vmatpush1.bf16.msra.mxu0 %v3232
    %3271 = vmatprep.subr.bf16.mxu0 0
    %3272 = vmatpush1.bf16.msra.mxu0 %v3231
    %3273 = vmatprep.subr.bf16.mxu0 0
    %3274 = vmatpush1.bf16.msra.mxu0 %v3230
    %3275 = vmatprep.subr.bf16.mxu0 0
    %3276 = vmatpush1.bf16.msra.mxu0 %v3229
    %3277 = vmatprep.subr.bf16.mxu0 0
    %3278 = vmatpush2.bf16.msra.mxu0 %v3244
    %3279 = vmatprep.subr.bf16.mxu0 0
    %3280 = vmatpush2.bf16.msra.mxu0 %v3243
    %3281 = vmatprep.subr.bf16.mxu0 0
    %3282 = vmatpush2.bf16.msra.mxu0 %v3242
    %3283 = vmatprep.subr.bf16.mxu0 0
    %3284 = vmatpush2.bf16.msra.mxu0 %v3241
    %3285 = vmatprep.subr.bf16.mxu0 0
    %3286 = vmatpush2.bf16.msra.mxu0 %v3240
    %3287 = vmatprep.subr.bf16.mxu0 0
    %3288 = vmatpush2.bf16.msra.mxu0 %v3239
    %3289 = vmatprep.subr.bf16.mxu0 0
    %3290 = vmatpush2.bf16.msra.mxu0 %v3238
    %3291 = vmatprep.subr.bf16.mxu0 0
    %3292 = vmatpush2.bf16.msra.mxu0 %v3237
    %3293 = vmatprep.mubr.bf16.mxu0 %v3125
    %3294 = vmatmul.mubr.bf16.gmra.mxu0 %v3124
    %v3295 = vpop.f32.mrf.mxu0
    %v3296 = vadd.f32 %v3163, %v3295
    %v3297 = vpop.f32.mrf.mxu0
    %v3298 = vpop.f32.mrf.mxu0
    %v3299 = vpop.f32.mrf.mxu0
    %3300 = vdwg.mxu0
    %v3301 = vxor.u32 %v3296, 2147483648
    %v3302 = vmul.f32 %v3301, 1.442695
    %v3303 = vpow.pop %v3302
    %v3304 = vadd.f32 %v3303, 1.0
    %v3305 = vrcp.pop %v3304
    %v3306 = vmul.f32 1.0, %v3305
    %3307 = vst [vmem:[%s14 + $0xc] sm:$0x3] %v3306
    %v3308 = vpack.c.bf16 %v2018, %v2018
    %v3309 = vpack.c.bf16 %v2019, %v2019
    %v3310 = vld [vmem:[%s10] sm:$0xf]
    %v3311 = vld [vmem:[%s10 + $0x4] sm:$0xf]
    %v3312 = vld [vmem:[%s10 + $0x8] sm:$0xf]
    %v3313 = vld [vmem:[%s10 + $0xc] sm:$0xf]
    %v3314 = vld [vmem:[%s10 + $0x10] sm:$0xf]
    %v3315 = vld [vmem:[%s10 + $0x14] sm:$0xf]
    %v3316 = vld [vmem:[%s10 + $0x18] sm:$0xf]
    %v3317 = vld [vmem:[%s10 + $0x1c] sm:$0xf]
    %v3318 = vld [vmem:[%s10 + $0x20] sm:$0xf]
    %v3319 = vld [vmem:[%s10 + $0x24] sm:$0xf]
    %v3320 = vld [vmem:[%s10 + $0x28] sm:$0xf]
    %v3321 = vld [vmem:[%s10 + $0x2c] sm:$0xf]
    %v3322 = vld [vmem:[%s10 + $0x30] sm:$0xf]
    %v3323 = vld [vmem:[%s10 + $0x34] sm:$0xf]
    %v3324 = vld [vmem:[%s10 + $0x38] sm:$0xf]
    %v3325 = vld [vmem:[%s10 + $0x3c] sm:$0xf]
    %v3326 = vld [vmem:[%s10 + $0x40] sm:$0xf]
    %v3327 = vld [vmem:[%s10 + $0x44] sm:$0xf]
    %v3328 = vld [vmem:[%s10 + $0x48] sm:$0xf]
    %v3329 = vld [vmem:[%s10 + $0x4c] sm:$0xf]
    %v3330 = vld [vmem:[%s10 + $0x50] sm:$0xf]
    %v3331 = vld [vmem:[%s10 + $0x54] sm:$0xf]
    %v3332 = vld [vmem:[%s10 + $0x58] sm:$0xf]
    %v3333 = vld [vmem:[%s10 + $0x5c] sm:$0xf]
    %v3334 = vld [vmem:[%s10 + $0x60] sm:$0xf]
    %v3335 = vld [vmem:[%s10 + $0x64] sm:$0xf]
    %v3336 = vld [vmem:[%s10 + $0x68] sm:$0xf]
    %v3337 = vld [vmem:[%s10 + $0x6c] sm:$0xf]
    %v3338 = vld [vmem:[%s10 + $0x70] sm:$0xf]
    %v3339 = vld [vmem:[%s10 + $0x74] sm:$0xf]
    %v3340 = vld [vmem:[%s10 + $0x78] sm:$0xf]
    %v3341 = vld [vmem:[%s10 + $0x7c] sm:$0xf]
    %v3342 = vld [vmem:[%s11] sm:$0x1]
    %v3344 = vlaneseq
    %v3345 = vshrl.u32 %v3344, 7
    %v3346 = vsub.s32 0, %v3345
    %v3347 = vrot.slane %v3342, %v3346
    %v3381 = vunpack.c.l.b16 %v3310
    %v3382 = vunpack.c.l.b16 %v3311
    %v3383 = vunpack.c.l.b16 %v3312
    %v3384 = vunpack.c.l.b16 %v3313
    %v3385 = vunpack.c.l.b16 %v3314
    %v3386 = vunpack.c.l.b16 %v3315
    %v3387 = vunpack.c.l.b16 %v3316
    %v3388 = vunpack.c.l.b16 %v3317
    %v3389 = vunpack.c.l.b16 %v3318
    %v3390 = vunpack.c.l.b16 %v3319
    %v3391 = vunpack.c.l.b16 %v3320
    %v3392 = vunpack.c.l.b16 %v3321
    %v3393 = vunpack.c.l.b16 %v3322
    %v3394 = vunpack.c.l.b16 %v3323
    %v3395 = vunpack.c.l.b16 %v3324
    %v3396 = vunpack.c.l.b16 %v3325
    %v3397 = vunpack.c.l.b16 %v3326
    %v3398 = vunpack.c.l.b16 %v3327
    %v3399 = vunpack.c.l.b16 %v3328
    %v3400 = vunpack.c.l.b16 %v3329
    %v3401 = vunpack.c.l.b16 %v3330
    %v3402 = vunpack.c.l.b16 %v3331
    %v3403 = vunpack.c.l.b16 %v3332
    %v3404 = vunpack.c.l.b16 %v3333
    %v3405 = vunpack.c.l.b16 %v3334
    %v3406 = vunpack.c.l.b16 %v3335
    %v3407 = vunpack.c.l.b16 %v3336
    %v3408 = vunpack.c.l.b16 %v3337
    %v3409 = vunpack.c.l.b16 %v3338
    %v3410 = vunpack.c.l.b16 %v3339
    %v3411 = vunpack.c.l.b16 %v3340
    %v3412 = vunpack.c.l.b16 %v3341
    %v3413 = vpack.c.b16 %v3382, %v3381
    %v3414 = vpack.c.b16 %v3384, %v3383
    %v3415 = vpack.c.b16 %v3386, %v3385
    %v3416 = vpack.c.b16 %v3388, %v3387
    %v3417 = vpack.c.b16 %v3390, %v3389
    %v3418 = vpack.c.b16 %v3392, %v3391
    %v3419 = vpack.c.b16 %v3394, %v3393
    %v3420 = vpack.c.b16 %v3396, %v3395
    %v3421 = vpack.c.b16 %v3398, %v3397
    %v3422 = vpack.c.b16 %v3400, %v3399
    %v3423 = vpack.c.b16 %v3402, %v3401
    %v3424 = vpack.c.b16 %v3404, %v3403
    %v3425 = vpack.c.b16 %v3406, %v3405
    %v3426 = vpack.c.b16 %v3408, %v3407
    %v3427 = vpack.c.b16 %v3410, %v3409
    %v3428 = vpack.c.b16 %v3412, %v3411
    %3445 = vmatprep.subr.bf16.mxu0 0
    %3446 = vmatpush1.bf16.msra.mxu0 %v3420
    %3447 = vmatprep.subr.bf16.mxu0 0
    %3448 = vmatpush1.bf16.msra.mxu0 %v3419
    %3449 = vmatprep.subr.bf16.mxu0 0
    %3450 = vmatpush1.bf16.msra.mxu0 %v3418
    %3451 = vmatprep.subr.bf16.mxu0 0
    %3452 = vmatpush1.bf16.msra.mxu0 %v3417
    %3453 = vmatprep.subr.bf16.mxu0 0
    %3454 = vmatpush1.bf16.msra.mxu0 %v3416
    %3455 = vmatprep.subr.bf16.mxu0 0
    %3456 = vmatpush1.bf16.msra.mxu0 %v3415
    %3457 = vmatprep.subr.bf16.mxu0 0
    %3458 = vmatpush1.bf16.msra.mxu0 %v3414
    %3459 = vmatprep.subr.bf16.mxu0 0
    %3460 = vmatpush1.bf16.msra.mxu0 %v3413
    %3461 = vmatprep.subr.bf16.mxu0 0
    %3462 = vmatpush2.bf16.msra.mxu0 %v3428
    %3463 = vmatprep.subr.bf16.mxu0 0
    %3464 = vmatpush2.bf16.msra.mxu0 %v3427
    %3465 = vmatprep.subr.bf16.mxu0 0
    %3466 = vmatpush2.bf16.msra.mxu0 %v3426
    %3467 = vmatprep.subr.bf16.mxu0 0
    %3468 = vmatpush2.bf16.msra.mxu0 %v3425
    %3469 = vmatprep.subr.bf16.mxu0 0
    %3470 = vmatpush2.bf16.msra.mxu0 %v3424
    %3471 = vmatprep.subr.bf16.mxu0 0
    %3472 = vmatpush2.bf16.msra.mxu0 %v3423
    %3473 = vmatprep.subr.bf16.mxu0 0
    %3474 = vmatpush2.bf16.msra.mxu0 %v3422
    %3475 = vmatprep.subr.bf16.mxu0 0
    %3476 = vmatpush2.bf16.msra.mxu0 %v3421
    %3477 = vmatprep.mubr.bf16.mxu0 %v3309
    %3478 = vmatmul.mubr.bf16.gmra.mxu0 %v3308
    %v3479 = vpop.f32.mrf.mxu0
    %v3480 = vadd.f32 %v3347, %v3479
    %v3481 = vpop.f32.mrf.mxu0
    %v3482 = vpop.f32.mrf.mxu0
    %v3483 = vpop.f32.mrf.mxu0
    %3484 = vdwg.mxu0
    %v3485 = vxor.u32 %v3480, 2147483648
    %v3486 = vmul.f32 %v3485, 1.442695
    %v3487 = vpow.pop %v3486
    %v3488 = vadd.f32 %v3487, 1.0
    %v3489 = vrcp.pop %v3488
    %v3490 = vmul.f32 1.0, %v3489
    %3491 = vst [vmem:[%s14 + $0xe] sm:$0x3] %v3490
    // Predicated region
    $region50: #{net_forward.1} parent=1 // pred_check
      _
    $region51: #{net_forward.1} parent=1 // pred_check_branch
      %3493 = sbr.rel (0) target = $region53
    $region52: #{net_forward.1} parent=1 // pred_region
      %s3495 = ssub.s32 32, 32
      %3496 = vsyncadd [#allocation3], %s3495
      %s3498 = sshll.u32 [#allocation2], 4
      %s3499 = int_to_ptr.vmem [resolvable:$true] %s3498
      %3501 = dma.vmem_to_hbm [thread:$0]  %s3499, 32, %s12, [#allocation3]
    $region53: #{net_forward.1} parent=1 // pred_fallthru
      _
    // Predicated region
    $region54: #{net_forward.1} parent=1 // pred_check
      _
    $region55: #{net_forward.1} parent=1 // pred_check_branch
      %3503 = sbr.rel (0) target = $region57
    $region56: #{net_forward.1} parent=1 // pred_region
      %s3505 = ssub.s32 32, 32
      %3506 = vsyncadd [#allocation5], %s3505
      %s3508 = sshll.u32 [#allocation4], 4
      %s3509 = int_to_ptr.vmem [resolvable:$true] %s3508
      %3511 = dma.vmem_to_hbm [thread:$0]  %s3509, 32, %s13, [#allocation5]
    $region57: #{net_forward.1} parent=1 // pred_fallthru
      _
    // Predicated region
    $region58: #{net_forward.1} parent=1 // pred_check
      _
    $region59: #{net_forward.1} parent=1 // pred_check_branch
      %3513 = sbr.rel (0) target = $region61
    $region60: #{net_forward.1} parent=1 // pred_region
      _
    $region61: #{net_forward.1} parent=1 // pred_fallthru
      _
    // Predicated region
    $region62: #{net_forward.1} parent=1 // pred_check
      _
    $region63: #{net_forward.1} parent=1 // pred_check_branch
      %3515 = sbr.rel (0) target = $region65
    $region64: #{net_forward.1} parent=1 // pred_region
      %3516 = dma.done [#allocation3], 32
    $region65: #{net_forward.1} parent=1 // pred_fallthru
      _
    // Predicated region
    $region66: #{net_forward.1} parent=1 // pred_check
      _
    $region67: #{net_forward.1} parent=1 // pred_check_branch
      %3518 = sbr.rel (0) target = $region69
    $region68: #{net_forward.1} parent=1 // pred_region
      %3519 = dma.done [#allocation5], 32
    $region69: #{net_forward.1} parent=1 // pred_fallthru
      _
    // Predicated region
    $region70: #{net_forward.1} parent=1 // pred_check
      _
    $region71: #{net_forward.1} parent=1 // pred_check_branch
      %3521 = sbr.rel (0) target = $region73
    $region72: #{net_forward.1} parent=1 // pred_region
      _
    $region73: #{net_forward.1} parent=1 // pred_fallthru
      _
    %3522 = vsyncpa [#allocation3], 1
    %3523 = vsyncpa [#allocation5], 1

</llo_original>
